<compile_context>
chip_gen: v7x
topology: tpu7x:2x2x1
jax: 0.10.0
libtpu: 0.0.40
codegen_flags: <defaults>
</compile_context>

<pallas_src>
import jax
import jax.numpy as jnp
from jax import lax
from jax.experimental import pallas as pl
from jax.experimental.pallas import tpu as pltpu

_LANE = 128


def _make_kernel(H, W, C, halo, b_tile):
    M = H * W

    def conv3x3(hbuf_ref, h, w_ref, mask_left, mask_right):
        """'same'-padded 3x3 conv of h (M, C) as 3 accumulated MXU matmuls.

        One matmul per kernel row dy with K = 3*C: the (M, 3C) bf16 patch for
        that dy is built from three static slices of the shared f32 halo
        buffer (zero halo rows give y-direction zero padding for free; the +-1
        column wrap into the neighbouring image row is masked to zero).
        """
        hbuf_ref[pl.ds(halo, M), :] = h
        acc = None
        for idx_ky, dy in enumerate((-1, 0, 1)):
            base = halo + dy * W
            t_l = jnp.where(mask_left, 0.0, hbuf_ref[pl.ds(base - 1, M), :])
            t_c = hbuf_ref[pl.ds(base, M), :]
            t_r = jnp.where(mask_right, 0.0, hbuf_ref[pl.ds(base + 1, M), :])
            patch = jnp.concatenate(
                [t_l.astype(jnp.bfloat16),
                 t_c.astype(jnp.bfloat16),
                 t_r.astype(jnp.bfloat16)], axis=-1)              # (M, 3C) bf16
            part = jnp.dot(patch, w_ref[idx_ky],                  # (M, C) f32
                           preferred_element_type=jnp.float32)
            acc = part if acc is None else acc + part
        return acc

    def kernel(x_ref, s1_ref, b1_ref, w1_ref, s2_ref, b2_ref, w2_ref,
               out_ref, hbuf_ref):
        # Zero only the halo rows (cheap; the interior is fully rewritten by
        # each conv).  Done unconditionally so it stays correct when the
        # "parallel" batch axis is sharded across TensorCores.
        zeros = jnp.zeros((halo, C), jnp.float32)
        hbuf_ref[pl.ds(0, halo), :] = zeros
        hbuf_ref[pl.ds(halo + M, halo), :] = zeros

        col = lax.broadcasted_iota(jnp.int32, (M, 1), 0) % W
        mask_left = col == 0           # x-1 out of range
        mask_right = col == W - 1      # x+1 out of range

        for b in range(b_tile):        # unrolled; images share the halo scratch
            # BatchNorm2d(inchannel) [folded scale/bias] + ReLU, fed straight
            # from x_ref (x is not kept live across the two convs).
            h = jnp.maximum(x_ref[b] * s1_ref[...] + b1_ref[...], 0.0)
            # Conv2d(in, out, 3, stride=1, padding=1, bias=False)
            c1 = conv3x3(hbuf_ref, h, w1_ref, mask_left, mask_right)
            # Dropout2d(0.3): identity at inference.
            # TODO(synk): training-mode Dropout2d (channel mask + 1/0.7 scale).
            # BatchNorm2d(outchannel) + ReLU fused on the conv1 result.
            h2 = jnp.maximum(c1 * s2_ref[...] + b2_ref[...], 0.0)
            # Conv2d(out, out, 3, stride=1, padding=1, bias=False)
            c2 = conv3x3(hbuf_ref, h2, w2_ref, mask_left, mask_right)
            # identity shortcut (re-read x_ref) + final ReLU
            out_ref[b] = jnp.maximum(c2 + x_ref[b], 0.0)

    return kernel


def _pick_batch_tile(N, per_image_bytes, target_bytes=2 << 20):
    """Images per grid step: fill ~2 MiB but keep >= 2 grid steps when N allows."""
    bt = int(max(1, min(N, target_bytes // max(per_image_bytes, 1))))
    while bt > 1 and (N // bt) < 2:    # >= 2 steps -> pipelining + v7x 2 TCs
        bt -= 1
    while N % bt:                      # block must divide the batch
        bt -= 1
    return bt


def residual_block_forward(x, scale1, bias1, w1, scale2, bias2, w2):
    """x: (N, H, W, Cin) f32; scale/bias broadcastable over channels; w: HWIO."""
    N, H, W, Cin = x.shape
    Cout = w1.shape[-1]
    assert Cin == Cout, "identity shortcut requires inchannel == outchannel"

    C = ((Cin + _LANE - 1) // _LANE) * _LANE     # lane-dense channel padding
    M = H * W
    halo = ((W + 1 + 7) // 8) * 8                # >= W+1 zero halo rows, 8-aligned

    def pad_last(a, target):
        return jnp.pad(a, [(0, 0)] * (a.ndim - 1) + [(0, target - a.shape[-1])])

    xp = pad_last(x.reshape(N, M, Cin).astype(jnp.float32), C)       # (N, M, C)
    s1 = pad_last(scale1.reshape(1, Cin).astype(jnp.float32), C)
    b1 = pad_last(bias1.reshape(1, Cin).astype(jnp.float32), C)
    s2 = pad_last(scale2.reshape(1, Cout).astype(jnp.float32), C)
    b2 = pad_last(bias2.reshape(1, Cout).astype(jnp.float32), C)

    def pack_w(w):
        # (3,3,Cin,Cout) HWIO -> (3 [ky], 3*C, C) bf16, rows ordered (kx, cin)
        wp = jnp.pad(w, ((0, 0), (0, 0), (0, C - w.shape[2]), (0, C - w.shape[3])))
        return wp.reshape(3, 3 * C, C).astype(jnp.bfloat16)

    w1p, w2p = pack_w(w1), pack_w(w2)

    b_tile = _pick_batch_tile(N, M * C * 4)
    grid = (N // b_tile,)

    def const_spec(shape):
        # Grid-invariant operand: constant index_map + single buffer.
        return pl.BlockSpec(shape, lambda n: (0,) * len(shape),
                            pipeline_mode=pl.Buffered(1))

    flops = 2 * (2 * 9 * M * C * C) * N                        # two 3x3 convs
    bytes_accessed = 2 * N * M * C * 4 + 2 * 9 * C * C * 2 + 4 * C * 4

    # VMEM: in/out double-buffered blocks + single-buffered weights + halo
    # scratch + transients; clamp to [32, 48] MiB (v7x has 64 MiB physical).
    est = (2 * 2 * b_tile * M * C * 4          # x + out, double-buffered
           + 2 * 3 * 3 * C * C * 2             # two im2col weights (bf16)
           + (M + 2 * halo) * C * 4            # halo scratch
           + 8 * M * C * 4)                    # patch / acc / tap transients
    vmem_limit = int(min(48 * 1024 * 1024, max(32 * 1024 * 1024, 2 * est)))

    out = pl.pallas_call(
        _make_kernel(H, W, C, halo, b_tile),
        out_shape=jax.ShapeDtypeStruct((N, M, C), jnp.float32),
        grid=grid,
        in_specs=[
            pl.BlockSpec((b_tile, M, C), lambda n: (n, 0, 0)),   # x slab(s)
            const_spec((1, C)),                                  # BN1 scale
            const_spec((1, C)),                                  # BN1 bias
            const_spec((3, 3 * C, C)),                           # conv1 weight
            const_spec((1, C)),                                  # BN2 scale
            const_spec((1, C)),                                  # BN2 bias
            const_spec((3, 3 * C, C)),                           # conv2 weight
        ],
        out_specs=pl.BlockSpec((b_tile, M, C), lambda n: (n, 0, 0)),
        scratch_shapes=[pltpu.VMEM((M + 2 * halo, C), jnp.float32)],
        compiler_params=pltpu.CompilerParams(
            dimension_semantics=("parallel",),
            vmem_limit_bytes=vmem_limit,
        ),
        cost_estimate=pl.CostEstimate(flops=flops, transcendentals=0,
                                      bytes_accessed=bytes_accessed),
    )(xp, s1, b1, w1p, s2, b2, w2p)

    return out[:, :, :Cout].reshape(N, H, W, Cout)


def _reference_forward(x, scale1, bias1, w1, scale2, bias2, w2,
                       conv_dtype=jnp.float32):
    dn = ('NHWC', 'HWIO', 'NHWC')

    def conv(a, w):
        return lax.conv_general_dilated(
            a.astype(conv_dtype), w.astype(conv_dtype), (1, 1), ((1, 1), (1, 1)),
            dimension_numbers=dn, preferred_element_type=jnp.float32,
            precision=lax.Precision.HIGHEST)

    h = jnp.maximum(x * scale1 + bias1, 0.0)
    h = conv(h, w1)
    h = jnp.maximum(h * scale2 + bias2, 0.0)
    h = conv(h, w2)
    return jnp.maximum(h + x, 0.0)


if __name__ == "__main__":
    key = jax.random.PRNGKey(0)
    N, H, W = 2, 16, 16
    Cin = Cout = 8
    eps = 1e-5
    ks = jax.random.split(key, 11)

    x = jax.random.normal(ks[0], (N, H, W, Cin), jnp.float32)

    # BatchNorm2d(inchannel) parameters + running stats (deterministic synthetic init)
    gamma1 = 1.0 + 0.1 * jax.random.normal(ks[1], (Cin,), jnp.float32)
    beta1 = 0.1 * jax.random.normal(ks[2], (Cin,), jnp.float32)
    mean1 = 0.1 * jax.random.normal(ks[3], (Cin,), jnp.float32)
    var1 = jnp.abs(jax.random.normal(ks[4], (Cin,), jnp.float32)) + 0.5

    # Conv2d(inchannel, outchannel, 3, 1, 1, bias=False) weight in HWIO
    w1 = 0.2 * jax.random.normal(ks[5], (3, 3, Cin, Cout), jnp.float32)

    # BatchNorm2d(outchannel) parameters + running stats
    gamma2 = 1.0 + 0.1 * jax.random.normal(ks[6], (Cout,), jnp.float32)
    beta2 = 0.1 * jax.random.normal(ks[7], (Cout,), jnp.float32)
    mean2 = 0.1 * jax.random.normal(ks[8], (Cout,), jnp.float32)
    var2 = jnp.abs(jax.random.normal(ks[9], (Cout,), jnp.float32)) + 0.5

    # Conv2d(outchannel, outchannel, 3, 1, 1, bias=False) weight in HWIO
    w2 = 0.2 * jax.random.normal(ks[10], (3, 3, Cout, Cout), jnp.float32)

    # Fold BN into per-channel scale/bias (inference semantics)
    scale1 = (gamma1 / jnp.sqrt(var1 + eps)).reshape(1, 1, 1, Cin)
    bias1 = (beta1 - mean1 * gamma1 / jnp.sqrt(var1 + eps)).reshape(1, 1, 1, Cin)
    scale2 = (gamma2 / jnp.sqrt(var2 + eps)).reshape(1, 1, 1, Cout)
    bias2 = (beta2 - mean2 * gamma2 / jnp.sqrt(var2 + eps)).reshape(1, 1, 1, Cout)

    out = jax.block_until_ready(
        residual_block_forward(x, scale1, bias1, w1, scale2, bias2, w2))

    # Same-math reference (bf16 conv operands, f32 accumulation) -> tight check.
    ref_bf16 = jax.block_until_ready(_reference_forward(
        x, scale1, bias1, w1, scale2, bias2, w2, conv_dtype=jnp.bfloat16))
    # Full-f32 module reference -> loose check (kernel uses bf16 MXU operands).
    ref_f32 = jax.block_until_ready(_reference_forward(
        x, scale1, bias1, w1, scale2, bias2, w2, conv_dtype=jnp.float32))

    if not jnp.allclose(out, ref_bf16, atol=2e-3, rtol=2e-3):
        raise AssertionError("Pallas kernel does not match bf16-operand reference")
    if not jnp.allclose(out, ref_f32, atol=5e-2, rtol=5e-2):
        raise AssertionError("Pallas kernel does not match f32 reference")

    print("KERNEL_OK")
</pallas_src>

<mosaic_0001>
module attributes {stable_mosaic.version = 11 : i64} {
  func.func @kernel(%arg0: i32, %arg1: memref<1x256x128xf32, #tpu.memory_space<vmem>>, %arg2: memref<1x128xf32, #tpu.memory_space<vmem>>, %arg3: memref<1x128xf32, #tpu.memory_space<vmem>>, %arg4: memref<3x384x128xbf16, #tpu.memory_space<vmem>>, %arg5: memref<1x128xf32, #tpu.memory_space<vmem>>, %arg6: memref<1x128xf32, #tpu.memory_space<vmem>>, %arg7: memref<3x384x128xbf16, #tpu.memory_space<vmem>>, %arg8: memref<1x256x128xf32, #tpu.memory_space<vmem>>, %arg9: memref<304x128xf32, #tpu.memory_space<vmem>>) attributes {dimension_semantics = [#tpu.dimension_semantics<parallel>], iteration_bounds = array<i64: 2>, scalar_prefetch = 0 : i64, scratch_operands = 1 : i64, tpu.core_type = #tpu.core_type<tc>, window_params = [{transform_indices = @transform_0, window_bounds = array<i64: 1, 256, 128>}, {pipeline_mode = #tpu.pipeline_mode<synchronous>, transform_indices = @transform_1, window_bounds = array<i64: 1, 128>}, {pipeline_mode = #tpu.pipeline_mode<synchronous>, transform_indices = @transform_2, window_bounds = array<i64: 1, 128>}, {pipeline_mode = #tpu.pipeline_mode<synchronous>, transform_indices = @transform_3, window_bounds = array<i64: 3, 384, 128>}, {pipeline_mode = #tpu.pipeline_mode<synchronous>, transform_indices = @transform_4, window_bounds = array<i64: 1, 128>}, {pipeline_mode = #tpu.pipeline_mode<synchronous>, transform_indices = @transform_5, window_bounds = array<i64: 1, 128>}, {pipeline_mode = #tpu.pipeline_mode<synchronous>, transform_indices = @transform_6, window_bounds = array<i64: 3, 384, 128>}, {transform_indices = @transform_7, window_bounds = array<i64: 1, 256, 128>}]} {
    %cst = arith.constant 0.000000e+00 : f32
    %0 = vector.broadcast %cst : f32 to vector<24x128xf32>
    %c0 = arith.constant 0 : index
    %c0_0 = arith.constant 0 : index
    %1 = vector.load %arg9[%c0, %c0_0] : memref<304x128xf32, #tpu.memory_space<vmem>>, vector<24x128xf32>
    tpu.vector_store %arg9[%c0, %c0_0], %0 {strides = array<i32>} : memref<304x128xf32, #tpu.memory_space<vmem>>, vector<24x128xf32>,
    %c280 = arith.constant 280 : index
    %c0_1 = arith.constant 0 : index
    %2 = vector.load %arg9[%c280, %c0_1] : memref<304x128xf32, #tpu.memory_space<vmem>>, vector<24x128xf32>
    tpu.vector_store %arg9[%c280, %c0_1], %0 {strides = array<i32>} : memref<304x128xf32, #tpu.memory_space<vmem>>, vector<24x128xf32>,
    %3 = tpu.iota {dimensions = array<i32: 0>} : vector<256x1xi32>
    %c16_i32 = arith.constant 16 : i32
    %c0_i32 = arith.constant 0 : i32
    %4 = arith.cmpi eq, %c16_i32, %c0_i32 : i32
    %c1_i32 = arith.constant 1 : i32
    %5 = arith.select %4, %c1_i32, %c16_i32 : i32
    %6 = vector.broadcast %5 : i32 to vector<256x1xi32>
    %7 = arith.remsi %3, %6 : vector<256x1xi32>
    %c0_i32_2 = arith.constant 0 : i32
    %8 = vector.broadcast %c0_i32_2 : i32 to vector<256x1xi32>
    %9 = arith.cmpi ne, %7, %8 : vector<256x1xi32>
    %c0_i32_3 = arith.constant 0 : i32
    %10 = vector.broadcast %c0_i32_3 : i32 to vector<256x1xi32>
    %11 = arith.cmpi slt, %7, %10 : vector<256x1xi32>
    %c0_i32_4 = arith.constant 0 : i32
    %12 = arith.cmpi slt, %5, %c0_i32_4 : i32
    %13 = vector.broadcast %12 : i1 to vector<256x1xi1>
    %14 = vector.broadcast %13 : vector<256x1xi1> to vector<256x1xi1>
    %15 = arith.xori %11, %14 : vector<256x1xi1>
    %16 = arith.andi %15, %9 : vector<256x1xi1>
    %17 = vector.broadcast %5 : i32 to vector<256x1xi32>
    %18 = arith.addi %7, %17 : vector<256x1xi32>
    %19 = arith.select %16, %18, %7 : vector<256x1xi1>, vector<256x1xi32>
    %c0_i32_5 = arith.constant 0 : i32
    %20 = vector.broadcast %c0_i32_5 : i32 to vector<256x1xi32>
    %21 = arith.cmpi eq, %19, %20 : vector<256x1xi32>
    %c15_i32 = arith.constant 15 : i32
    %22 = vector.broadcast %c15_i32 : i32 to vector<256x1xi32>
    %23 = arith.cmpi eq, %19, %22 : vector<256x1xi32>
    %c0_6 = arith.constant 0 : index
    %c0_7 = arith.constant 0 : index
    %c0_8 = arith.constant 0 : index
    %24 = vector.load %arg1[%c0_6, %c0_7, %c0_8] : memref<1x256x128xf32, #tpu.memory_space<vmem>>, vector<1x256x128xf32>
    %25 = vector.shape_cast %24 : vector<1x256x128xf32> to vector<256x128xf32>
    %c0_9 = arith.constant 0 : index
    %c0_10 = arith.constant 0 : index
    %26 = vector.load %arg2[%c0_9, %c0_10] : memref<1x128xf32, #tpu.memory_space<vmem>>, vector<1x128xf32>
    %27 = vector.broadcast %26 : vector<1x128xf32> to vector<256x128xf32>
    %28 = arith.mulf %25, %27 : vector<256x128xf32>
    %c0_11 = arith.constant 0 : index
    %c0_12 = arith.constant 0 : index
    %29 = vector.load %arg3[%c0_11, %c0_12] : memref<1x128xf32, #tpu.memory_space<vmem>>, vector<1x128xf32>
    %30 = vector.broadcast %29 : vector<1x128xf32> to vector<256x128xf32>
    %31 = arith.addf %28, %30 : vector<256x128xf32>
    %cst_13 = arith.constant 0.000000e+00 : f32
    %32 = vector.broadcast %cst_13 : f32 to vector<256x128xf32>
    %33 = arith.maximumf %31, %32 : vector<256x128xf32>
    %c24 = arith.constant 24 : index
    %c0_14 = arith.constant 0 : index
    %34 = vector.load %arg9[%c24, %c0_14] : memref<304x128xf32, #tpu.memory_space<vmem>>, vector<256x128xf32>
    tpu.vector_store %arg9[%c24, %c0_14], %33 {strides = array<i32>} : memref<304x128xf32, #tpu.memory_space<vmem>>, vector<256x128xf32>,
    %c7 = arith.constant 7 : index
    %c0_15 = arith.constant 0 : index
    %35 = vector.load %arg9[%c7, %c0_15] : memref<304x128xf32, #tpu.memory_space<vmem>>, vector<256x128xf32>
    %cst_16 = arith.constant 0.000000e+00 : f32
    %36 = vector.shape_cast %21 : vector<256x1xi1> to vector<256x1xi1>
    %37 = vector.broadcast %36 : vector<256x1xi1> to vector<256x128xi1>
    %38 = vector.broadcast %cst_16 : f32 to vector<256x128xf32>
    %39 = arith.select %37, %38, %35 : vector<256x128xi1>, vector<256x128xf32>
    %c8 = arith.constant 8 : index
    %c0_17 = arith.constant 0 : index
    %40 = vector.load %arg9[%c8, %c0_17] : memref<304x128xf32, #tpu.memory_space<vmem>>, vector<256x128xf32>
    %c9 = arith.constant 9 : index
    %c0_18 = arith.constant 0 : index
    %41 = vector.load %arg9[%c9, %c0_18] : memref<304x128xf32, #tpu.memory_space<vmem>>, vector<256x128xf32>
    %cst_19 = arith.constant 0.000000e+00 : f32
    %42 = vector.shape_cast %23 : vector<256x1xi1> to vector<256x1xi1>
    %43 = vector.broadcast %42 : vector<256x1xi1> to vector<256x128xi1>
    %44 = vector.broadcast %cst_19 : f32 to vector<256x128xf32>
    %45 = arith.select %43, %44, %41 : vector<256x128xi1>, vector<256x128xf32>
    %46 = arith.truncf %39 : vector<256x128xf32> to vector<256x128xbf16>
    %47 = arith.truncf %40 : vector<256x128xf32> to vector<256x128xbf16>
    %48 = arith.truncf %45 : vector<256x128xf32> to vector<256x128xbf16>
    %49 = tpu.concatenate %46, %47, %48 in 1 : vector<256x128xbf16>, vector<256x128xbf16>, vector<256x128xbf16> -> vector<256x384xbf16>
    %c0_20 = arith.constant 0 : index
    %c0_21 = arith.constant 0 : index
    %c0_22 = arith.constant 0 : index
    %50 = vector.load %arg4[%c0_20, %c0_21, %c0_22] : memref<3x384x128xbf16, #tpu.memory_space<vmem>>, vector<1x384x128xbf16>
    %51 = vector.shape_cast %50 : vector<1x384x128xbf16> to vector<384x128xbf16>
    %cst_23 = arith.constant dense<0.000000e+00> : vector<256x128xf32>
    %52 = tpu.matmul %49, %51, %cst_23 {dimension_numbers = #tpu.dot_dimension_numbers<[1], [0], [0], [1], [0, 0, 1, 1], [], []>} : vector<256x384xbf16>, vector<384x128xbf16>, vector<256x128xf32> -> vector<256x128xf32>
    %c23 = arith.constant 23 : index
    %c0_24 = arith.constant 0 : index
    %53 = vector.load %arg9[%c23, %c0_24] : memref<304x128xf32, #tpu.memory_space<vmem>>, vector<256x128xf32>
    %cst_25 = arith.constant 0.000000e+00 : f32
    %54 = vector.shape_cast %21 : vector<256x1xi1> to vector<256x1xi1>
    %55 = vector.broadcast %54 : vector<256x1xi1> to vector<256x128xi1>
    %56 = vector.broadcast %cst_25 : f32 to vector<256x128xf32>
    %57 = arith.select %55, %56, %53 : vector<256x128xi1>, vector<256x128xf32>
    %c24_26 = arith.constant 24 : index
    %c0_27 = arith.constant 0 : index
    %58 = vector.load %arg9[%c24_26, %c0_27] : memref<304x128xf32, #tpu.memory_space<vmem>>, vector<256x128xf32>
    %c25 = arith.constant 25 : index
    %c0_28 = arith.constant 0 : index
    %59 = vector.load %arg9[%c25, %c0_28] : memref<304x128xf32, #tpu.memory_space<vmem>>, vector<256x128xf32>
    %cst_29 = arith.constant 0.000000e+00 : f32
    %60 = vector.shape_cast %23 : vector<256x1xi1> to vector<256x1xi1>
    %61 = vector.broadcast %60 : vector<256x1xi1> to vector<256x128xi1>
    %62 = vector.broadcast %cst_29 : f32 to vector<256x128xf32>
    %63 = arith.select %61, %62, %59 : vector<256x128xi1>, vector<256x128xf32>
    %64 = arith.truncf %57 : vector<256x128xf32> to vector<256x128xbf16>
    %65 = arith.truncf %58 : vector<256x128xf32> to vector<256x128xbf16>
    %66 = arith.truncf %63 : vector<256x128xf32> to vector<256x128xbf16>
    %67 = tpu.concatenate %64, %65, %66 in 1 : vector<256x128xbf16>, vector<256x128xbf16>, vector<256x128xbf16> -> vector<256x384xbf16>
    %c1 = arith.constant 1 : index
    %c0_30 = arith.constant 0 : index
    %c0_31 = arith.constant 0 : index
    %68 = vector.load %arg4[%c1, %c0_30, %c0_31] : memref<3x384x128xbf16, #tpu.memory_space<vmem>>, vector<1x384x128xbf16>
    %69 = vector.shape_cast %68 : vector<1x384x128xbf16> to vector<384x128xbf16>
    %cst_32 = arith.constant dense<0.000000e+00> : vector<256x128xf32>
    %70 = tpu.matmul %67, %69, %cst_32 {dimension_numbers = #tpu.dot_dimension_numbers<[1], [0], [0], [1], [0, 0, 1, 1], [], []>} : vector<256x384xbf16>, vector<384x128xbf16>, vector<256x128xf32> -> vector<256x128xf32>
    %71 = arith.addf %52, %70 : vector<256x128xf32>
    %c39 = arith.constant 39 : index
    %c0_33 = arith.constant 0 : index
    %72 = vector.load %arg9[%c39, %c0_33] : memref<304x128xf32, #tpu.memory_space<vmem>>, vector<256x128xf32>
    %cst_34 = arith.constant 0.000000e+00 : f32
    %73 = vector.shape_cast %21 : vector<256x1xi1> to vector<256x1xi1>
    %74 = vector.broadcast %73 : vector<256x1xi1> to vector<256x128xi1>
    %75 = vector.broadcast %cst_34 : f32 to vector<256x128xf32>
    %76 = arith.select %74, %75, %72 : vector<256x128xi1>, vector<256x128xf32>
    %c40 = arith.constant 40 : index
    %c0_35 = arith.constant 0 : index
    %77 = vector.load %arg9[%c40, %c0_35] : memref<304x128xf32, #tpu.memory_space<vmem>>, vector<256x128xf32>
    %c41 = arith.constant 41 : index
    %c0_36 = arith.constant 0 : index
    %78 = vector.load %arg9[%c41, %c0_36] : memref<304x128xf32, #tpu.memory_space<vmem>>, vector<256x128xf32>
    %cst_37 = arith.constant 0.000000e+00 : f32
    %79 = vector.shape_cast %23 : vector<256x1xi1> to vector<256x1xi1>
    %80 = vector.broadcast %79 : vector<256x1xi1> to vector<256x128xi1>
    %81 = vector.broadcast %cst_37 : f32 to vector<256x128xf32>
    %82 = arith.select %80, %81, %78 : vector<256x128xi1>, vector<256x128xf32>
    %83 = arith.truncf %76 : vector<256x128xf32> to vector<256x128xbf16>
    %84 = arith.truncf %77 : vector<256x128xf32> to vector<256x128xbf16>
    %85 = arith.truncf %82 : vector<256x128xf32> to vector<256x128xbf16>
    %86 = tpu.concatenate %83, %84, %85 in 1 : vector<256x128xbf16>, vector<256x128xbf16>, vector<256x128xbf16> -> vector<256x384xbf16>
    %c2 = arith.constant 2 : index
    %c0_38 = arith.constant 0 : index
    %c0_39 = arith.constant 0 : index
    %87 = vector.load %arg4[%c2, %c0_38, %c0_39] : memref<3x384x128xbf16, #tpu.memory_space<vmem>>, vector<1x384x128xbf16>
    %88 = vector.shape_cast %87 : vector<1x384x128xbf16> to vector<384x128xbf16>
    %cst_40 = arith.constant dense<0.000000e+00> : vector<256x128xf32>
    %89 = tpu.matmul %86, %88, %cst_40 {dimension_numbers = #tpu.dot_dimension_numbers<[1], [0], [0], [1], [0, 0, 1, 1], [], []>} : vector<256x384xbf16>, vector<384x128xbf16>, vector<256x128xf32> -> vector<256x128xf32>
    %90 = arith.addf %71, %89 : vector<256x128xf32>
    %c0_41 = arith.constant 0 : index
    %c0_42 = arith.constant 0 : index
    %91 = vector.load %arg5[%c0_41, %c0_42] : memref<1x128xf32, #tpu.memory_space<vmem>>, vector<1x128xf32>
    %92 = vector.broadcast %91 : vector<1x128xf32> to vector<256x128xf32>
    %93 = arith.mulf %90, %92 : vector<256x128xf32>
    %c0_43 = arith.constant 0 : index
    %c0_44 = arith.constant 0 : index
    %94 = vector.load %arg6[%c0_43, %c0_44] : memref<1x128xf32, #tpu.memory_space<vmem>>, vector<1x128xf32>
    %95 = vector.broadcast %94 : vector<1x128xf32> to vector<256x128xf32>
    %96 = arith.addf %93, %95 : vector<256x128xf32>
    %cst_45 = arith.constant 0.000000e+00 : f32
    %97 = vector.broadcast %cst_45 : f32 to vector<256x128xf32>
    %98 = arith.maximumf %96, %97 : vector<256x128xf32>
    %c24_46 = arith.constant 24 : index
    %c0_47 = arith.constant 0 : index
    %99 = vector.load %arg9[%c24_46, %c0_47] : memref<304x128xf32, #tpu.memory_space<vmem>>, vector<256x128xf32>
    tpu.vector_store %arg9[%c24_46, %c0_47], %98 {strides = array<i32>} : memref<304x128xf32, #tpu.memory_space<vmem>>, vector<256x128xf32>,
    %c7_48 = arith.constant 7 : index
    %c0_49 = arith.constant 0 : index
    %100 = vector.load %arg9[%c7_48, %c0_49] : memref<304x128xf32, #tpu.memory_space<vmem>>, vector<256x128xf32>
    %cst_50 = arith.constant 0.000000e+00 : f32
    %101 = vector.shape_cast %21 : vector<256x1xi1> to vector<256x1xi1>
    %102 = vector.broadcast %101 : vector<256x1xi1> to vector<256x128xi1>
    %103 = vector.broadcast %cst_50 : f32 to vector<256x128xf32>
    %104 = arith.select %102, %103, %100 : vector<256x128xi1>, vector<256x128xf32>
    %c8_51 = arith.constant 8 : index
    %c0_52 = arith.constant 0 : index
    %105 = vector.load %arg9[%c8_51, %c0_52] : memref<304x128xf32, #tpu.memory_space<vmem>>, vector<256x128xf32>
    %c9_53 = arith.constant 9 : index
    %c0_54 = arith.constant 0 : index
    %106 = vector.load %arg9[%c9_53, %c0_54] : memref<304x128xf32, #tpu.memory_space<vmem>>, vector<256x128xf32>
    %cst_55 = arith.constant 0.000000e+00 : f32
    %107 = vector.shape_cast %23 : vector<256x1xi1> to vector<256x1xi1>
    %108 = vector.broadcast %107 : vector<256x1xi1> to vector<256x128xi1>
    %109 = vector.broadcast %cst_55 : f32 to vector<256x128xf32>
    %110 = arith.select %108, %109, %106 : vector<256x128xi1>, vector<256x128xf32>
    %111 = arith.truncf %104 : vector<256x128xf32> to vector<256x128xbf16>
    %112 = arith.truncf %105 : vector<256x128xf32> to vector<256x128xbf16>
    %113 = arith.truncf %110 : vector<256x128xf32> to vector<256x128xbf16>
    %114 = tpu.concatenate %111, %112, %113 in 1 : vector<256x128xbf16>, vector<256x128xbf16>, vector<256x128xbf16> -> vector<256x384xbf16>
    %c0_56 = arith.constant 0 : index
    %c0_57 = arith.constant 0 : index
    %c0_58 = arith.constant 0 : index
    %115 = vector.load %arg7[%c0_56, %c0_57, %c0_58] : memref<3x384x128xbf16, #tpu.memory_space<vmem>>, vector<1x384x128xbf16>
    %116 = vector.shape_cast %115 : vector<1x384x128xbf16> to vector<384x128xbf16>
    %cst_59 = arith.constant dense<0.000000e+00> : vector<256x128xf32>
    %117 = tpu.matmul %114, %116, %cst_59 {dimension_numbers = #tpu.dot_dimension_numbers<[1], [0], [0], [1], [0, 0, 1, 1], [], []>} : vector<256x384xbf16>, vector<384x128xbf16>, vector<256x128xf32> -> vector<256x128xf32>
    %c23_60 = arith.constant 23 : index
    %c0_61 = arith.constant 0 : index
    %118 = vector.load %arg9[%c23_60, %c0_61] : memref<304x128xf32, #tpu.memory_space<vmem>>, vector<256x128xf32>
    %cst_62 = arith.constant 0.000000e+00 : f32
    %119 = vector.shape_cast %21 : vector<256x1xi1> to vector<256x1xi1>
    %120 = vector.broadcast %119 : vector<256x1xi1> to vector<256x128xi1>
    %121 = vector.broadcast %cst_62 : f32 to vector<256x128xf32>
    %122 = arith.select %120, %121, %118 : vector<256x128xi1>, vector<256x128xf32>
    %c24_63 = arith.constant 24 : index
    %c0_64 = arith.constant 0 : index
    %123 = vector.load %arg9[%c24_63, %c0_64] : memref<304x128xf32, #tpu.memory_space<vmem>>, vector<256x128xf32>
    %c25_65 = arith.constant 25 : index
    %c0_66 = arith.constant 0 : index
    %124 = vector.load %arg9[%c25_65, %c0_66] : memref<304x128xf32, #tpu.memory_space<vmem>>, vector<256x128xf32>
    %cst_67 = arith.constant 0.000000e+00 : f32
    %125 = vector.shape_cast %23 : vector<256x1xi1> to vector<256x1xi1>
    %126 = vector.broadcast %125 : vector<256x1xi1> to vector<256x128xi1>
    %127 = vector.broadcast %cst_67 : f32 to vector<256x128xf32>
    %128 = arith.select %126, %127, %124 : vector<256x128xi1>, vector<256x128xf32>
    %129 = arith.truncf %122 : vector<256x128xf32> to vector<256x128xbf16>
    %130 = arith.truncf %123 : vector<256x128xf32> to vector<256x128xbf16>
    %131 = arith.truncf %128 : vector<256x128xf32> to vector<256x128xbf16>
    %132 = tpu.concatenate %129, %130, %131 in 1 : vector<256x128xbf16>, vector<256x128xbf16>, vector<256x128xbf16> -> vector<256x384xbf16>
    %c1_68 = arith.constant 1 : index
    %c0_69 = arith.constant 0 : index
    %c0_70 = arith.constant 0 : index
    %133 = vector.load %arg7[%c1_68, %c0_69, %c0_70] : memref<3x384x128xbf16, #tpu.memory_space<vmem>>, vector<1x384x128xbf16>
    %134 = vector.shape_cast %133 : vector<1x384x128xbf16> to vector<384x128xbf16>
    %cst_71 = arith.constant dense<0.000000e+00> : vector<256x128xf32>
    %135 = tpu.matmul %132, %134, %cst_71 {dimension_numbers = #tpu.dot_dimension_numbers<[1], [0], [0], [1], [0, 0, 1, 1], [], []>} : vector<256x384xbf16>, vector<384x128xbf16>, vector<256x128xf32> -> vector<256x128xf32>
    %136 = arith.addf %117, %135 : vector<256x128xf32>
    %c39_72 = arith.constant 39 : index
    %c0_73 = arith.constant 0 : index
    %137 = vector.load %arg9[%c39_72, %c0_73] : memref<304x128xf32, #tpu.memory_space<vmem>>, vector<256x128xf32>
    %cst_74 = arith.constant 0.000000e+00 : f32
    %138 = vector.shape_cast %21 : vector<256x1xi1> to vector<256x1xi1>
    %139 = vector.broadcast %138 : vector<256x1xi1> to vector<256x128xi1>
    %140 = vector.broadcast %cst_74 : f32 to vector<256x128xf32>
    %141 = arith.select %139, %140, %137 : vector<256x128xi1>, vector<256x128xf32>
    %c40_75 = arith.constant 40 : index
    %c0_76 = arith.constant 0 : index
    %142 = vector.load %arg9[%c40_75, %c0_76] : memref<304x128xf32, #tpu.memory_space<vmem>>, vector<256x128xf32>
    %c41_77 = arith.constant 41 : index
    %c0_78 = arith.constant 0 : index
    %143 = vector.load %arg9[%c41_77, %c0_78] : memref<304x128xf32, #tpu.memory_space<vmem>>, vector<256x128xf32>
    %cst_79 = arith.constant 0.000000e+00 : f32
    %144 = vector.shape_cast %23 : vector<256x1xi1> to vector<256x1xi1>
    %145 = vector.broadcast %144 : vector<256x1xi1> to vector<256x128xi1>
    %146 = vector.broadcast %cst_79 : f32 to vector<256x128xf32>
    %147 = arith.select %145, %146, %143 : vector<256x128xi1>, vector<256x128xf32>
    %148 = arith.truncf %141 : vector<256x128xf32> to vector<256x128xbf16>
    %149 = arith.truncf %142 : vector<256x128xf32> to vector<256x128xbf16>
    %150 = arith.truncf %147 : vector<256x128xf32> to vector<256x128xbf16>
    %151 = tpu.concatenate %148, %149, %150 in 1 : vector<256x128xbf16>, vector<256x128xbf16>, vector<256x128xbf16> -> vector<256x384xbf16>
    %c2_80 = arith.constant 2 : index
    %c0_81 = arith.constant 0 : index
    %c0_82 = arith.constant 0 : index
    %152 = vector.load %arg7[%c2_80, %c0_81, %c0_82] : memref<3x384x128xbf16, #tpu.memory_space<vmem>>, vector<1x384x128xbf16>
    %153 = vector.shape_cast %152 : vector<1x384x128xbf16> to vector<384x128xbf16>
    %cst_83 = arith.constant dense<0.000000e+00> : vector<256x128xf32>
    %154 = tpu.matmul %151, %153, %cst_83 {dimension_numbers = #tpu.dot_dimension_numbers<[1], [0], [0], [1], [0, 0, 1, 1], [], []>} : vector<256x384xbf16>, vector<384x128xbf16>, vector<256x128xf32> -> vector<256x128xf32>
    %155 = arith.addf %136, %154 : vector<256x128xf32>
    %c0_84 = arith.constant 0 : index
    %c0_85 = arith.constant 0 : index
    %c0_86 = arith.constant 0 : index
    %156 = vector.load %arg1[%c0_84, %c0_85, %c0_86] : memref<1x256x128xf32, #tpu.memory_space<vmem>>, vector<1x256x128xf32>
    %157 = vector.shape_cast %156 : vector<1x256x128xf32> to vector<256x128xf32>
    %158 = arith.addf %155, %157 : vector<256x128xf32>
    %cst_87 = arith.constant 0.000000e+00 : f32
    %159 = vector.broadcast %cst_87 : f32 to vector<256x128xf32>
    %160 = arith.maximumf %158, %159 : vector<256x128xf32>
    %c0_88 = arith.constant 0 : index
    %c0_89 = arith.constant 0 : index
    %c0_90 = arith.constant 0 : index
    %161 = vector.load %arg8[%c0_88, %c0_89, %c0_90] : memref<1x256x128xf32, #tpu.memory_space<vmem>>, vector<1x256x128xf32>
    %162 = vector.shape_cast %161 : vector<1x256x128xf32> to vector<256x128xf32>
    %163 = vector.shape_cast %160 : vector<256x128xf32> to vector<1x256x128xf32>
    tpu.vector_store %arg8[%c0_88, %c0_89, %c0_90], %163 {strides = array<i32>} : memref<1x256x128xf32, #tpu.memory_space<vmem>>, vector<1x256x128xf32>,
    return
  }
  func.func @transform_0(%arg0: i32) -> (i32, i32, i32) {
    %c0_i32 = arith.constant 0 : i32
    %c0_i32_0 = arith.constant 0 : i32
    %c0_i32_1 = arith.constant 0 : i32
    return %arg0, %c0_i32, %c0_i32_0 : i32, i32, i32
  }
  func.func @transform_1(%arg0: i32) -> (i32, i32) {
    %c0_i32 = arith.constant 0 : i32
    %c0_i32_0 = arith.constant 0 : i32
    %c0_i32_1 = arith.constant 0 : i32
    return %c0_i32, %c0_i32_0 : i32, i32
  }
  func.func @transform_2(%arg0: i32) -> (i32, i32) {
    %c0_i32 = arith.constant 0 : i32
    %c0_i32_0 = arith.constant 0 : i32
    %c0_i32_1 = arith.constant 0 : i32
    return %c0_i32, %c0_i32_0 : i32, i32
  }
  func.func @transform_3(%arg0: i32) -> (i32, i32, i32) {
    %c0_i32 = arith.constant 0 : i32
    %c0_i32_0 = arith.constant 0 : i32
    %c0_i32_1 = arith.constant 0 : i32
    %c0_i32_2 = arith.constant 0 : i32
    return %c0_i32, %c0_i32_0, %c0_i32_1 : i32, i32, i32
  }
  func.func @transform_4(%arg0: i32) -> (i32, i32) {
    %c0_i32 = arith.constant 0 : i32
    %c0_i32_0 = arith.constant 0 : i32
    %c0_i32_1 = arith.constant 0 : i32
    return %c0_i32, %c0_i32_0 : i32, i32
  }
  func.func @transform_5(%arg0: i32) -> (i32, i32) {
    %c0_i32 = arith.constant 0 : i32
    %c0_i32_0 = arith.constant 0 : i32
    %c0_i32_1 = arith.constant 0 : i32
    return %c0_i32, %c0_i32_0 : i32, i32
  }
  func.func @transform_6(%arg0: i32) -> (i32, i32, i32) {
    %c0_i32 = arith.constant 0 : i32
    %c0_i32_0 = arith.constant 0 : i32
    %c0_i32_1 = arith.constant 0 : i32
    %c0_i32_2 = arith.constant 0 : i32
    return %c0_i32, %c0_i32_0, %c0_i32_1 : i32, i32, i32
  }
  func.func @transform_7(%arg0: i32) -> (i32, i32, i32) {
    %c0_i32 = arith.constant 0 : i32
    %c0_i32_0 = arith.constant 0 : i32
    %c0_i32_1 = arith.constant 0 : i32
    return %arg0, %c0_i32, %c0_i32_0 : i32, i32, i32
  }
}

</mosaic_0001>

<llo_original>
// kernel: tpu_custom_call.1
$region0: #{tpu_custom_call.1}
  #allocation0 [shape = 'u32[]', space=smem, size = 0x4, offset = 0x4, fixed_abs, tag = 'smem constant byte address 0x4 - core index']
  #allocation1 [shape = 'u32[144,128]{1,0:T(1,128)}', space=vmem, size = 0x12000, scoped, tag = 'internal scratch']
  #allocation2 [shape = 'f32[304,128]{1,0:T(8,128)}', space=vmem, size = 0x26000, scoped, tag = 'scratch operand']
  %s0 = inlined_call_operand.hbm [shape: f32[2,256,128], index: 0, kind: input, shape index: {}]
  %s1 = inlined_call_operand.vmem [shape: f32[1,128], index: 1, kind: input, shape index: {}]
  %s2 = inlined_call_operand.vmem [shape: f32[1,128], index: 2, kind: input, shape index: {}]
  %s3 = inlined_call_operand.hbm [shape: bf16[3,384,128], index: 3, kind: input, shape index: {}]
  %s4 = inlined_call_operand.vmem [shape: f32[1,128], index: 4, kind: input, shape index: {}]
  %s5 = inlined_call_operand.vmem [shape: f32[1,128], index: 5, kind: input, shape index: {}]
  %s6 = inlined_call_operand.hbm [shape: bf16[3,384,128], index: 6, kind: input, shape index: {}]
  %s7 = inlined_call_operand.hbm [shape: f32[2,256,128], index: 7, kind: output, shape index: {}]
  %s8 = sld [smem:[#allocation0]]
  $region73: #{tpu_custom_call.1} parent=0
    _
  %s10 = ssub.s32 1, %s8
  %s11 = scalar_select 0, %s10, %s8
  $region1: #{tpu_custom_call.1} parent=0
    #allocation3 [shape = 'u8[262144]{0}', space=vmem, size = 0x40000, scoped, tag = 'input window, operand 0']
    #allocation4 [shape = 's32[2]{0}', space=sflag, size = 0x8, scoped, tag = 'scoped memory for tpu_custom_call.1']
    #allocation5 [shape = 's32[2]{0}', space=sflag, size = 0x8, scoped, tag = 'scoped memory for tpu_custom_call.1']
    #allocation6 [shape = 'u8[294912]{0}', space=vmem, size = 0x48000, scoped, tag = 'input window, operand 3, single buffered']
    #allocation7 [shape = 's32[1]{0}', space=sflag, size = 0x4, scoped, tag = 'scoped memory for tpu_custom_call.1']
    #allocation8 [shape = 'u8[294912]{0}', space=vmem, size = 0x48000, scoped, tag = 'input window, operand 6, single buffered']
    #allocation9 [shape = 'u8[262144]{0}', space=vmem, size = 0x40000, scoped, tag = 'output window, operand 0']
    %12 = vsyncpa [#allocation4], 0
    %s13 = scalar_lea.sflag [#allocation4], 1
    %14 = vsyncpa %s13, 0
    %15 = vsyncpa [#allocation7], 0
    %16 = vsyncpa [#allocation5], 0
    %s17 = scalar_lea.sflag [#allocation5], 1
    %18 = vsyncpa %s17, 0
    loop: start=0, step=1, limit=4
    $region2: #{tpu_custom_call.1} parent=1 // loop_pre_header
      _
    $region3: #{tpu_custom_call.1} parent=1 // loop_header
      %s20 = sphi 0, %s24
      %p21 = scmp.ge.s32.totalorder %s20, 4
      %s30 = sphi 0, %s32
      %s33 = sphi 0, %s30
      %s34 = sphi 0, %s33
      %s50 = sphi 0, %s34
      %s54 = sphi 0, %s54
      %s56 = sphi 0, %s54
      %s57 = sphi 0, %s56
      %s71 = sphi 0, %s57
      %s75 = sphi 0, %s75
      %s77 = sphi 0, %s75
      %s78 = sphi 0, %s77
      %s92 = sphi 0, %s78
      %s96 = sphi 0, %s96
      %s98 = sphi 0, %s96
      %s99 = sphi 0, %s98
      %s113 = sphi 0, %s99
      %s117 = sphi 0, %s117
      %s119 = sphi 0, %s117
      %s120 = sphi 0, %s119
      %s134 = sphi 0, %s120
      %s138 = sphi 0, %s138
      %s140 = sphi 0, %s138
      %s141 = sphi 0, %s140
      %s155 = sphi 0, %s141
      %s159 = sphi 0, %s159
      %s161 = sphi 0, %s159
      %s162 = sphi 0, %s161
      %s176 = sphi 0, %s162
      %s182 = sphi 0, %s184
      %s185 = sphi 0, %s182
      %s186 = sphi 0, %s185
      %s202 = sphi 0, %s186
    $region4: #{tpu_custom_call.1} parent=1 // loop_header_branch
      %23 = sbr.rel (%p21) target = $region8
    $region5: #{tpu_custom_call.1} parent=1 // loop_body
      %s25 = ssub.s32 %s20, 1
      %s26 = ssub.s32 %s20, 2
      %s27 = sadd.s32 %s20, 1
      %s28 = ssub.s32 %s20, %s27
      %p29 = scmp.eq.s32.totalorder %s28, 0
      %s31 = sadd.s32 %s30, 1
      %s32 = scalar_select %p29, %s30, %s31
      %p35 = pneg %p29
      %p36 = scmp.eq.s32.totalorder %s20, 1
      %p37 = por %p35, %p36
      %p38 = scmp.ne.s32.totalorder %s30, %s33
      %p39 = scmp.eq.s32.totalorder %s20, 0
      %p40 = por %p38, %p39
      %p41 = scmp.ne.s32.totalorder %s30, %s33
      %p42 = scmp.eq.s32.totalorder %s25, 1
      %p43 = por %p41, %p42
      %p44 = scmp.ne.s32.totalorder %s33, %s34
      %p45 = scmp.eq.s32.totalorder %s25, 0
      %p46 = por %p44, %p45
      %p47 = scmp.ne.s32.totalorder %s33, %s34
      %p48 = scmp.eq.s32.totalorder %s26, 1
      %p49 = por %p47, %p48
      %p51 = scmp.ne.s32.totalorder %s34, %s50
      %p52 = scmp.eq.s32.totalorder %s26, 0
      %p53 = por %p51, %p52
      %s55 = sadd.s32 %s54, 1
      %p58 = scmp.eq.s32.totalorder %s20, 1
      %p59 = scmp.ne.s32.totalorder %s54, %s56
      %p60 = scmp.eq.s32.totalorder %s20, 0
      %p61 = por %p59, %p60
      %p62 = scmp.ne.s32.totalorder %s54, %s56
      %p63 = scmp.eq.s32.totalorder %s25, 1
      %p64 = por %p62, %p63
      %p65 = scmp.ne.s32.totalorder %s56, %s57
      %p66 = scmp.eq.s32.totalorder %s25, 0
      %p67 = por %p65, %p66
      %p68 = scmp.ne.s32.totalorder %s56, %s57
      %p69 = scmp.eq.s32.totalorder %s26, 1
      %p70 = por %p68, %p69
      %p72 = scmp.ne.s32.totalorder %s57, %s71
      %p73 = scmp.eq.s32.totalorder %s26, 0
      %p74 = por %p72, %p73
      %s76 = sadd.s32 %s75, 1
      %p79 = scmp.eq.s32.totalorder %s20, 1
      %p80 = scmp.ne.s32.totalorder %s75, %s77
      %p81 = scmp.eq.s32.totalorder %s20, 0
      %p82 = por %p80, %p81
      %p83 = scmp.ne.s32.totalorder %s75, %s77
      %p84 = scmp.eq.s32.totalorder %s25, 1
      %p85 = por %p83, %p84
      %p86 = scmp.ne.s32.totalorder %s77, %s78
      %p87 = scmp.eq.s32.totalorder %s25, 0
      %p88 = por %p86, %p87
      %p89 = scmp.ne.s32.totalorder %s77, %s78
      %p90 = scmp.eq.s32.totalorder %s26, 1
      %p91 = por %p89, %p90
      %p93 = scmp.ne.s32.totalorder %s78, %s92
      %p94 = scmp.eq.s32.totalorder %s26, 0
      %p95 = por %p93, %p94
      %s97 = sadd.s32 %s96, 1
      %p100 = scmp.eq.s32.totalorder %s20, 1
      %p101 = scmp.ne.s32.totalorder %s96, %s98
      %p102 = scmp.eq.s32.totalorder %s20, 0
      %p103 = por %p101, %p102
      %p104 = scmp.ne.s32.totalorder %s96, %s98
      %p105 = scmp.eq.s32.totalorder %s25, 1
      %p106 = por %p104, %p105
      %p107 = scmp.ne.s32.totalorder %s98, %s99
      %p108 = scmp.eq.s32.totalorder %s25, 0
      %p109 = por %p107, %p108
      %p110 = scmp.ne.s32.totalorder %s98, %s99
      %p111 = scmp.eq.s32.totalorder %s26, 1
      %p112 = por %p110, %p111
      %p114 = scmp.ne.s32.totalorder %s99, %s113
      %p115 = scmp.eq.s32.totalorder %s26, 0
      %p116 = por %p114, %p115
      %s118 = sadd.s32 %s117, 1
      %p121 = scmp.eq.s32.totalorder %s20, 1
      %p122 = scmp.ne.s32.totalorder %s117, %s119
      %p123 = scmp.eq.s32.totalorder %s20, 0
      %p124 = por %p122, %p123
      %p125 = scmp.ne.s32.totalorder %s117, %s119
      %p126 = scmp.eq.s32.totalorder %s25, 1
      %p127 = por %p125, %p126
      %p128 = scmp.ne.s32.totalorder %s119, %s120
      %p129 = scmp.eq.s32.totalorder %s25, 0
      %p130 = por %p128, %p129
      %p131 = scmp.ne.s32.totalorder %s119, %s120
      %p132 = scmp.eq.s32.totalorder %s26, 1
      %p133 = por %p131, %p132
      %p135 = scmp.ne.s32.totalorder %s120, %s134
      %p136 = scmp.eq.s32.totalorder %s26, 0
      %p137 = por %p135, %p136
      %s139 = sadd.s32 %s138, 1
      %p142 = scmp.eq.s32.totalorder %s20, 1
      %p143 = scmp.ne.s32.totalorder %s138, %s140
      %p144 = scmp.eq.s32.totalorder %s20, 0
      %p145 = por %p143, %p144
      %p146 = scmp.ne.s32.totalorder %s138, %s140
      %p147 = scmp.eq.s32.totalorder %s25, 1
      %p148 = por %p146, %p147
      %p149 = scmp.ne.s32.totalorder %s140, %s141
      %p150 = scmp.eq.s32.totalorder %s25, 0
      %p151 = por %p149, %p150
      %p152 = scmp.ne.s32.totalorder %s140, %s141
      %p153 = scmp.eq.s32.totalorder %s26, 1
      %p154 = por %p152, %p153
      %p156 = scmp.ne.s32.totalorder %s141, %s155
      %p157 = scmp.eq.s32.totalorder %s26, 0
      %p158 = por %p156, %p157
      %s160 = sadd.s32 %s159, 1
      %p163 = scmp.eq.s32.totalorder %s20, 1
      %p164 = scmp.ne.s32.totalorder %s159, %s161
      %p165 = scmp.eq.s32.totalorder %s20, 0
      %p166 = por %p164, %p165
      %p167 = scmp.ne.s32.totalorder %s159, %s161
      %p168 = scmp.eq.s32.totalorder %s25, 1
      %p169 = por %p167, %p168
      %p170 = scmp.ne.s32.totalorder %s161, %s162
      %p171 = scmp.eq.s32.totalorder %s25, 0
      %p172 = por %p170, %p171
      %p173 = scmp.ne.s32.totalorder %s161, %s162
      %p174 = scmp.eq.s32.totalorder %s26, 1
      %p175 = por %p173, %p174
      %p177 = scmp.ne.s32.totalorder %s162, %s176
      %p178 = scmp.eq.s32.totalorder %s26, 0
      %p179 = por %p177, %p178
      %s180 = ssub.s32 %s20, %s27
      %p181 = scmp.eq.s32.totalorder %s180, 0
      %s183 = sadd.s32 %s182, 1
      %s184 = scalar_select %p181, %s182, %s183
      %p187 = pneg %p181
      %p188 = scmp.eq.s32.totalorder %s20, 1
      %p189 = por %p187, %p188
      %p190 = scmp.ne.s32.totalorder %s182, %s185
      %p191 = scmp.eq.s32.totalorder %s20, 0
      %p192 = por %p190, %p191
      %p193 = scmp.ne.s32.totalorder %s182, %s185
      %p194 = scmp.eq.s32.totalorder %s25, 1
      %p195 = por %p193, %p194
      %p196 = scmp.ne.s32.totalorder %s185, %s186
      %p197 = scmp.eq.s32.totalorder %s25, 0
      %p198 = por %p196, %p197
      %p199 = scmp.ne.s32.totalorder %s185, %s186
      %p200 = scmp.eq.s32.totalorder %s26, 1
      %p201 = por %p199, %p200
      %p203 = scmp.ne.s32.totalorder %s186, %s202
      %p204 = scmp.eq.s32.totalorder %s26, 0
      %p205 = por %p203, %p204
      %p206 = scmp.le.s32.totalorder 1, %s20
      %p207 = scmp.lt.s32.totalorder %s20, 3
      %p208 = pnand %p206, %p207
      %p209 = pneg %p208
      // Predicated region
      $region9: #{tpu_custom_call.1} parent=5 // pred_check
        _
      $region10: #{tpu_custom_call.1} parent=5 // pred_check_branch
        %211 = sbr.rel (%p208) target = $region12
      $region11: #{tpu_custom_call.1} parent=5 // pred_region
        %s212 = ssub.s32 %s20, 1
        // Predicated region
        $region13: #{tpu_custom_call.1} parent=11 // pred_check
          %p213 = pneg %p67
        $region14: #{tpu_custom_call.1} parent=11 // pred_check_branch
          %215 = sbr.rel (%p213) target = $region16
        $region15: #{tpu_custom_call.1} parent=11 // pred_region
          _
        $region16: #{tpu_custom_call.1} parent=11 // pred_fallthru
          _
        // Predicated region
        $region17: #{tpu_custom_call.1} parent=11 // pred_check
          %p216 = pneg %p88
        $region18: #{tpu_custom_call.1} parent=11 // pred_check_branch
          %218 = sbr.rel (%p216) target = $region20
        $region19: #{tpu_custom_call.1} parent=11 // pred_region
          _
        $region20: #{tpu_custom_call.1} parent=11 // pred_fallthru
          _
        // Predicated region
        $region21: #{tpu_custom_call.1} parent=11 // pred_check
          %p219 = pneg %p109
        $region22: #{tpu_custom_call.1} parent=11 // pred_check_branch
          %221 = sbr.rel (%p219) target = $region24
        $region23: #{tpu_custom_call.1} parent=11 // pred_region
          %s223 = ssub.s32 9216, 9216
          %224 = vsyncadd [#allocation7], %s223
          %s225 = sshll.u32 [#allocation6], 4
          %s226 = int_to_ptr.vmem [resolvable:$true] %s225
          %231 = dma.hbm_to_vmem [thread:$0]  %s3, 9216, %s226, [#allocation7], 64, 64, 4
        $region24: #{tpu_custom_call.1} parent=11 // pred_fallthru
          _
        // Predicated region
        $region25: #{tpu_custom_call.1} parent=11 // pred_check
          %p232 = pneg %p130
        $region26: #{tpu_custom_call.1} parent=11 // pred_check_branch
          %234 = sbr.rel (%p232) target = $region28
        $region27: #{tpu_custom_call.1} parent=11 // pred_region
          _
        $region28: #{tpu_custom_call.1} parent=11 // pred_fallthru
          _
        // Predicated region
        $region29: #{tpu_custom_call.1} parent=11 // pred_check
          %p235 = pneg %p151
        $region30: #{tpu_custom_call.1} parent=11 // pred_check_branch
          %237 = sbr.rel (%p235) target = $region32
        $region31: #{tpu_custom_call.1} parent=11 // pred_region
          _
        $region32: #{tpu_custom_call.1} parent=11 // pred_fallthru
          _
        // Predicated region
        $region33: #{tpu_custom_call.1} parent=11 // pred_check
          %p238 = pneg %p172
        $region34: #{tpu_custom_call.1} parent=11 // pred_check_branch
          %240 = sbr.rel (%p238) target = $region36
        $region35: #{tpu_custom_call.1} parent=11 // pred_region
          %s242 = ssub.s32 9216, 9216
          %243 = vsyncadd [#allocation7], %s242
          %s244 = sshll.u32 [#allocation8], 4
          %s245 = int_to_ptr.vmem [resolvable:$true] %s244
          %250 = dma.hbm_to_vmem [thread:$0]  %s6, 9216, %s245, [#allocation7], 64, 64, 4
        $region36: #{tpu_custom_call.1} parent=11 // pred_fallthru
          _
      $region12: #{tpu_custom_call.1} parent=5 // pred_fallthru
        _
      %p251 = scmp.lt.s32.totalorder %s20, 2
      // Predicated region
      $region37: #{tpu_custom_call.1} parent=5 // pred_check
        %p252 = pneg %p251
      $region38: #{tpu_custom_call.1} parent=5 // pred_check_branch
        %254 = sbr.rel (%p252) target = $region40
      $region39: #{tpu_custom_call.1} parent=5 // pred_region
        // Predicated region
        $region41: #{tpu_custom_call.1} parent=39 // pred_check
          %p255 = pneg %p40
        $region42: #{tpu_custom_call.1} parent=39 // pred_check_branch
          %257 = sbr.rel (%p255) target = $region44
        $region43: #{tpu_custom_call.1} parent=39 // pred_region
          %s258 = sand.u32 %s30, 1
          %s259 = scalar_lea.sflag [#allocation4], %s258
          %s260 = sand.u32 %s30, 1
          %s261 = smul.addr %s260, 256
          %s262 = scalar_lea.vmem [#allocation3], %s261
          %s264 = ssub.s32 4096, 4096
          %265 = vsyncadd %s259, %s264
          %s266 = smul.addr %s20, 32
          %s267 = smul.addr %s266, 128
          %s268 = scalar_lea.hbm %s0, %s267
          %s269 = sshll.u32 %s262, 4
          %s270 = int_to_ptr.vmem [resolvable:$true] %s269
          %275 = dma.hbm_to_vmem [thread:$0]  %s268, 4096, %s270, %s259, 128, 128, 8
        $region44: #{tpu_custom_call.1} parent=39 // pred_fallthru
          _
      $region40: #{tpu_custom_call.1} parent=5 // pred_fallthru
        _
      %p276 = scmp.le.s32.totalorder 1, %s20
      %p277 = scmp.lt.s32.totalorder %s20, 3
      %p278 = pnand %p276, %p277
      %p279 = pneg %p278
      // Predicated region
      $region45: #{tpu_custom_call.1} parent=5 // pred_check
        _
      $region46: #{tpu_custom_call.1} parent=5 // pred_check_branch
        %281 = sbr.rel (%p278) target = $region48
      $region47: #{tpu_custom_call.1} parent=5 // pred_region
        %s282 = ssub.s32 %s20, 1
        %s283 = sand.u32 %s33, 1
        %s284 = scalar_lea.sflag [#allocation4], %s283
        %s285 = sand.u32 %s33, 1
        %s286 = smul.addr %s285, 256
        %s287 = scalar_lea.vmem [#allocation3], %s286
        // Predicated region
        $region49: #{tpu_custom_call.1} parent=47 // pred_check
          %p288 = pneg %p46
        $region50: #{tpu_custom_call.1} parent=47 // pred_check_branch
          %290 = sbr.rel (%p288) target = $region52
        $region51: #{tpu_custom_call.1} parent=47 // pred_region
          %291 = dma.done %s284, 4096
        $region52: #{tpu_custom_call.1} parent=47 // pred_fallthru
          _
        // Predicated region
        $region53: #{tpu_custom_call.1} parent=47 // pred_check
          %p292 = pneg %p109
        $region54: #{tpu_custom_call.1} parent=47 // pred_check_branch
          %294 = sbr.rel (%p292) target = $region56
        $region55: #{tpu_custom_call.1} parent=47 // pred_region
          %295 = dma.done [#allocation7], 9216
        $region56: #{tpu_custom_call.1} parent=47 // pred_fallthru
          _
        // Predicated region
        $region57: #{tpu_custom_call.1} parent=47 // pred_check
          %p296 = pneg %p172
        $region58: #{tpu_custom_call.1} parent=47 // pred_check_branch
          %298 = sbr.rel (%p296) target = $region60
        $region59: #{tpu_custom_call.1} parent=47 // pred_region
          %299 = dma.done [#allocation7], 9216
        $region60: #{tpu_custom_call.1} parent=47 // pred_fallthru
          _
        %s300 = sand.u32 %s33, 1
        %s301 = scalar_lea.sflag [#allocation4], %s300
        %s302 = sand.u32 %s33, 1
        %s303 = smul.addr %s302, 256
        %s304 = scalar_lea.vmem [#allocation3], %s303
        %p305 = pneg %p46
        %p306 = pneg %p43
        %p307 = pneg %p67
        %p308 = pneg %p64
        %p309 = pneg %p88
        %p310 = pneg %p85
        %p311 = pneg %p109
        %p312 = pneg %p106
        %p313 = pneg %p130
        %p314 = pneg %p127
        %p315 = pneg %p151
        %p316 = pneg %p148
        %p317 = pneg %p172
        %p318 = pneg %p169
        %p319 = pneg %p198
        %p320 = pneg %p195
        %s321 = sand.u32 %s185, 1
        %s322 = scalar_lea.sflag [#allocation5], %s321
        %s323 = sand.u32 %s185, 1
        %s324 = smul.addr %s323, 256
        %s325 = scalar_lea.vmem [#allocation9], %s324
        %327 = vst [vmem:[#allocation2] sm:$0xff] 0.0
        %328 = vst [vmem:[#allocation2 + $0x8] sm:$0xff] 0.0
        %329 = vst [vmem:[#allocation2 + $0x10] sm:$0xff] 0.0
        %330 = vst [vmem:[#allocation2 + $0x118] sm:$0xff] 0.0
        %331 = vst [vmem:[#allocation2 + $0x120] sm:$0xff] 0.0
        %332 = vst [vmem:[#allocation2 + $0x128] sm:$0xff] 0.0
        %v333 = vlaneseq
        %v334 = vshrl.u32 %v333, 7
        %v335 = vadd.s32 %v334, 8
        %v336 = vadd.s32 %v334, 16
        %v337 = vadd.s32 %v334, 24
        %v338 = vadd.s32 %v334, 32
        %v339 = vadd.s32 %v334, 40
        %v340 = vadd.s32 %v334, 48
        %v341 = vadd.s32 %v334, 56
        %v342 = vadd.s32 %v334, 64
        %v343 = vadd.s32 %v334, 72
        %v344 = vadd.s32 %v334, 80
        %v345 = vadd.s32 %v334, 88
        %v346 = vadd.s32 %v334, 96
        %v347 = vadd.s32 %v334, 104
        %v348 = vadd.s32 %v334, 112
        %v349 = vadd.s32 %v334, 120
        %v350 = vadd.s32 %v334, 128
        %v351 = vadd.s32 %v334, 136
        %v352 = vadd.s32 %v334, 144
        %v353 = vadd.s32 %v334, 152
        %v354 = vadd.s32 %v334, 160
        %v355 = vadd.s32 %v334, 168
        %v356 = vadd.s32 %v334, 176
        %v357 = vadd.s32 %v334, 184
        %v358 = vadd.s32 %v334, 192
        %v359 = vadd.s32 %v334, 200
        %v360 = vadd.s32 %v334, 208
        %v361 = vadd.s32 %v334, 216
        %v362 = vadd.s32 %v334, 224
        %v363 = vadd.s32 %v334, 232
        %v364 = vadd.s32 %v334, 240
        %v365 = vadd.s32 %v334, 248
        %vm366 = vcmp.lt.s32.totalorder %v334, 0
        %v367 = vsub.s32 0, %v334
        %v368 = vsel %vm366, %v367, %v334
        %v369 = vshrl.u32 %v368, 4
        %v370 = vand.u32 %v368, 15
        %v371 = vsub.s32 0, %v370
        %v372 = vsel %vm366, %v371, %v370
        %vm373 = vcmp.lt.s32.totalorder %v335, 0
        %v374 = vsub.s32 0, %v335
        %v375 = vsel %vm373, %v374, %v335
        %v376 = vshrl.u32 %v375, 4
        %v377 = vand.u32 %v375, 15
        %v378 = vsub.s32 0, %v377
        %v379 = vsel %vm373, %v378, %v377
        %vm380 = vcmp.lt.s32.totalorder %v336, 0
        %v381 = vsub.s32 0, %v336
        %v382 = vsel %vm380, %v381, %v336
        %v383 = vshrl.u32 %v382, 4
        %v384 = vand.u32 %v382, 15
        %v385 = vsub.s32 0, %v384
        %v386 = vsel %vm380, %v385, %v384
        %vm387 = vcmp.lt.s32.totalorder %v337, 0
        %v388 = vsub.s32 0, %v337
        %v389 = vsel %vm387, %v388, %v337
        %v390 = vshrl.u32 %v389, 4
        %v391 = vand.u32 %v389, 15
        %v392 = vsub.s32 0, %v391
        %v393 = vsel %vm387, %v392, %v391
        %vm394 = vcmp.lt.s32.totalorder %v338, 0
        %v395 = vsub.s32 0, %v338
        %v396 = vsel %vm394, %v395, %v338
        %v397 = vshrl.u32 %v396, 4
        %v398 = vand.u32 %v396, 15
        %v399 = vsub.s32 0, %v398
        %v400 = vsel %vm394, %v399, %v398
        %vm401 = vcmp.lt.s32.totalorder %v339, 0
        %v402 = vsub.s32 0, %v339
        %v403 = vsel %vm401, %v402, %v339
        %v404 = vshrl.u32 %v403, 4
        %v405 = vand.u32 %v403, 15
        %v406 = vsub.s32 0, %v405
        %v407 = vsel %vm401, %v406, %v405
        %vm408 = vcmp.lt.s32.totalorder %v340, 0
        %v409 = vsub.s32 0, %v340
        %v410 = vsel %vm408, %v409, %v340
        %v411 = vshrl.u32 %v410, 4
        %v412 = vand.u32 %v410, 15
        %v413 = vsub.s32 0, %v412
        %v414 = vsel %vm408, %v413, %v412
        %vm415 = vcmp.lt.s32.totalorder %v341, 0
        %v416 = vsub.s32 0, %v341
        %v417 = vsel %vm415, %v416, %v341
        %v418 = vshrl.u32 %v417, 4
        %v419 = vand.u32 %v417, 15
        %v420 = vsub.s32 0, %v419
        %v421 = vsel %vm415, %v420, %v419
        %vm422 = vcmp.lt.s32.totalorder %v342, 0
        %v423 = vsub.s32 0, %v342
        %v424 = vsel %vm422, %v423, %v342
        %v425 = vshrl.u32 %v424, 4
        %v426 = vand.u32 %v424, 15
        %v427 = vsub.s32 0, %v426
        %v428 = vsel %vm422, %v427, %v426
        %vm429 = vcmp.lt.s32.totalorder %v343, 0
        %v430 = vsub.s32 0, %v343
        %v431 = vsel %vm429, %v430, %v343
        %v432 = vshrl.u32 %v431, 4
        %v433 = vand.u32 %v431, 15
        %v434 = vsub.s32 0, %v433
        %v435 = vsel %vm429, %v434, %v433
        %vm436 = vcmp.lt.s32.totalorder %v344, 0
        %v437 = vsub.s32 0, %v344
        %v438 = vsel %vm436, %v437, %v344
        %v439 = vshrl.u32 %v438, 4
        %v440 = vand.u32 %v438, 15
        %v441 = vsub.s32 0, %v440
        %v442 = vsel %vm436, %v441, %v440
        %vm443 = vcmp.lt.s32.totalorder %v345, 0
        %v444 = vsub.s32 0, %v345
        %v445 = vsel %vm443, %v444, %v345
        %v446 = vshrl.u32 %v445, 4
        %v447 = vand.u32 %v445, 15
        %v448 = vsub.s32 0, %v447
        %v449 = vsel %vm443, %v448, %v447
        %vm450 = vcmp.lt.s32.totalorder %v346, 0
        %v451 = vsub.s32 0, %v346
        %v452 = vsel %vm450, %v451, %v346
        %v453 = vshrl.u32 %v452, 4
        %v454 = vand.u32 %v452, 15
        %v455 = vsub.s32 0, %v454
        %v456 = vsel %vm450, %v455, %v454
        %vm457 = vcmp.lt.s32.totalorder %v347, 0
        %v458 = vsub.s32 0, %v347
        %v459 = vsel %vm457, %v458, %v347
        %v460 = vshrl.u32 %v459, 4
        %v461 = vand.u32 %v459, 15
        %v462 = vsub.s32 0, %v461
        %v463 = vsel %vm457, %v462, %v461
        %vm464 = vcmp.lt.s32.totalorder %v348, 0
        %v465 = vsub.s32 0, %v348
        %v466 = vsel %vm464, %v465, %v348
        %v467 = vshrl.u32 %v466, 4
        %v468 = vand.u32 %v466, 15
        %v469 = vsub.s32 0, %v468
        %v470 = vsel %vm464, %v469, %v468
        %vm471 = vcmp.lt.s32.totalorder %v349, 0
        %v472 = vsub.s32 0, %v349
        %v473 = vsel %vm471, %v472, %v349
        %v474 = vshrl.u32 %v473, 4
        %v475 = vand.u32 %v473, 15
        %v476 = vsub.s32 0, %v475
        %v477 = vsel %vm471, %v476, %v475
        %vm478 = vcmp.lt.s32.totalorder %v350, 0
        %v479 = vsub.s32 0, %v350
        %v480 = vsel %vm478, %v479, %v350
        %v481 = vshrl.u32 %v480, 4
        %v482 = vand.u32 %v480, 15
        %v483 = vsub.s32 0, %v482
        %v484 = vsel %vm478, %v483, %v482
        %vm485 = vcmp.lt.s32.totalorder %v351, 0
        %v486 = vsub.s32 0, %v351
        %v487 = vsel %vm485, %v486, %v351
        %v488 = vshrl.u32 %v487, 4
        %v489 = vand.u32 %v487, 15
        %v490 = vsub.s32 0, %v489
        %v491 = vsel %vm485, %v490, %v489
        %vm492 = vcmp.lt.s32.totalorder %v352, 0
        %v493 = vsub.s32 0, %v352
        %v494 = vsel %vm492, %v493, %v352
        %v495 = vshrl.u32 %v494, 4
        %v496 = vand.u32 %v494, 15
        %v497 = vsub.s32 0, %v496
        %v498 = vsel %vm492, %v497, %v496
        %vm499 = vcmp.lt.s32.totalorder %v353, 0
        %v500 = vsub.s32 0, %v353
        %v501 = vsel %vm499, %v500, %v353
        %v502 = vshrl.u32 %v501, 4
        %v503 = vand.u32 %v501, 15
        %v504 = vsub.s32 0, %v503
        %v505 = vsel %vm499, %v504, %v503
        %vm506 = vcmp.lt.s32.totalorder %v354, 0
        %v507 = vsub.s32 0, %v354
        %v508 = vsel %vm506, %v507, %v354
        %v509 = vshrl.u32 %v508, 4
        %v510 = vand.u32 %v508, 15
        %v511 = vsub.s32 0, %v510
        %v512 = vsel %vm506, %v511, %v510
        %vm513 = vcmp.lt.s32.totalorder %v355, 0
        %v514 = vsub.s32 0, %v355
        %v515 = vsel %vm513, %v514, %v355
        %v516 = vshrl.u32 %v515, 4
        %v517 = vand.u32 %v515, 15
        %v518 = vsub.s32 0, %v517
        %v519 = vsel %vm513, %v518, %v517
        %vm520 = vcmp.lt.s32.totalorder %v356, 0
        %v521 = vsub.s32 0, %v356
        %v522 = vsel %vm520, %v521, %v356
        %v523 = vshrl.u32 %v522, 4
        %v524 = vand.u32 %v522, 15
        %v525 = vsub.s32 0, %v524
        %v526 = vsel %vm520, %v525, %v524
        %vm527 = vcmp.lt.s32.totalorder %v357, 0
        %v528 = vsub.s32 0, %v357
        %v529 = vsel %vm527, %v528, %v357
        %v530 = vshrl.u32 %v529, 4
        %v531 = vand.u32 %v529, 15
        %v532 = vsub.s32 0, %v531
        %v533 = vsel %vm527, %v532, %v531
        %vm534 = vcmp.lt.s32.totalorder %v358, 0
        %v535 = vsub.s32 0, %v358
        %v536 = vsel %vm534, %v535, %v358
        %v537 = vshrl.u32 %v536, 4
        %v538 = vand.u32 %v536, 15
        %v539 = vsub.s32 0, %v538
        %v540 = vsel %vm534, %v539, %v538
        %vm541 = vcmp.lt.s32.totalorder %v359, 0
        %v542 = vsub.s32 0, %v359
        %v543 = vsel %vm541, %v542, %v359
        %v544 = vshrl.u32 %v543, 4
        %v545 = vand.u32 %v543, 15
        %v546 = vsub.s32 0, %v545
        %v547 = vsel %vm541, %v546, %v545
        %vm548 = vcmp.lt.s32.totalorder %v360, 0
        %v549 = vsub.s32 0, %v360
        %v550 = vsel %vm548, %v549, %v360
        %v551 = vshrl.u32 %v550, 4
        %v552 = vand.u32 %v550, 15
        %v553 = vsub.s32 0, %v552
        %v554 = vsel %vm548, %v553, %v552
        %vm555 = vcmp.lt.s32.totalorder %v361, 0
        %v556 = vsub.s32 0, %v361
        %v557 = vsel %vm555, %v556, %v361
        %v558 = vshrl.u32 %v557, 4
        %v559 = vand.u32 %v557, 15
        %v560 = vsub.s32 0, %v559
        %v561 = vsel %vm555, %v560, %v559
        %vm562 = vcmp.lt.s32.totalorder %v362, 0
        %v563 = vsub.s32 0, %v362
        %v564 = vsel %vm562, %v563, %v362
        %v565 = vshrl.u32 %v564, 4
        %v566 = vand.u32 %v564, 15
        %v567 = vsub.s32 0, %v566
        %v568 = vsel %vm562, %v567, %v566
        %vm569 = vcmp.lt.s32.totalorder %v363, 0
        %v570 = vsub.s32 0, %v363
        %v571 = vsel %vm569, %v570, %v363
        %v572 = vshrl.u32 %v571, 4
        %v573 = vand.u32 %v571, 15
        %v574 = vsub.s32 0, %v573
        %v575 = vsel %vm569, %v574, %v573
        %vm576 = vcmp.lt.s32.totalorder %v364, 0
        %v577 = vsub.s32 0, %v364
        %v578 = vsel %vm576, %v577, %v364
        %v579 = vshrl.u32 %v578, 4
        %v580 = vand.u32 %v578, 15
        %v581 = vsub.s32 0, %v580
        %v582 = vsel %vm576, %v581, %v580
        %vm583 = vcmp.lt.s32.totalorder %v365, 0
        %v584 = vsub.s32 0, %v365
        %v585 = vsel %vm583, %v584, %v365
        %v586 = vshrl.u32 %v585, 4
        %v587 = vand.u32 %v585, 15
        %v588 = vsub.s32 0, %v587
        %v589 = vsel %vm583, %v588, %v587
        %vm590 = vcmp.ne.s32.totalorder %v372, 0
        %vm591 = vcmp.ne.s32.totalorder %v379, 0
        %vm592 = vcmp.ne.s32.totalorder %v386, 0
        %vm593 = vcmp.ne.s32.totalorder %v393, 0
        %vm594 = vcmp.ne.s32.totalorder %v400, 0
        %vm595 = vcmp.ne.s32.totalorder %v407, 0
        %vm596 = vcmp.ne.s32.totalorder %v414, 0
        %vm597 = vcmp.ne.s32.totalorder %v421, 0
        %vm598 = vcmp.ne.s32.totalorder %v428, 0
        %vm599 = vcmp.ne.s32.totalorder %v435, 0
        %vm600 = vcmp.ne.s32.totalorder %v442, 0
        %vm601 = vcmp.ne.s32.totalorder %v449, 0
        %vm602 = vcmp.ne.s32.totalorder %v456, 0
        %vm603 = vcmp.ne.s32.totalorder %v463, 0
        %vm604 = vcmp.ne.s32.totalorder %v470, 0
        %vm605 = vcmp.ne.s32.totalorder %v477, 0
        %vm606 = vcmp.ne.s32.totalorder %v484, 0
        %vm607 = vcmp.ne.s32.totalorder %v491, 0
        %vm608 = vcmp.ne.s32.totalorder %v498, 0
        %vm609 = vcmp.ne.s32.totalorder %v505, 0
        %vm610 = vcmp.ne.s32.totalorder %v512, 0
        %vm611 = vcmp.ne.s32.totalorder %v519, 0
        %vm612 = vcmp.ne.s32.totalorder %v526, 0
        %vm613 = vcmp.ne.s32.totalorder %v533, 0
        %vm614 = vcmp.ne.s32.totalorder %v540, 0
        %vm615 = vcmp.ne.s32.totalorder %v547, 0
        %vm616 = vcmp.ne.s32.totalorder %v554, 0
        %vm617 = vcmp.ne.s32.totalorder %v561, 0
        %vm618 = vcmp.ne.s32.totalorder %v568, 0
        %vm619 = vcmp.ne.s32.totalorder %v575, 0
        %vm620 = vcmp.ne.s32.totalorder %v582, 0
        %vm621 = vcmp.ne.s32.totalorder %v589, 0
        %vm622 = vcmp.lt.s32.totalorder %v372, 0
        %vm623 = vcmp.lt.s32.totalorder %v379, 0
        %vm624 = vcmp.lt.s32.totalorder %v386, 0
        %vm625 = vcmp.lt.s32.totalorder %v393, 0
        %vm626 = vcmp.lt.s32.totalorder %v400, 0
        %vm627 = vcmp.lt.s32.totalorder %v407, 0
        %vm628 = vcmp.lt.s32.totalorder %v414, 0
        %vm629 = vcmp.lt.s32.totalorder %v421, 0
        %vm630 = vcmp.lt.s32.totalorder %v428, 0
        %vm631 = vcmp.lt.s32.totalorder %v435, 0
        %vm632 = vcmp.lt.s32.totalorder %v442, 0
        %vm633 = vcmp.lt.s32.totalorder %v449, 0
        %vm634 = vcmp.lt.s32.totalorder %v456, 0
        %vm635 = vcmp.lt.s32.totalorder %v463, 0
        %vm636 = vcmp.lt.s32.totalorder %v470, 0
        %vm637 = vcmp.lt.s32.totalorder %v477, 0
        %vm638 = vcmp.lt.s32.totalorder %v484, 0
        %vm639 = vcmp.lt.s32.totalorder %v491, 0
        %vm640 = vcmp.lt.s32.totalorder %v498, 0
        %vm641 = vcmp.lt.s32.totalorder %v505, 0
        %vm642 = vcmp.lt.s32.totalorder %v512, 0
        %vm643 = vcmp.lt.s32.totalorder %v519, 0
        %vm644 = vcmp.lt.s32.totalorder %v526, 0
        %vm645 = vcmp.lt.s32.totalorder %v533, 0
        %vm646 = vcmp.lt.s32.totalorder %v540, 0
        %vm647 = vcmp.lt.s32.totalorder %v547, 0
        %vm648 = vcmp.lt.s32.totalorder %v554, 0
        %vm649 = vcmp.lt.s32.totalorder %v561, 0
        %vm650 = vcmp.lt.s32.totalorder %v568, 0
        %vm651 = vcmp.lt.s32.totalorder %v575, 0
        %vm652 = vcmp.lt.s32.totalorder %v582, 0
        %vm653 = vcmp.lt.s32.totalorder %v589, 0
        %vm654 = vmand %vm622, %vm590
        %vm655 = vmand %vm623, %vm591
        %vm656 = vmand %vm624, %vm592
        %vm657 = vmand %vm625, %vm593
        %vm658 = vmand %vm626, %vm594
        %vm659 = vmand %vm627, %vm595
        %vm660 = vmand %vm628, %vm596
        %vm661 = vmand %vm629, %vm597
        %vm662 = vmand %vm630, %vm598
        %vm663 = vmand %vm631, %vm599
        %vm664 = vmand %vm632, %vm600
        %vm665 = vmand %vm633, %vm601
        %vm666 = vmand %vm634, %vm602
        %vm667 = vmand %vm635, %vm603
        %vm668 = vmand %vm636, %vm604
        %vm669 = vmand %vm637, %vm605
        %vm670 = vmand %vm638, %vm606
        %vm671 = vmand %vm639, %vm607
        %vm672 = vmand %vm640, %vm608
        %vm673 = vmand %vm641, %vm609
        %vm674 = vmand %vm642, %vm610
        %vm675 = vmand %vm643, %vm611
        %vm676 = vmand %vm644, %vm612
        %vm677 = vmand %vm645, %vm613
        %vm678 = vmand %vm646, %vm614
        %vm679 = vmand %vm647, %vm615
        %vm680 = vmand %vm648, %vm616
        %vm681 = vmand %vm649, %vm617
        %vm682 = vmand %vm650, %vm618
        %vm683 = vmand %vm651, %vm619
        %vm684 = vmand %vm652, %vm620
        %vm685 = vmand %vm653, %vm621
        %v686 = vadd.s32 %v372, 16
        %v687 = vadd.s32 %v379, 16
        %v688 = vadd.s32 %v386, 16
        %v689 = vadd.s32 %v393, 16
        %v690 = vadd.s32 %v400, 16
        %v691 = vadd.s32 %v407, 16
        %v692 = vadd.s32 %v414, 16
        %v693 = vadd.s32 %v421, 16
        %v694 = vadd.s32 %v428, 16
        %v695 = vadd.s32 %v435, 16
        %v696 = vadd.s32 %v442, 16
        %v697 = vadd.s32 %v449, 16
        %v698 = vadd.s32 %v456, 16
        %v699 = vadd.s32 %v463, 16
        %v700 = vadd.s32 %v470, 16
        %v701 = vadd.s32 %v477, 16
        %v702 = vadd.s32 %v484, 16
        %v703 = vadd.s32 %v491, 16
        %v704 = vadd.s32 %v498, 16
        %v705 = vadd.s32 %v505, 16
        %v706 = vadd.s32 %v512, 16
        %v707 = vadd.s32 %v519, 16
        %v708 = vadd.s32 %v526, 16
        %v709 = vadd.s32 %v533, 16
        %v710 = vadd.s32 %v540, 16
        %v711 = vadd.s32 %v547, 16
        %v712 = vadd.s32 %v554, 16
        %v713 = vadd.s32 %v561, 16
        %v714 = vadd.s32 %v568, 16
        %v715 = vadd.s32 %v575, 16
        %v716 = vadd.s32 %v582, 16
        %v717 = vadd.s32 %v589, 16
        %v718 = vsel %vm654, %v686, %v372
        %v719 = vsel %vm655, %v687, %v379
        %v720 = vsel %vm656, %v688, %v386
        %v721 = vsel %vm657, %v689, %v393
        %v722 = vsel %vm658, %v690, %v400
        %v723 = vsel %vm659, %v691, %v407
        %v724 = vsel %vm660, %v692, %v414
        %v725 = vsel %vm661, %v693, %v421
        %v726 = vsel %vm662, %v694, %v428
        %v727 = vsel %vm663, %v695, %v435
        %v728 = vsel %vm664, %v696, %v442
        %v729 = vsel %vm665, %v697, %v449
        %v730 = vsel %vm666, %v698, %v456
        %v731 = vsel %vm667, %v699, %v463
        %v732 = vsel %vm668, %v700, %v470
        %v733 = vsel %vm669, %v701, %v477
        %v734 = vsel %vm670, %v702, %v484
        %v735 = vsel %vm671, %v703, %v491
        %v736 = vsel %vm672, %v704, %v498
        %v737 = vsel %vm673, %v705, %v505
        %v738 = vsel %vm674, %v706, %v512
        %v739 = vsel %vm675, %v707, %v519
        %v740 = vsel %vm676, %v708, %v526
        %v741 = vsel %vm677, %v709, %v533
        %v742 = vsel %vm678, %v710, %v540
        %v743 = vsel %vm679, %v711, %v547
        %v744 = vsel %vm680, %v712, %v554
        %v745 = vsel %vm681, %v713, %v561
        %v746 = vsel %vm682, %v714, %v568
        %v747 = vsel %vm683, %v715, %v575
        %v748 = vsel %vm684, %v716, %v582
        %v749 = vsel %vm685, %v717, %v589
        %vm750 = vcmp.eq.s32.totalorder %v718, 0
        %vm751 = vcmp.eq.s32.totalorder %v719, 0
        %vm752 = vcmp.eq.s32.totalorder %v720, 0
        %vm753 = vcmp.eq.s32.totalorder %v721, 0
        %vm754 = vcmp.eq.s32.totalorder %v722, 0
        %vm755 = vcmp.eq.s32.totalorder %v723, 0
        %vm756 = vcmp.eq.s32.totalorder %v724, 0
        %vm757 = vcmp.eq.s32.totalorder %v725, 0
        %vm758 = vcmp.eq.s32.totalorder %v726, 0
        %vm759 = vcmp.eq.s32.totalorder %v727, 0
        %vm760 = vcmp.eq.s32.totalorder %v728, 0
        %vm761 = vcmp.eq.s32.totalorder %v729, 0
        %vm762 = vcmp.eq.s32.totalorder %v730, 0
        %vm763 = vcmp.eq.s32.totalorder %v731, 0
        %vm764 = vcmp.eq.s32.totalorder %v732, 0
        %vm765 = vcmp.eq.s32.totalorder %v733, 0
        %vm766 = vcmp.eq.s32.totalorder %v734, 0
        %vm767 = vcmp.eq.s32.totalorder %v735, 0
        %vm768 = vcmp.eq.s32.totalorder %v736, 0
        %vm769 = vcmp.eq.s32.totalorder %v737, 0
        %vm770 = vcmp.eq.s32.totalorder %v738, 0
        %vm771 = vcmp.eq.s32.totalorder %v739, 0
        %vm772 = vcmp.eq.s32.totalorder %v740, 0
        %vm773 = vcmp.eq.s32.totalorder %v741, 0
        %vm774 = vcmp.eq.s32.totalorder %v742, 0
        %vm775 = vcmp.eq.s32.totalorder %v743, 0
        %vm776 = vcmp.eq.s32.totalorder %v744, 0
        %vm777 = vcmp.eq.s32.totalorder %v745, 0
        %vm778 = vcmp.eq.s32.totalorder %v746, 0
        %vm779 = vcmp.eq.s32.totalorder %v747, 0
        %vm780 = vcmp.eq.s32.totalorder %v748, 0
        %vm781 = vcmp.eq.s32.totalorder %v749, 0
        %vm782 = vcmp.eq.s32.totalorder %v718, 15
        %vm783 = vcmp.eq.s32.totalorder %v719, 15
        %vm784 = vcmp.eq.s32.totalorder %v720, 15
        %vm785 = vcmp.eq.s32.totalorder %v721, 15
        %vm786 = vcmp.eq.s32.totalorder %v722, 15
        %vm787 = vcmp.eq.s32.totalorder %v723, 15
        %vm788 = vcmp.eq.s32.totalorder %v724, 15
        %vm789 = vcmp.eq.s32.totalorder %v725, 15
        %vm790 = vcmp.eq.s32.totalorder %v726, 15
        %vm791 = vcmp.eq.s32.totalorder %v727, 15
        %vm792 = vcmp.eq.s32.totalorder %v728, 15
        %vm793 = vcmp.eq.s32.totalorder %v729, 15
        %vm794 = vcmp.eq.s32.totalorder %v730, 15
        %vm795 = vcmp.eq.s32.totalorder %v731, 15
        %vm796 = vcmp.eq.s32.totalorder %v732, 15
        %vm797 = vcmp.eq.s32.totalorder %v733, 15
        %vm798 = vcmp.eq.s32.totalorder %v734, 15
        %vm799 = vcmp.eq.s32.totalorder %v735, 15
        %vm800 = vcmp.eq.s32.totalorder %v736, 15
        %vm801 = vcmp.eq.s32.totalorder %v737, 15
        %vm802 = vcmp.eq.s32.totalorder %v738, 15
        %vm803 = vcmp.eq.s32.totalorder %v739, 15
        %vm804 = vcmp.eq.s32.totalorder %v740, 15
        %vm805 = vcmp.eq.s32.totalorder %v741, 15
        %vm806 = vcmp.eq.s32.totalorder %v742, 15
        %vm807 = vcmp.eq.s32.totalorder %v743, 15
        %vm808 = vcmp.eq.s32.totalorder %v744, 15
        %vm809 = vcmp.eq.s32.totalorder %v745, 15
        %vm810 = vcmp.eq.s32.totalorder %v746, 15
        %vm811 = vcmp.eq.s32.totalorder %v747, 15
        %vm812 = vcmp.eq.s32.totalorder %v748, 15
        %vm813 = vcmp.eq.s32.totalorder %v749, 15
        %v814 = vld [vmem:[%s287] sm:$0xff]
        %v815 = vld [vmem:[%s287 + $0x8] sm:$0xff]
        %v816 = vld [vmem:[%s287 + $0x10] sm:$0xff]
        %v817 = vld [vmem:[%s287 + $0x18] sm:$0xff]
        %v818 = vld [vmem:[%s287 + $0x20] sm:$0xff]
        %v819 = vld [vmem:[%s287 + $0x28] sm:$0xff]
        %v820 = vld [vmem:[%s287 + $0x30] sm:$0xff]
        %v821 = vld [vmem:[%s287 + $0x38] sm:$0xff]
        %v822 = vld [vmem:[%s287 + $0x40] sm:$0xff]
        %v823 = vld [vmem:[%s287 + $0x48] sm:$0xff]
        %v824 = vld [vmem:[%s287 + $0x50] sm:$0xff]
        %v825 = vld [vmem:[%s287 + $0x58] sm:$0xff]
        %v826 = vld [vmem:[%s287 + $0x60] sm:$0xff]
        %v827 = vld [vmem:[%s287 + $0x68] sm:$0xff]
        %v828 = vld [vmem:[%s287 + $0x70] sm:$0xff]
        %v829 = vld [vmem:[%s287 + $0x78] sm:$0xff]
        %v830 = vld [vmem:[%s287 + $0x80] sm:$0xff]
        %v831 = vld [vmem:[%s287 + $0x88] sm:$0xff]
        %v832 = vld [vmem:[%s287 + $0x90] sm:$0xff]
        %v833 = vld [vmem:[%s287 + $0x98] sm:$0xff]
        %v834 = vld [vmem:[%s287 + $0xa0] sm:$0xff]
        %v835 = vld [vmem:[%s287 + $0xa8] sm:$0xff]
        %v836 = vld [vmem:[%s287 + $0xb0] sm:$0xff]
        %v837 = vld [vmem:[%s287 + $0xb8] sm:$0xff]
        %v838 = vld [vmem:[%s287 + $0xc0] sm:$0xff]
        %v839 = vld [vmem:[%s287 + $0xc8] sm:$0xff]
        %v840 = vld [vmem:[%s287 + $0xd0] sm:$0xff]
        %v841 = vld [vmem:[%s287 + $0xd8] sm:$0xff]
        %v842 = vld [vmem:[%s287 + $0xe0] sm:$0xff]
        %v843 = vld [vmem:[%s287 + $0xe8] sm:$0xff]
        %v844 = vld [vmem:[%s287 + $0xf0] sm:$0xff]
        %v845 = vld [vmem:[%s287 + $0xf8] sm:$0xff]
        %v846 = vld [vmem:[%s1] sm:$0x1]
        %v848 = vlaneseq
        %v849 = vshrl.u32 %v848, 7
        %v850 = vsub.s32 0, %v849
        %v851 = vrot.slane %v846, %v850
        %v853 = vmul.f32 %v814, %v851
        %v854 = vmul.f32 %v815, %v851
        %v855 = vmul.f32 %v816, %v851
        %v856 = vmul.f32 %v817, %v851
        %v857 = vmul.f32 %v818, %v851
        %v858 = vmul.f32 %v819, %v851
        %v859 = vmul.f32 %v820, %v851
        %v860 = vmul.f32 %v821, %v851
        %v861 = vmul.f32 %v822, %v851
        %v862 = vmul.f32 %v823, %v851
        %v863 = vmul.f32 %v824, %v851
        %v864 = vmul.f32 %v825, %v851
        %v865 = vmul.f32 %v826, %v851
        %v866 = vmul.f32 %v827, %v851
        %v867 = vmul.f32 %v828, %v851
        %v868 = vmul.f32 %v829, %v851
        %v869 = vmul.f32 %v830, %v851
        %v870 = vmul.f32 %v831, %v851
        %v871 = vmul.f32 %v832, %v851
        %v872 = vmul.f32 %v833, %v851
        %v873 = vmul.f32 %v834, %v851
        %v874 = vmul.f32 %v835, %v851
        %v875 = vmul.f32 %v836, %v851
        %v876 = vmul.f32 %v837, %v851
        %v877 = vmul.f32 %v838, %v851
        %v878 = vmul.f32 %v839, %v851
        %v879 = vmul.f32 %v840, %v851
        %v880 = vmul.f32 %v841, %v851
        %v881 = vmul.f32 %v842, %v851
        %v882 = vmul.f32 %v843, %v851
        %v883 = vmul.f32 %v844, %v851
        %v884 = vmul.f32 %v845, %v851
        %v885 = vld [vmem:[%s2] sm:$0x1]
        %v887 = vlaneseq
        %v888 = vshrl.u32 %v887, 7
        %v889 = vsub.s32 0, %v888
        %v890 = vrot.slane %v885, %v889
        %v892 = vadd.f32 %v853, %v890
        %v893 = vadd.f32 %v854, %v890
        %v894 = vadd.f32 %v855, %v890
        %v895 = vadd.f32 %v856, %v890
        %v896 = vadd.f32 %v857, %v890
        %v897 = vadd.f32 %v858, %v890
        %v898 = vadd.f32 %v859, %v890
        %v899 = vadd.f32 %v860, %v890
        %v900 = vadd.f32 %v861, %v890
        %v901 = vadd.f32 %v862, %v890
        %v902 = vadd.f32 %v863, %v890
        %v903 = vadd.f32 %v864, %v890
        %v904 = vadd.f32 %v865, %v890
        %v905 = vadd.f32 %v866, %v890
        %v906 = vadd.f32 %v867, %v890
        %v907 = vadd.f32 %v868, %v890
        %v908 = vadd.f32 %v869, %v890
        %v909 = vadd.f32 %v870, %v890
        %v910 = vadd.f32 %v871, %v890
        %v911 = vadd.f32 %v872, %v890
        %v912 = vadd.f32 %v873, %v890
        %v913 = vadd.f32 %v874, %v890
        %v914 = vadd.f32 %v875, %v890
        %v915 = vadd.f32 %v876, %v890
        %v916 = vadd.f32 %v877, %v890
        %v917 = vadd.f32 %v878, %v890
        %v918 = vadd.f32 %v879, %v890
        %v919 = vadd.f32 %v880, %v890
        %v920 = vadd.f32 %v881, %v890
        %v921 = vadd.f32 %v882, %v890
        %v922 = vadd.f32 %v883, %v890
        %v923 = vadd.f32 %v884, %v890
        %v924 = vmax.f32 %v892, 0.0
        %v925 = vmax.f32 %v893, 0.0
        %v926 = vmax.f32 %v894, 0.0
        %v927 = vmax.f32 %v895, 0.0
        %v928 = vmax.f32 %v896, 0.0
        %v929 = vmax.f32 %v897, 0.0
        %v930 = vmax.f32 %v898, 0.0
        %v931 = vmax.f32 %v899, 0.0
        %v932 = vmax.f32 %v900, 0.0
        %v933 = vmax.f32 %v901, 0.0
        %v934 = vmax.f32 %v902, 0.0
        %v935 = vmax.f32 %v903, 0.0
        %v936 = vmax.f32 %v904, 0.0
        %v937 = vmax.f32 %v905, 0.0
        %v938 = vmax.f32 %v906, 0.0
        %v939 = vmax.f32 %v907, 0.0
        %v940 = vmax.f32 %v908, 0.0
        %v941 = vmax.f32 %v909, 0.0
        %v942 = vmax.f32 %v910, 0.0
        %v943 = vmax.f32 %v911, 0.0
        %v944 = vmax.f32 %v912, 0.0
        %v945 = vmax.f32 %v913, 0.0
        %v946 = vmax.f32 %v914, 0.0
        %v947 = vmax.f32 %v915, 0.0
        %v948 = vmax.f32 %v916, 0.0
        %v949 = vmax.f32 %v917, 0.0
        %v950 = vmax.f32 %v918, 0.0
        %v951 = vmax.f32 %v919, 0.0
        %v952 = vmax.f32 %v920, 0.0
        %v953 = vmax.f32 %v921, 0.0
        %v954 = vmax.f32 %v922, 0.0
        %v955 = vmax.f32 %v923, 0.0
        %956 = vst [vmem:[#allocation2 + $0x18] sm:$0xff] %v924
        %957 = vst [vmem:[#allocation2 + $0x20] sm:$0xff] %v925
        %958 = vst [vmem:[#allocation2 + $0x28] sm:$0xff] %v926
        %959 = vst [vmem:[#allocation2 + $0x30] sm:$0xff] %v927
        %960 = vst [vmem:[#allocation2 + $0x38] sm:$0xff] %v928
        %961 = vst [vmem:[#allocation2 + $0x40] sm:$0xff] %v929
        %962 = vst [vmem:[#allocation2 + $0x48] sm:$0xff] %v930
        %963 = vst [vmem:[#allocation2 + $0x50] sm:$0xff] %v931
        %964 = vst [vmem:[#allocation2 + $0x58] sm:$0xff] %v932
        %965 = vst [vmem:[#allocation2 + $0x60] sm:$0xff] %v933
        %966 = vst [vmem:[#allocation2 + $0x68] sm:$0xff] %v934
        %967 = vst [vmem:[#allocation2 + $0x70] sm:$0xff] %v935
        %968 = vst [vmem:[#allocation2 + $0x78] sm:$0xff] %v936
        %969 = vst [vmem:[#allocation2 + $0x80] sm:$0xff] %v937
        %970 = vst [vmem:[#allocation2 + $0x88] sm:$0xff] %v938
        %971 = vst [vmem:[#allocation2 + $0x90] sm:$0xff] %v939
        %972 = vst [vmem:[#allocation2 + $0x98] sm:$0xff] %v940
        %973 = vst [vmem:[#allocation2 + $0xa0] sm:$0xff] %v941
        %974 = vst [vmem:[#allocation2 + $0xa8] sm:$0xff] %v942
        %975 = vst [vmem:[#allocation2 + $0xb0] sm:$0xff] %v943
        %976 = vst [vmem:[#allocation2 + $0xb8] sm:$0xff] %v944
        %977 = vst [vmem:[#allocation2 + $0xc0] sm:$0xff] %v945
        %978 = vst [vmem:[#allocation2 + $0xc8] sm:$0xff] %v946
        %979 = vst [vmem:[#allocation2 + $0xd0] sm:$0xff] %v947
        %980 = vst [vmem:[#allocation2 + $0xd8] sm:$0xff] %v948
        %981 = vst [vmem:[#allocation2 + $0xe0] sm:$0xff] %v949
        %982 = vst [vmem:[#allocation2 + $0xe8] sm:$0xff] %v950
        %983 = vst [vmem:[#allocation2 + $0xf0] sm:$0xff] %v951
        %984 = vst [vmem:[#allocation2 + $0xf8] sm:$0xff] %v952
        %985 = vst [vmem:[#allocation2 + $0x100] sm:$0xff] %v953
        %986 = vst [vmem:[#allocation2 + $0x108] sm:$0xff] %v954
        %987 = vst [vmem:[#allocation2 + $0x110] sm:$0xff] %v955
        %v988 = vld [vmem:[#allocation2 + $0x7] sm:$0xff]
        %v989 = vld [vmem:[#allocation2 + $0xf] sm:$0xff]
        %v990 = vld [vmem:[#allocation2 + $0x17] sm:$0xff]
        %v991 = vld [vmem:[#allocation2 + $0x1f] sm:$0xff]
        %v992 = vld [vmem:[#allocation2 + $0x27] sm:$0xff]
        %v993 = vld [vmem:[#allocation2 + $0x2f] sm:$0xff]
        %v994 = vld [vmem:[#allocation2 + $0x37] sm:$0xff]
        %v995 = vld [vmem:[#allocation2 + $0x3f] sm:$0xff]
        %v996 = vld [vmem:[#allocation2 + $0x47] sm:$0xff]
        %v997 = vld [vmem:[#allocation2 + $0x4f] sm:$0xff]
        %v998 = vld [vmem:[#allocation2 + $0x57] sm:$0xff]
        %v999 = vld [vmem:[#allocation2 + $0x5f] sm:$0xff]
        %v1000 = vld [vmem:[#allocation2 + $0x67] sm:$0xff]
        %v1001 = vld [vmem:[#allocation2 + $0x6f] sm:$0xff]
        %v1002 = vld [vmem:[#allocation2 + $0x77] sm:$0xff]
        %v1003 = vld [vmem:[#allocation2 + $0x7f] sm:$0xff]
        %v1004 = vld [vmem:[#allocation2 + $0x87] sm:$0xff]
        %v1005 = vld [vmem:[#allocation2 + $0x8f] sm:$0xff]
        %v1006 = vld [vmem:[#allocation2 + $0x97] sm:$0xff]
        %v1007 = vld [vmem:[#allocation2 + $0x9f] sm:$0xff]
        %v1008 = vld [vmem:[#allocation2 + $0xa7] sm:$0xff]
        %v1009 = vld [vmem:[#allocation2 + $0xaf] sm:$0xff]
        %v1010 = vld [vmem:[#allocation2 + $0xb7] sm:$0xff]
        %v1011 = vld [vmem:[#allocation2 + $0xbf] sm:$0xff]
        %v1012 = vld [vmem:[#allocation2 + $0xc7] sm:$0xff]
        %v1013 = vld [vmem:[#allocation2 + $0xcf] sm:$0xff]
        %v1014 = vld [vmem:[#allocation2 + $0xd7] sm:$0xff]
        %v1015 = vld [vmem:[#allocation2 + $0xdf] sm:$0xff]
        %v1016 = vld [vmem:[#allocation2 + $0xe7] sm:$0xff]
        %v1017 = vld [vmem:[#allocation2 + $0xef] sm:$0xff]
        %v1018 = vld [vmem:[#allocation2 + $0xf7] sm:$0xff]
        %v1019 = vld [vmem:[#allocation2 + $0xff] sm:$0xff]
        %v1020 = vsel %vm750, 1, 0
        %v1021 = vsel %vm751, 1, 0
        %v1022 = vsel %vm752, 1, 0
        %v1023 = vsel %vm753, 1, 0
        %v1024 = vsel %vm754, 1, 0
        %v1025 = vsel %vm755, 1, 0
        %v1026 = vsel %vm756, 1, 0
        %v1027 = vsel %vm757, 1, 0
        %v1028 = vsel %vm758, 1, 0
        %v1029 = vsel %vm759, 1, 0
        %v1030 = vsel %vm760, 1, 0
        %v1031 = vsel %vm761, 1, 0
        %v1032 = vsel %vm762, 1, 0
        %v1033 = vsel %vm763, 1, 0
        %v1034 = vsel %vm764, 1, 0
        %v1035 = vsel %vm765, 1, 0
        %v1036 = vsel %vm766, 1, 0
        %v1037 = vsel %vm767, 1, 0
        %v1038 = vsel %vm768, 1, 0
        %v1039 = vsel %vm769, 1, 0
        %v1040 = vsel %vm770, 1, 0
        %v1041 = vsel %vm771, 1, 0
        %v1042 = vsel %vm772, 1, 0
        %v1043 = vsel %vm773, 1, 0
        %v1044 = vsel %vm774, 1, 0
        %v1045 = vsel %vm775, 1, 0
        %v1046 = vsel %vm776, 1, 0
        %v1047 = vsel %vm777, 1, 0
        %v1048 = vsel %vm778, 1, 0
        %v1049 = vsel %vm779, 1, 0
        %v1050 = vsel %vm780, 1, 0
        %v1051 = vsel %vm781, 1, 0
        %vm1052 = vcmp.eq.s32.totalorder %v1020, 1
        %vm1053 = vcmp.eq.s32.totalorder %v1021, 1
        %vm1054 = vcmp.eq.s32.totalorder %v1022, 1
        %vm1055 = vcmp.eq.s32.totalorder %v1023, 1
        %vm1056 = vcmp.eq.s32.totalorder %v1024, 1
        %vm1057 = vcmp.eq.s32.totalorder %v1025, 1
        %vm1058 = vcmp.eq.s32.totalorder %v1026, 1
        %vm1059 = vcmp.eq.s32.totalorder %v1027, 1
        %vm1060 = vcmp.eq.s32.totalorder %v1028, 1
        %vm1061 = vcmp.eq.s32.totalorder %v1029, 1
        %vm1062 = vcmp.eq.s32.totalorder %v1030, 1
        %vm1063 = vcmp.eq.s32.totalorder %v1031, 1
        %vm1064 = vcmp.eq.s32.totalorder %v1032, 1
        %vm1065 = vcmp.eq.s32.totalorder %v1033, 1
        %vm1066 = vcmp.eq.s32.totalorder %v1034, 1
        %vm1067 = vcmp.eq.s32.totalorder %v1035, 1
        %vm1068 = vcmp.eq.s32.totalorder %v1036, 1
        %vm1069 = vcmp.eq.s32.totalorder %v1037, 1
        %vm1070 = vcmp.eq.s32.totalorder %v1038, 1
        %vm1071 = vcmp.eq.s32.totalorder %v1039, 1
        %vm1072 = vcmp.eq.s32.totalorder %v1040, 1
        %vm1073 = vcmp.eq.s32.totalorder %v1041, 1
        %vm1074 = vcmp.eq.s32.totalorder %v1042, 1
        %vm1075 = vcmp.eq.s32.totalorder %v1043, 1
        %vm1076 = vcmp.eq.s32.totalorder %v1044, 1
        %vm1077 = vcmp.eq.s32.totalorder %v1045, 1
        %vm1078 = vcmp.eq.s32.totalorder %v1046, 1
        %vm1079 = vcmp.eq.s32.totalorder %v1047, 1
        %vm1080 = vcmp.eq.s32.totalorder %v1048, 1
        %vm1081 = vcmp.eq.s32.totalorder %v1049, 1
        %vm1082 = vcmp.eq.s32.totalorder %v1050, 1
        %vm1083 = vcmp.eq.s32.totalorder %v1051, 1
        %v1084 = vsel %vm1052, 0.0, %v988
        %v1085 = vsel %vm1053, 0.0, %v989
        %v1086 = vsel %vm1054, 0.0, %v990
        %v1087 = vsel %vm1055, 0.0, %v991
        %v1088 = vsel %vm1056, 0.0, %v992
        %v1089 = vsel %vm1057, 0.0, %v993
        %v1090 = vsel %vm1058, 0.0, %v994
        %v1091 = vsel %vm1059, 0.0, %v995
        %v1092 = vsel %vm1060, 0.0, %v996
        %v1093 = vsel %vm1061, 0.0, %v997
        %v1094 = vsel %vm1062, 0.0, %v998
        %v1095 = vsel %vm1063, 0.0, %v999
        %v1096 = vsel %vm1064, 0.0, %v1000
        %v1097 = vsel %vm1065, 0.0, %v1001
        %v1098 = vsel %vm1066, 0.0, %v1002
        %v1099 = vsel %vm1067, 0.0, %v1003
        %v1100 = vsel %vm1068, 0.0, %v1004
        %v1101 = vsel %vm1069, 0.0, %v1005
        %v1102 = vsel %vm1070, 0.0, %v1006
        %v1103 = vsel %vm1071, 0.0, %v1007
        %v1104 = vsel %vm1072, 0.0, %v1008
        %v1105 = vsel %vm1073, 0.0, %v1009
        %v1106 = vsel %vm1074, 0.0, %v1010
        %v1107 = vsel %vm1075, 0.0, %v1011
        %v1108 = vsel %vm1076, 0.0, %v1012
        %v1109 = vsel %vm1077, 0.0, %v1013
        %v1110 = vsel %vm1078, 0.0, %v1014
        %v1111 = vsel %vm1079, 0.0, %v1015
        %v1112 = vsel %vm1080, 0.0, %v1016
        %v1113 = vsel %vm1081, 0.0, %v1017
        %v1114 = vsel %vm1082, 0.0, %v1018
        %v1115 = vsel %vm1083, 0.0, %v1019
        %v1116 = vld [vmem:[#allocation2 + $0x8] sm:$0xff]
        %v1117 = vld [vmem:[#allocation2 + $0x10] sm:$0xff]
        %v1118 = vld [vmem:[#allocation2 + $0x18] sm:$0xff]
        %v1119 = vld [vmem:[#allocation2 + $0x20] sm:$0xff]
        %v1120 = vld [vmem:[#allocation2 + $0x28] sm:$0xff]
        %v1121 = vld [vmem:[#allocation2 + $0x30] sm:$0xff]
        %v1122 = vld [vmem:[#allocation2 + $0x38] sm:$0xff]
        %v1123 = vld [vmem:[#allocation2 + $0x40] sm:$0xff]
        %v1124 = vld [vmem:[#allocation2 + $0x48] sm:$0xff]
        %v1125 = vld [vmem:[#allocation2 + $0x50] sm:$0xff]
        %v1126 = vld [vmem:[#allocation2 + $0x58] sm:$0xff]
        %v1127 = vld [vmem:[#allocation2 + $0x60] sm:$0xff]
        %v1128 = vld [vmem:[#allocation2 + $0x68] sm:$0xff]
        %v1129 = vld [vmem:[#allocation2 + $0x70] sm:$0xff]
        %v1130 = vld [vmem:[#allocation2 + $0x78] sm:$0xff]
        %v1131 = vld [vmem:[#allocation2 + $0x80] sm:$0xff]
        %v1132 = vld [vmem:[#allocation2 + $0x88] sm:$0xff]
        %v1133 = vld [vmem:[#allocation2 + $0x90] sm:$0xff]
        %v1134 = vld [vmem:[#allocation2 + $0x98] sm:$0xff]
        %v1135 = vld [vmem:[#allocation2 + $0xa0] sm:$0xff]
        %v1136 = vld [vmem:[#allocation2 + $0xa8] sm:$0xff]
        %v1137 = vld [vmem:[#allocation2 + $0xb0] sm:$0xff]
        %v1138 = vld [vmem:[#allocation2 + $0xb8] sm:$0xff]
        %v1139 = vld [vmem:[#allocation2 + $0xc0] sm:$0xff]
        %v1140 = vld [vmem:[#allocation2 + $0xc8] sm:$0xff]
        %v1141 = vld [vmem:[#allocation2 + $0xd0] sm:$0xff]
        %v1142 = vld [vmem:[#allocation2 + $0xd8] sm:$0xff]
        %v1143 = vld [vmem:[#allocation2 + $0xe0] sm:$0xff]
        %v1144 = vld [vmem:[#allocation2 + $0xe8] sm:$0xff]
        %v1145 = vld [vmem:[#allocation2 + $0xf0] sm:$0xff]
        %v1146 = vld [vmem:[#allocation2 + $0xf8] sm:$0xff]
        %v1147 = vld [vmem:[#allocation2 + $0x100] sm:$0xff]
        %v1148 = vld [vmem:[#allocation2 + $0x9] sm:$0xff]
        %v1149 = vld [vmem:[#allocation2 + $0x11] sm:$0xff]
        %v1150 = vld [vmem:[#allocation2 + $0x19] sm:$0xff]
        %v1151 = vld [vmem:[#allocation2 + $0x21] sm:$0xff]
        %v1152 = vld [vmem:[#allocation2 + $0x29] sm:$0xff]
        %v1153 = vld [vmem:[#allocation2 + $0x31] sm:$0xff]
        %v1154 = vld [vmem:[#allocation2 + $0x39] sm:$0xff]
        %v1155 = vld [vmem:[#allocation2 + $0x41] sm:$0xff]
        %v1156 = vld [vmem:[#allocation2 + $0x49] sm:$0xff]
        %v1157 = vld [vmem:[#allocation2 + $0x51] sm:$0xff]
        %v1158 = vld [vmem:[#allocation2 + $0x59] sm:$0xff]
        %v1159 = vld [vmem:[#allocation2 + $0x61] sm:$0xff]
        %v1160 = vld [vmem:[#allocation2 + $0x69] sm:$0xff]
        %v1161 = vld [vmem:[#allocation2 + $0x71] sm:$0xff]
        %v1162 = vld [vmem:[#allocation2 + $0x79] sm:$0xff]
        %v1163 = vld [vmem:[#allocation2 + $0x81] sm:$0xff]
        %v1164 = vld [vmem:[#allocation2 + $0x89] sm:$0xff]
        %v1165 = vld [vmem:[#allocation2 + $0x91] sm:$0xff]
        %v1166 = vld [vmem:[#allocation2 + $0x99] sm:$0xff]
        %v1167 = vld [vmem:[#allocation2 + $0xa1] sm:$0xff]
        %v1168 = vld [vmem:[#allocation2 + $0xa9] sm:$0xff]
        %v1169 = vld [vmem:[#allocation2 + $0xb1] sm:$0xff]
        %v1170 = vld [vmem:[#allocation2 + $0xb9] sm:$0xff]
        %v1171 = vld [vmem:[#allocation2 + $0xc1] sm:$0xff]
        %v1172 = vld [vmem:[#allocation2 + $0xc9] sm:$0xff]
        %v1173 = vld [vmem:[#allocation2 + $0xd1] sm:$0xff]
        %v1174 = vld [vmem:[#allocation2 + $0xd9] sm:$0xff]
        %v1175 = vld [vmem:[#allocation2 + $0xe1] sm:$0xff]
        %v1176 = vld [vmem:[#allocation2 + $0xe9] sm:$0xff]
        %v1177 = vld [vmem:[#allocation2 + $0xf1] sm:$0xff]
        %v1178 = vld [vmem:[#allocation2 + $0xf9] sm:$0xff]
        %v1179 = vld [vmem:[#allocation2 + $0x101] sm:$0xff]
        %v1180 = vsel %vm782, 1, 0
        %v1181 = vsel %vm783, 1, 0
        %v1182 = vsel %vm784, 1, 0
        %v1183 = vsel %vm785, 1, 0
        %v1184 = vsel %vm786, 1, 0
        %v1185 = vsel %vm787, 1, 0
        %v1186 = vsel %vm788, 1, 0
        %v1187 = vsel %vm789, 1, 0
        %v1188 = vsel %vm790, 1, 0
        %v1189 = vsel %vm791, 1, 0
        %v1190 = vsel %vm792, 1, 0
        %v1191 = vsel %vm793, 1, 0
        %v1192 = vsel %vm794, 1, 0
        %v1193 = vsel %vm795, 1, 0
        %v1194 = vsel %vm796, 1, 0
        %v1195 = vsel %vm797, 1, 0
        %v1196 = vsel %vm798, 1, 0
        %v1197 = vsel %vm799, 1, 0
        %v1198 = vsel %vm800, 1, 0
        %v1199 = vsel %vm801, 1, 0
        %v1200 = vsel %vm802, 1, 0
        %v1201 = vsel %vm803, 1, 0
        %v1202 = vsel %vm804, 1, 0
        %v1203 = vsel %vm805, 1, 0
        %v1204 = vsel %vm806, 1, 0
        %v1205 = vsel %vm807, 1, 0
        %v1206 = vsel %vm808, 1, 0
        %v1207 = vsel %vm809, 1, 0
        %v1208 = vsel %vm810, 1, 0
        %v1209 = vsel %vm811, 1, 0
        %v1210 = vsel %vm812, 1, 0
        %v1211 = vsel %vm813, 1, 0
        %vm1212 = vcmp.eq.s32.totalorder %v1180, 1
        %vm1213 = vcmp.eq.s32.totalorder %v1181, 1
        %vm1214 = vcmp.eq.s32.totalorder %v1182, 1
        %vm1215 = vcmp.eq.s32.totalorder %v1183, 1
        %vm1216 = vcmp.eq.s32.totalorder %v1184, 1
        %vm1217 = vcmp.eq.s32.totalorder %v1185, 1
        %vm1218 = vcmp.eq.s32.totalorder %v1186, 1
        %vm1219 = vcmp.eq.s32.totalorder %v1187, 1
        %vm1220 = vcmp.eq.s32.totalorder %v1188, 1
        %vm1221 = vcmp.eq.s32.totalorder %v1189, 1
        %vm1222 = vcmp.eq.s32.totalorder %v1190, 1
        %vm1223 = vcmp.eq.s32.totalorder %v1191, 1
        %vm1224 = vcmp.eq.s32.totalorder %v1192, 1
        %vm1225 = vcmp.eq.s32.totalorder %v1193, 1
        %vm1226 = vcmp.eq.s32.totalorder %v1194, 1
        %vm1227 = vcmp.eq.s32.totalorder %v1195, 1
        %vm1228 = vcmp.eq.s32.totalorder %v1196, 1
        %vm1229 = vcmp.eq.s32.totalorder %v1197, 1
        %vm1230 = vcmp.eq.s32.totalorder %v1198, 1
        %vm1231 = vcmp.eq.s32.totalorder %v1199, 1
        %vm1232 = vcmp.eq.s32.totalorder %v1200, 1
        %vm1233 = vcmp.eq.s32.totalorder %v1201, 1
        %vm1234 = vcmp.eq.s32.totalorder %v1202, 1
        %vm1235 = vcmp.eq.s32.totalorder %v1203, 1
        %vm1236 = vcmp.eq.s32.totalorder %v1204, 1
        %vm1237 = vcmp.eq.s32.totalorder %v1205, 1
        %vm1238 = vcmp.eq.s32.totalorder %v1206, 1
        %vm1239 = vcmp.eq.s32.totalorder %v1207, 1
        %vm1240 = vcmp.eq.s32.totalorder %v1208, 1
        %vm1241 = vcmp.eq.s32.totalorder %v1209, 1
        %vm1242 = vcmp.eq.s32.totalorder %v1210, 1
        %vm1243 = vcmp.eq.s32.totalorder %v1211, 1
        %v1244 = vsel %vm1212, 0.0, %v1148
        %v1245 = vsel %vm1213, 0.0, %v1149
        %v1246 = vsel %vm1214, 0.0, %v1150
        %v1247 = vsel %vm1215, 0.0, %v1151
        %v1248 = vsel %vm1216, 0.0, %v1152
        %v1249 = vsel %vm1217, 0.0, %v1153
        %v1250 = vsel %vm1218, 0.0, %v1154
        %v1251 = vsel %vm1219, 0.0, %v1155
        %v1252 = vsel %vm1220, 0.0, %v1156
        %v1253 = vsel %vm1221, 0.0, %v1157
        %v1254 = vsel %vm1222, 0.0, %v1158
        %v1255 = vsel %vm1223, 0.0, %v1159
        %v1256 = vsel %vm1224, 0.0, %v1160
        %v1257 = vsel %vm1225, 0.0, %v1161
        %v1258 = vsel %vm1226, 0.0, %v1162
        %v1259 = vsel %vm1227, 0.0, %v1163
        %v1260 = vsel %vm1228, 0.0, %v1164
        %v1261 = vsel %vm1229, 0.0, %v1165
        %v1262 = vsel %vm1230, 0.0, %v1166
        %v1263 = vsel %vm1231, 0.0, %v1167
        %v1264 = vsel %vm1232, 0.0, %v1168
        %v1265 = vsel %vm1233, 0.0, %v1169
        %v1266 = vsel %vm1234, 0.0, %v1170
        %v1267 = vsel %vm1235, 0.0, %v1171
        %v1268 = vsel %vm1236, 0.0, %v1172
        %v1269 = vsel %vm1237, 0.0, %v1173
        %v1270 = vsel %vm1238, 0.0, %v1174
        %v1271 = vsel %vm1239, 0.0, %v1175
        %v1272 = vsel %vm1240, 0.0, %v1176
        %v1273 = vsel %vm1241, 0.0, %v1177
        %v1274 = vsel %vm1242, 0.0, %v1178
        %v1275 = vsel %vm1243, 0.0, %v1179
        %v1276 = vpack.c.bf16 %v1085, %v1084
        %v1277 = vpack.c.bf16 %v1087, %v1086
        %v1278 = vpack.c.bf16 %v1089, %v1088
        %v1279 = vpack.c.bf16 %v1091, %v1090
        %v1280 = vpack.c.bf16 %v1093, %v1092
        %v1281 = vpack.c.bf16 %v1095, %v1094
        %v1282 = vpack.c.bf16 %v1097, %v1096
        %v1283 = vpack.c.bf16 %v1099, %v1098
        %v1284 = vpack.c.bf16 %v1101, %v1100
        %v1285 = vpack.c.bf16 %v1103, %v1102
        %v1286 = vpack.c.bf16 %v1105, %v1104
        %v1287 = vpack.c.bf16 %v1107, %v1106
        %v1288 = vpack.c.bf16 %v1109, %v1108
        %v1289 = vpack.c.bf16 %v1111, %v1110
        %v1290 = vpack.c.bf16 %v1113, %v1112
        %v1291 = vpack.c.bf16 %v1115, %v1114
        %v1292 = vpack.c.bf16 %v1117, %v1116
        %v1293 = vpack.c.bf16 %v1119, %v1118
        %v1294 = vpack.c.bf16 %v1121, %v1120
        %v1295 = vpack.c.bf16 %v1123, %v1122
        %v1296 = vpack.c.bf16 %v1125, %v1124
        %v1297 = vpack.c.bf16 %v1127, %v1126
        %v1298 = vpack.c.bf16 %v1129, %v1128
        %v1299 = vpack.c.bf16 %v1131, %v1130
        %v1300 = vpack.c.bf16 %v1133, %v1132
        %v1301 = vpack.c.bf16 %v1135, %v1134
        %v1302 = vpack.c.bf16 %v1137, %v1136
        %v1303 = vpack.c.bf16 %v1139, %v1138
        %v1304 = vpack.c.bf16 %v1141, %v1140
        %v1305 = vpack.c.bf16 %v1143, %v1142
        %v1306 = vpack.c.bf16 %v1145, %v1144
        %v1307 = vpack.c.bf16 %v1147, %v1146
        %v1308 = vpack.c.bf16 %v1245, %v1244
        %v1309 = vpack.c.bf16 %v1247, %v1246
        %v1310 = vpack.c.bf16 %v1249, %v1248
        %v1311 = vpack.c.bf16 %v1251, %v1250
        %v1312 = vpack.c.bf16 %v1253, %v1252
        %v1313 = vpack.c.bf16 %v1255, %v1254
        %v1314 = vpack.c.bf16 %v1257, %v1256
        %v1315 = vpack.c.bf16 %v1259, %v1258
        %v1316 = vpack.c.bf16 %v1261, %v1260
        %v1317 = vpack.c.bf16 %v1263, %v1262
        %v1318 = vpack.c.bf16 %v1265, %v1264
        %v1319 = vpack.c.bf16 %v1267, %v1266
        %v1320 = vpack.c.bf16 %v1269, %v1268
        %v1321 = vpack.c.bf16 %v1271, %v1270
        %v1322 = vpack.c.bf16 %v1273, %v1272
        %v1323 = vpack.c.bf16 %v1275, %v1274
        %v1324 = vld [vmem:[#allocation6] sm:$0xf]
        %v1325 = vld [vmem:[#allocation6 + $0x4] sm:$0xf]
        %v1326 = vld [vmem:[#allocation6 + $0x8] sm:$0xf]
        %v1327 = vld [vmem:[#allocation6 + $0xc] sm:$0xf]
        %v1328 = vld [vmem:[#allocation6 + $0x10] sm:$0xf]
        %v1329 = vld [vmem:[#allocation6 + $0x14] sm:$0xf]
        %v1330 = vld [vmem:[#allocation6 + $0x18] sm:$0xf]
        %v1331 = vld [vmem:[#allocation6 + $0x1c] sm:$0xf]
        %v1332 = vld [vmem:[#allocation6 + $0x20] sm:$0xf]
        %v1333 = vld [vmem:[#allocation6 + $0x24] sm:$0xf]
        %v1334 = vld [vmem:[#allocation6 + $0x28] sm:$0xf]
        %v1335 = vld [vmem:[#allocation6 + $0x2c] sm:$0xf]
        %v1336 = vld [vmem:[#allocation6 + $0x30] sm:$0xf]
        %v1337 = vld [vmem:[#allocation6 + $0x34] sm:$0xf]
        %v1338 = vld [vmem:[#allocation6 + $0x38] sm:$0xf]
        %v1339 = vld [vmem:[#allocation6 + $0x3c] sm:$0xf]
        %v1340 = vld [vmem:[#allocation6 + $0x40] sm:$0xf]
        %v1341 = vld [vmem:[#allocation6 + $0x44] sm:$0xf]
        %v1342 = vld [vmem:[#allocation6 + $0x48] sm:$0xf]
        %v1343 = vld [vmem:[#allocation6 + $0x4c] sm:$0xf]
        %v1344 = vld [vmem:[#allocation6 + $0x50] sm:$0xf]
        %v1345 = vld [vmem:[#allocation6 + $0x54] sm:$0xf]
        %v1346 = vld [vmem:[#allocation6 + $0x58] sm:$0xf]
        %v1347 = vld [vmem:[#allocation6 + $0x5c] sm:$0xf]
        %v1348 = vld [vmem:[#allocation6 + $0x60] sm:$0xf]
        %v1349 = vld [vmem:[#allocation6 + $0x64] sm:$0xf]
        %v1350 = vld [vmem:[#allocation6 + $0x68] sm:$0xf]
        %v1351 = vld [vmem:[#allocation6 + $0x6c] sm:$0xf]
        %v1352 = vld [vmem:[#allocation6 + $0x70] sm:$0xf]
        %v1353 = vld [vmem:[#allocation6 + $0x74] sm:$0xf]
        %v1354 = vld [vmem:[#allocation6 + $0x78] sm:$0xf]
        %v1355 = vld [vmem:[#allocation6 + $0x7c] sm:$0xf]
        %v1356 = vld [vmem:[#allocation6 + $0x80] sm:$0xf]
        %v1357 = vld [vmem:[#allocation6 + $0x84] sm:$0xf]
        %v1358 = vld [vmem:[#allocation6 + $0x88] sm:$0xf]
        %v1359 = vld [vmem:[#allocation6 + $0x8c] sm:$0xf]
        %v1360 = vld [vmem:[#allocation6 + $0x90] sm:$0xf]
        %v1361 = vld [vmem:[#allocation6 + $0x94] sm:$0xf]
        %v1362 = vld [vmem:[#allocation6 + $0x98] sm:$0xf]
        %v1363 = vld [vmem:[#allocation6 + $0x9c] sm:$0xf]
        %v1364 = vld [vmem:[#allocation6 + $0xa0] sm:$0xf]
        %v1365 = vld [vmem:[#allocation6 + $0xa4] sm:$0xf]
        %v1366 = vld [vmem:[#allocation6 + $0xa8] sm:$0xf]
        %v1367 = vld [vmem:[#allocation6 + $0xac] sm:$0xf]
        %v1368 = vld [vmem:[#allocation6 + $0xb0] sm:$0xf]
        %v1369 = vld [vmem:[#allocation6 + $0xb4] sm:$0xf]
        %v1370 = vld [vmem:[#allocation6 + $0xb8] sm:$0xf]
        %v1371 = vld [vmem:[#allocation6 + $0xbc] sm:$0xf]
        %v1372 = vld [vmem:[#allocation2 + $0x107] sm:$0xff]
        %v1373 = vld [vmem:[#allocation2 + $0x10f] sm:$0xff]
        %v1374 = vsel %vm1052, 0.0, %v990
        %v1375 = vsel %vm1053, 0.0, %v991
        %v1376 = vsel %vm1054, 0.0, %v992
        %v1377 = vsel %vm1055, 0.0, %v993
        %v1378 = vsel %vm1056, 0.0, %v994
        %v1379 = vsel %vm1057, 0.0, %v995
        %v1380 = vsel %vm1058, 0.0, %v996
        %v1381 = vsel %vm1059, 0.0, %v997
        %v1382 = vsel %vm1060, 0.0, %v998
        %v1383 = vsel %vm1061, 0.0, %v999
        %v1384 = vsel %vm1062, 0.0, %v1000
        %v1385 = vsel %vm1063, 0.0, %v1001
        %v1386 = vsel %vm1064, 0.0, %v1002
        %v1387 = vsel %vm1065, 0.0, %v1003
        %v1388 = vsel %vm1066, 0.0, %v1004
        %v1389 = vsel %vm1067, 0.0, %v1005
        %v1390 = vsel %vm1068, 0.0, %v1006
        %v1391 = vsel %vm1069, 0.0, %v1007
        %v1392 = vsel %vm1070, 0.0, %v1008
        %v1393 = vsel %vm1071, 0.0, %v1009
        %v1394 = vsel %vm1072, 0.0, %v1010
        %v1395 = vsel %vm1073, 0.0, %v1011
        %v1396 = vsel %vm1074, 0.0, %v1012
        %v1397 = vsel %vm1075, 0.0, %v1013
        %v1398 = vsel %vm1076, 0.0, %v1014
        %v1399 = vsel %vm1077, 0.0, %v1015
        %v1400 = vsel %vm1078, 0.0, %v1016
        %v1401 = vsel %vm1079, 0.0, %v1017
        %v1402 = vsel %vm1080, 0.0, %v1018
        %v1403 = vsel %vm1081, 0.0, %v1019
        %v1404 = vsel %vm1082, 0.0, %v1372
        %v1405 = vsel %vm1083, 0.0, %v1373
        %v1406 = vld [vmem:[#allocation2 + $0x108] sm:$0xff]
        %v1407 = vld [vmem:[#allocation2 + $0x110] sm:$0xff]
        %v1408 = vld [vmem:[#allocation2 + $0x109] sm:$0xff]
        %v1409 = vld [vmem:[#allocation2 + $0x111] sm:$0xff]
        %v1410 = vsel %vm1212, 0.0, %v1150
        %v1411 = vsel %vm1213, 0.0, %v1151
        %v1412 = vsel %vm1214, 0.0, %v1152
        %v1413 = vsel %vm1215, 0.0, %v1153
        %v1414 = vsel %vm1216, 0.0, %v1154
        %v1415 = vsel %vm1217, 0.0, %v1155
        %v1416 = vsel %vm1218, 0.0, %v1156
        %v1417 = vsel %vm1219, 0.0, %v1157
        %v1418 = vsel %vm1220, 0.0, %v1158
        %v1419 = vsel %vm1221, 0.0, %v1159
        %v1420 = vsel %vm1222, 0.0, %v1160
        %v1421 = vsel %vm1223, 0.0, %v1161
        %v1422 = vsel %vm1224, 0.0, %v1162
        %v1423 = vsel %vm1225, 0.0, %v1163
        %v1424 = vsel %vm1226, 0.0, %v1164
        %v1425 = vsel %vm1227, 0.0, %v1165
        %v1426 = vsel %vm1228, 0.0, %v1166
        %v1427 = vsel %vm1229, 0.0, %v1167
        %v1428 = vsel %vm1230, 0.0, %v1168
        %v1429 = vsel %vm1231, 0.0, %v1169
        %v1430 = vsel %vm1232, 0.0, %v1170
        %v1431 = vsel %vm1233, 0.0, %v1171
        %v1432 = vsel %vm1234, 0.0, %v1172
        %v1433 = vsel %vm1235, 0.0, %v1173
        %v1434 = vsel %vm1236, 0.0, %v1174
        %v1435 = vsel %vm1237, 0.0, %v1175
        %v1436 = vsel %vm1238, 0.0, %v1176
        %v1437 = vsel %vm1239, 0.0, %v1177
        %v1438 = vsel %vm1240, 0.0, %v1178
        %v1439 = vsel %vm1241, 0.0, %v1179
        %v1440 = vsel %vm1242, 0.0, %v1408
        %v1441 = vsel %vm1243, 0.0, %v1409
        %v1442 = vpack.c.bf16 %v1375, %v1374
        %v1443 = vpack.c.bf16 %v1377, %v1376
        %v1444 = vpack.c.bf16 %v1379, %v1378
        %v1445 = vpack.c.bf16 %v1381, %v1380
        %v1446 = vpack.c.bf16 %v1383, %v1382
        %v1447 = vpack.c.bf16 %v1385, %v1384
        %v1448 = vpack.c.bf16 %v1387, %v1386
        %v1449 = vpack.c.bf16 %v1389, %v1388
        %v1450 = vpack.c.bf16 %v1391, %v1390
        %v1451 = vpack.c.bf16 %v1393, %v1392
        %v1452 = vpack.c.bf16 %v1395, %v1394
        %v1453 = vpack.c.bf16 %v1397, %v1396
        %v1454 = vpack.c.bf16 %v1399, %v1398
        %v1455 = vpack.c.bf16 %v1401, %v1400
        %v1456 = vpack.c.bf16 %v1403, %v1402
        %v1457 = vpack.c.bf16 %v1405, %v1404
        %v1458 = vpack.c.bf16 %v1407, %v1406
        %v1459 = vpack.c.bf16 %v1411, %v1410
        %v1460 = vpack.c.bf16 %v1413, %v1412
        %v1461 = vpack.c.bf16 %v1415, %v1414
        %v1462 = vpack.c.bf16 %v1417, %v1416
        %v1463 = vpack.c.bf16 %v1419, %v1418
        %v1464 = vpack.c.bf16 %v1421, %v1420
        %v1465 = vpack.c.bf16 %v1423, %v1422
        %v1466 = vpack.c.bf16 %v1425, %v1424
        %v1467 = vpack.c.bf16 %v1427, %v1426
        %v1468 = vpack.c.bf16 %v1429, %v1428
        %v1469 = vpack.c.bf16 %v1431, %v1430
        %v1470 = vpack.c.bf16 %v1433, %v1432
        %v1471 = vpack.c.bf16 %v1435, %v1434
        %v1472 = vpack.c.bf16 %v1437, %v1436
        %v1473 = vpack.c.bf16 %v1439, %v1438
        %v1474 = vpack.c.bf16 %v1441, %v1440
        %s1475 = scalar_lea.vmem [#allocation6], 192
        %v1476 = vld [vmem:[%s1475] sm:$0xf]
        %v1477 = vld [vmem:[%s1475 + $0x4] sm:$0xf]
        %v1478 = vld [vmem:[%s1475 + $0x8] sm:$0xf]
        %v1479 = vld [vmem:[%s1475 + $0xc] sm:$0xf]
        %v1480 = vld [vmem:[%s1475 + $0x10] sm:$0xf]
        %v1481 = vld [vmem:[%s1475 + $0x14] sm:$0xf]
        %v1482 = vld [vmem:[%s1475 + $0x18] sm:$0xf]
        %v1483 = vld [vmem:[%s1475 + $0x1c] sm:$0xf]
        %v1484 = vld [vmem:[%s1475 + $0x20] sm:$0xf]
        %v1485 = vld [vmem:[%s1475 + $0x24] sm:$0xf]
        %v1486 = vld [vmem:[%s1475 + $0x28] sm:$0xf]
        %v1487 = vld [vmem:[%s1475 + $0x2c] sm:$0xf]
        %v1488 = vld [vmem:[%s1475 + $0x30] sm:$0xf]
        %v1489 = vld [vmem:[%s1475 + $0x34] sm:$0xf]
        %v1490 = vld [vmem:[%s1475 + $0x38] sm:$0xf]
        %v1491 = vld [vmem:[%s1475 + $0x3c] sm:$0xf]
        %v1492 = vld [vmem:[%s1475 + $0x40] sm:$0xf]
        %v1493 = vld [vmem:[%s1475 + $0x44] sm:$0xf]
        %v1494 = vld [vmem:[%s1475 + $0x48] sm:$0xf]
        %v1495 = vld [vmem:[%s1475 + $0x4c] sm:$0xf]
        %v1496 = vld [vmem:[%s1475 + $0x50] sm:$0xf]
        %v1497 = vld [vmem:[%s1475 + $0x54] sm:$0xf]
        %v1498 = vld [vmem:[%s1475 + $0x58] sm:$0xf]
        %v1499 = vld [vmem:[%s1475 + $0x5c] sm:$0xf]
        %v1500 = vld [vmem:[%s1475 + $0x60] sm:$0xf]
        %v1501 = vld [vmem:[%s1475 + $0x64] sm:$0xf]
        %v1502 = vld [vmem:[%s1475 + $0x68] sm:$0xf]
        %v1503 = vld [vmem:[%s1475 + $0x6c] sm:$0xf]
        %v1504 = vld [vmem:[%s1475 + $0x70] sm:$0xf]
        %v1505 = vld [vmem:[%s1475 + $0x74] sm:$0xf]
        %v1506 = vld [vmem:[%s1475 + $0x78] sm:$0xf]
        %v1507 = vld [vmem:[%s1475 + $0x7c] sm:$0xf]
        %v1508 = vld [vmem:[%s1475 + $0x80] sm:$0xf]
        %v1509 = vld [vmem:[%s1475 + $0x84] sm:$0xf]
        %v1510 = vld [vmem:[%s1475 + $0x88] sm:$0xf]
        %v1511 = vld [vmem:[%s1475 + $0x8c] sm:$0xf]
        %v1512 = vld [vmem:[%s1475 + $0x90] sm:$0xf]
        %v1513 = vld [vmem:[%s1475 + $0x94] sm:$0xf]
        %v1514 = vld [vmem:[%s1475 + $0x98] sm:$0xf]
        %v1515 = vld [vmem:[%s1475 + $0x9c] sm:$0xf]
        %v1516 = vld [vmem:[%s1475 + $0xa0] sm:$0xf]
        %v1517 = vld [vmem:[%s1475 + $0xa4] sm:$0xf]
        %v1518 = vld [vmem:[%s1475 + $0xa8] sm:$0xf]
        %v1519 = vld [vmem:[%s1475 + $0xac] sm:$0xf]
        %v1520 = vld [vmem:[%s1475 + $0xb0] sm:$0xf]
        %v1521 = vld [vmem:[%s1475 + $0xb4] sm:$0xf]
        %v1522 = vld [vmem:[%s1475 + $0xb8] sm:$0xf]
        %v1523 = vld [vmem:[%s1475 + $0xbc] sm:$0xf]
        %v1572 = vunpack.c.l.b16 %v1476
        %v1573 = vunpack.c.l.b16 %v1477
        %v1574 = vunpack.c.l.b16 %v1478
        %v1575 = vunpack.c.l.b16 %v1479
        %v1576 = vunpack.c.l.b16 %v1480
        %v1577 = vunpack.c.l.b16 %v1481
        %v1578 = vunpack.c.l.b16 %v1482
        %v1579 = vunpack.c.l.b16 %v1483
        %v1580 = vunpack.c.l.b16 %v1484
        %v1581 = vunpack.c.l.b16 %v1485
        %v1582 = vunpack.c.l.b16 %v1486
        %v1583 = vunpack.c.l.b16 %v1487
        %v1584 = vunpack.c.l.b16 %v1488
        %v1585 = vunpack.c.l.b16 %v1489
        %v1586 = vunpack.c.l.b16 %v1490
        %v1587 = vunpack.c.l.b16 %v1491
        %v1588 = vunpack.c.l.b16 %v1492
        %v1589 = vunpack.c.l.b16 %v1493
        %v1590 = vunpack.c.l.b16 %v1494
        %v1591 = vunpack.c.l.b16 %v1495
        %v1592 = vunpack.c.l.b16 %v1496
        %v1593 = vunpack.c.l.b16 %v1497
        %v1594 = vunpack.c.l.b16 %v1498
        %v1595 = vunpack.c.l.b16 %v1499
        %v1596 = vunpack.c.l.b16 %v1500
        %v1597 = vunpack.c.l.b16 %v1501
        %v1598 = vunpack.c.l.b16 %v1502
        %v1599 = vunpack.c.l.b16 %v1503
        %v1600 = vunpack.c.l.b16 %v1504
        %v1601 = vunpack.c.l.b16 %v1505
        %v1602 = vunpack.c.l.b16 %v1506
        %v1603 = vunpack.c.l.b16 %v1507
        %v1604 = vunpack.c.l.b16 %v1508
        %v1605 = vunpack.c.l.b16 %v1509
        %v1606 = vunpack.c.l.b16 %v1510
        %v1607 = vunpack.c.l.b16 %v1511
        %v1608 = vunpack.c.l.b16 %v1512
        %v1609 = vunpack.c.l.b16 %v1513
        %v1610 = vunpack.c.l.b16 %v1514
        %v1611 = vunpack.c.l.b16 %v1515
        %v1612 = vunpack.c.l.b16 %v1516
        %v1613 = vunpack.c.l.b16 %v1517
        %v1614 = vunpack.c.l.b16 %v1518
        %v1615 = vunpack.c.l.b16 %v1519
        %v1616 = vunpack.c.l.b16 %v1520
        %v1617 = vunpack.c.l.b16 %v1521
        %v1618 = vunpack.c.l.b16 %v1522
        %v1619 = vunpack.c.l.b16 %v1523
        %v1620 = vpack.c.b16 %v1573, %v1572
        %v1621 = vpack.c.b16 %v1575, %v1574
        %v1622 = vpack.c.b16 %v1577, %v1576
        %v1623 = vpack.c.b16 %v1579, %v1578
        %v1624 = vpack.c.b16 %v1581, %v1580
        %v1625 = vpack.c.b16 %v1583, %v1582
        %v1626 = vpack.c.b16 %v1585, %v1584
        %v1627 = vpack.c.b16 %v1587, %v1586
        %v1628 = vpack.c.b16 %v1589, %v1588
        %v1629 = vpack.c.b16 %v1591, %v1590
        %v1630 = vpack.c.b16 %v1593, %v1592
        %v1631 = vpack.c.b16 %v1595, %v1594
        %v1632 = vpack.c.b16 %v1597, %v1596
        %v1633 = vpack.c.b16 %v1599, %v1598
        %v1634 = vpack.c.b16 %v1601, %v1600
        %v1635 = vpack.c.b16 %v1603, %v1602
        %v1636 = vpack.c.b16 %v1605, %v1604
        %v1637 = vpack.c.b16 %v1607, %v1606
        %v1638 = vpack.c.b16 %v1609, %v1608
        %v1639 = vpack.c.b16 %v1611, %v1610
        %v1640 = vpack.c.b16 %v1613, %v1612
        %v1641 = vpack.c.b16 %v1615, %v1614
        %v1642 = vpack.c.b16 %v1617, %v1616
        %v1643 = vpack.c.b16 %v1619, %v1618
        %1668 = vmatprep.subr.bf16.mxu0 0
        %1669 = vmatpush1.bf16.msra.mxu0 %v1620
        %1670 = vmatprep.subr.bf16.mxu0 0
        %1671 = vmatpush1.bf16.msra.mxu0 %v1621
        %1672 = vmatprep.subr.bf16.mxu0 0
        %1673 = vmatpush1.bf16.msra.mxu0 %v1622
        %1674 = vmatprep.subr.bf16.mxu0 0
        %1675 = vmatpush1.bf16.msra.mxu0 %v1623
        %1676 = vmatprep.subr.bf16.mxu0 0
        %1677 = vmatpush1.bf16.msra.mxu0 %v1624
        %1678 = vmatprep.subr.bf16.mxu0 0
        %1679 = vmatpush1.bf16.msra.mxu0 %v1625
        %1680 = vmatprep.subr.bf16.mxu0 0
        %1681 = vmatpush1.bf16.msra.mxu0 %v1626
        %1682 = vmatprep.subr.bf16.mxu0 0
        %1683 = vmatpush1.bf16.msra.mxu0 %v1627
        %1684 = vmatprep.subr.bf16.mxu0 0
        %1685 = vmatpush1.bf16.msra.mxu0 %v1628
        %1686 = vmatprep.subr.bf16.mxu0 0
        %1687 = vmatpush1.bf16.msra.mxu0 %v1629
        %1688 = vmatprep.subr.bf16.mxu0 0
        %1689 = vmatpush1.bf16.msra.mxu0 %v1630
        %1690 = vmatprep.subr.bf16.mxu0 0
        %1691 = vmatpush1.bf16.msra.mxu0 %v1631
        %1692 = vmatprep.subr.bf16.mxu0 0
        %1693 = vmatpush1.bf16.msra.mxu0 %v1632
        %1694 = vmatprep.subr.bf16.mxu0 0
        %1695 = vmatpush1.bf16.msra.mxu0 %v1633
        %1696 = vmatprep.subr.bf16.mxu0 0
        %1697 = vmatpush1.bf16.msra.mxu0 %v1634
        %1698 = vmatprep.subr.bf16.mxu0 0
        %1699 = vmatpush1.bf16.msra.mxu0 %v1635
        %1700 = vmatprep.mubr.bf16.mxu0 %v1293
        %1701 = vmatmul.mubr.bf16.gmra.mrb[0].mxu0 %v1442
        %v1702 = vpop.f32.mrb[0].mxu0
        %v1703 = vadd.f32 0.0, %v1702
        %v1704 = vpop.f32.mrb[0].mxu0
        %v1705 = vpop.f32.mrb[0].mxu0
        %v1706 = vadd.f32 0.0, %v1705
        %v1707 = vpop.f32.mrb[0].mxu0
        %1708 = vmatprep.mubr.bf16.mxu0 %v1294
        %1709 = vmatmul.mubr.bf16.gmra.mrb[0].mxu0 %v1443
        %v1710 = vpop.f32.mrb[0].mxu0
        %v1711 = vadd.f32 0.0, %v1710
        %v1712 = vpop.f32.mrb[0].mxu0
        %v1713 = vpop.f32.mrb[0].mxu0
        %v1714 = vadd.f32 0.0, %v1713
        %v1715 = vpop.f32.mrb[0].mxu0
        %1716 = vmatprep.mubr.bf16.mxu0 %v1295
        %1717 = vmatmul.mubr.bf16.gmra.mrb[0].mxu0 %v1444
        %v1718 = vpop.f32.mrb[0].mxu0
        %v1719 = vadd.f32 0.0, %v1718
        %v1720 = vpop.f32.mrb[0].mxu0
        %v1721 = vpop.f32.mrb[0].mxu0
        %v1722 = vadd.f32 0.0, %v1721
        %v1723 = vpop.f32.mrb[0].mxu0
        %1724 = vmatprep.mubr.bf16.mxu0 %v1296
        %1725 = vmatmul.mubr.bf16.gmra.mrb[0].mxu0 %v1445
        %v1726 = vpop.f32.mrb[0].mxu0
        %v1727 = vadd.f32 0.0, %v1726
        %v1728 = vpop.f32.mrb[0].mxu0
        %v1729 = vpop.f32.mrb[0].mxu0
        %v1730 = vadd.f32 0.0, %v1729
        %v1731 = vpop.f32.mrb[0].mxu0
        %1732 = vmatprep.mubr.bf16.mxu0 %v1297
        %1733 = vmatmul.mubr.bf16.gmra.mrb[0].mxu0 %v1446
        %v1734 = vpop.f32.mrb[0].mxu0
        %v1735 = vadd.f32 0.0, %v1734
        %v1736 = vpop.f32.mrb[0].mxu0
        %v1737 = vpop.f32.mrb[0].mxu0
        %v1738 = vadd.f32 0.0, %v1737
        %v1739 = vpop.f32.mrb[0].mxu0
        %1740 = vmatprep.mubr.bf16.mxu0 %v1298
        %1741 = vmatmul.mubr.bf16.gmra.mrb[0].mxu0 %v1447
        %v1742 = vpop.f32.mrb[0].mxu0
        %v1743 = vadd.f32 0.0, %v1742
        %v1744 = vpop.f32.mrb[0].mxu0
        %v1745 = vpop.f32.mrb[0].mxu0
        %v1746 = vadd.f32 0.0, %v1745
        %v1747 = vpop.f32.mrb[0].mxu0
        %1748 = vmatprep.mubr.bf16.mxu0 %v1299
        %1749 = vmatmul.mubr.bf16.gmra.mrb[0].mxu0 %v1448
        %v1750 = vpop.f32.mrb[0].mxu0
        %v1751 = vadd.f32 0.0, %v1750
        %v1752 = vpop.f32.mrb[0].mxu0
        %v1753 = vpop.f32.mrb[0].mxu0
        %v1754 = vadd.f32 0.0, %v1753
        %v1755 = vpop.f32.mrb[0].mxu0
        %1756 = vmatprep.mubr.bf16.mxu0 %v1300
        %1757 = vmatmul.mubr.bf16.gmra.mrb[0].mxu0 %v1449
        %v1758 = vpop.f32.mrb[0].mxu0
        %v1759 = vadd.f32 0.0, %v1758
        %v1760 = vpop.f32.mrb[0].mxu0
        %v1761 = vpop.f32.mrb[0].mxu0
        %v1762 = vadd.f32 0.0, %v1761
        %v1763 = vpop.f32.mrb[0].mxu0
        %1764 = vmatprep.mubr.bf16.mxu0 %v1301
        %1765 = vmatmul.mubr.bf16.gmra.mrb[0].mxu0 %v1450
        %v1766 = vpop.f32.mrb[0].mxu0
        %v1767 = vadd.f32 0.0, %v1766
        %v1768 = vpop.f32.mrb[0].mxu0
        %v1769 = vpop.f32.mrb[0].mxu0
        %v1770 = vadd.f32 0.0, %v1769
        %v1771 = vpop.f32.mrb[0].mxu0
        %1772 = vmatprep.mubr.bf16.mxu0 %v1302
        %1773 = vmatmul.mubr.bf16.gmra.mrb[0].mxu0 %v1451
        %v1774 = vpop.f32.mrb[0].mxu0
        %v1775 = vadd.f32 0.0, %v1774
        %v1776 = vpop.f32.mrb[0].mxu0
        %v1777 = vpop.f32.mrb[0].mxu0
        %v1778 = vadd.f32 0.0, %v1777
        %v1779 = vpop.f32.mrb[0].mxu0
        %1780 = vmatprep.mubr.bf16.mxu0 %v1303
        %1781 = vmatmul.mubr.bf16.gmra.mrb[0].mxu0 %v1452
        %v1782 = vpop.f32.mrb[0].mxu0
        %v1783 = vadd.f32 0.0, %v1782
        %v1784 = vpop.f32.mrb[0].mxu0
        %v1785 = vpop.f32.mrb[0].mxu0
        %v1786 = vadd.f32 0.0, %v1785
        %v1787 = vpop.f32.mrb[0].mxu0
        %1788 = vmatprep.mubr.bf16.mxu0 %v1304
        %1789 = vmatmul.mubr.bf16.gmra.mrb[0].mxu0 %v1453
        %v1790 = vpop.f32.mrb[0].mxu0
        %v1791 = vadd.f32 0.0, %v1790
        %v1792 = vpop.f32.mrb[0].mxu0
        %v1793 = vpop.f32.mrb[0].mxu0
        %v1794 = vadd.f32 0.0, %v1793
        %v1795 = vpop.f32.mrb[0].mxu0
        %1796 = vmatprep.mubr.bf16.mxu0 %v1305
        %1797 = vmatmul.mubr.bf16.gmra.mrb[0].mxu0 %v1454
        %v1798 = vpop.f32.mrb[0].mxu0
        %v1799 = vadd.f32 0.0, %v1798
        %v1800 = vpop.f32.mrb[0].mxu0
        %v1801 = vpop.f32.mrb[0].mxu0
        %v1802 = vadd.f32 0.0, %v1801
        %v1803 = vpop.f32.mrb[0].mxu0
        %1804 = vmatprep.mubr.bf16.mxu0 %v1306
        %1805 = vmatmul.mubr.bf16.gmra.mrb[0].mxu0 %v1455
        %v1806 = vpop.f32.mrb[0].mxu0
        %v1807 = vadd.f32 0.0, %v1806
        %v1808 = vpop.f32.mrb[0].mxu0
        %v1809 = vpop.f32.mrb[0].mxu0
        %v1810 = vadd.f32 0.0, %v1809
        %v1811 = vpop.f32.mrb[0].mxu0
        %1812 = vmatprep.mubr.bf16.mxu0 %v1307
        %1813 = vmatmul.mubr.bf16.gmra.mrb[0].mxu0 %v1456
        %v1814 = vpop.f32.mrb[0].mxu0
        %v1815 = vadd.f32 0.0, %v1814
        %v1816 = vpop.f32.mrb[0].mxu0
        %v1817 = vpop.f32.mrb[0].mxu0
        %v1818 = vadd.f32 0.0, %v1817
        %v1819 = vpop.f32.mrb[0].mxu0
        %1820 = vmatprep.mubr.bf16.mxu0 %v1458
        %1821 = vmatmul.mubr.bf16.gmra.mrb[0].mxu0 %v1457
        %v1822 = vpop.f32.mrb[0].mxu0
        %v1823 = vadd.f32 0.0, %v1822
        %v1824 = vpop.f32.mrb[0].mxu0
        %v1825 = vpop.f32.mrb[0].mxu0
        %v1826 = vadd.f32 0.0, %v1825
        %v1827 = vpop.f32.mrb[0].mxu0
        %1828 = vdwg.mxu0
        %1829 = vmatprep.subr.bf16.mxu0 0
        %1830 = vmatpush1.bf16.msra.mxu0 %v1636
        %1831 = vmatprep.subr.bf16.mxu0 0
        %1832 = vmatpush1.bf16.msra.mxu0 %v1637
        %1833 = vmatprep.subr.bf16.mxu0 0
        %1834 = vmatpush1.bf16.msra.mxu0 %v1638
        %1835 = vmatprep.subr.bf16.mxu0 0
        %1836 = vmatpush1.bf16.msra.mxu0 %v1639
        %1837 = vmatprep.subr.bf16.mxu0 0
        %1838 = vmatpush1.bf16.msra.mxu0 %v1640
        %1839 = vmatprep.subr.bf16.mxu0 0
        %1840 = vmatpush1.bf16.msra.mxu0 %v1641
        %1841 = vmatprep.subr.bf16.mxu0 0
        %1842 = vmatpush1.bf16.msra.mxu0 %v1642
        %1843 = vmatprep.subr.bf16.mxu0 0
        %1844 = vmatpush1.bf16.msra.mxu0 %v1643
        %1845 = vmatprep.subr.bf16.mxu0 0
        %1846 = vmatpush1.bf16.msra.mxu0 0
        %1847 = vmatprep.subr.bf16.mxu0 0
        %1848 = vmatpush1.bf16.msra.mxu0 0
        %1849 = vmatprep.subr.bf16.mxu0 0
        %1850 = vmatpush1.bf16.msra.mxu0 0
        %1851 = vmatprep.subr.bf16.mxu0 0
        %1852 = vmatpush1.bf16.msra.mxu0 0
        %1853 = vmatprep.subr.bf16.mxu0 0
        %1854 = vmatpush1.bf16.msra.mxu0 0
        %1855 = vmatprep.subr.bf16.mxu0 0
        %1856 = vmatpush1.bf16.msra.mxu0 0
        %1857 = vmatprep.subr.bf16.mxu0 0
        %1858 = vmatpush1.bf16.msra.mxu0 0
        %1859 = vmatprep.subr.bf16.mxu0 0
        %1860 = vmatpush1.bf16.msra.mxu0 0
        %1861 = vmatprep.mubr.bf16.mxu0 0
        %1862 = vmatmul.mubr.bf16.gmra.mrb[0].mxu0 %v1459
        %v1863 = vpop.f32.mrb[0].mxu0
        %v1864 = vadd.f32 %v1703, %v1863
        %v1865 = vpop.f32.mrb[0].mxu0
        %v1866 = vpop.f32.mrb[0].mxu0
        %v1867 = vadd.f32 %v1706, %v1866
        %v1868 = vpop.f32.mrb[0].mxu0
        %1869 = vmatprep.mubr.bf16.mxu0 0
        %1870 = vmatmul.mubr.bf16.gmra.mrb[0].mxu0 %v1460
        %v1871 = vpop.f32.mrb[0].mxu0
        %v1872 = vadd.f32 %v1711, %v1871
        %v1873 = vpop.f32.mrb[0].mxu0
        %v1874 = vpop.f32.mrb[0].mxu0
        %v1875 = vadd.f32 %v1714, %v1874
        %v1876 = vpop.f32.mrb[0].mxu0
        %1877 = vmatprep.mubr.bf16.mxu0 0
        %1878 = vmatmul.mubr.bf16.gmra.mrb[0].mxu0 %v1461
        %v1879 = vpop.f32.mrb[0].mxu0
        %v1880 = vadd.f32 %v1719, %v1879
        %v1881 = vpop.f32.mrb[0].mxu0
        %v1882 = vpop.f32.mrb[0].mxu0
        %v1883 = vadd.f32 %v1722, %v1882
        %v1884 = vpop.f32.mrb[0].mxu0
        %1885 = vmatprep.mubr.bf16.mxu0 0
        %1886 = vmatmul.mubr.bf16.gmra.mrb[0].mxu0 %v1462
        %v1887 = vpop.f32.mrb[0].mxu0
        %v1888 = vadd.f32 %v1727, %v1887
        %v1889 = vpop.f32.mrb[0].mxu0
        %v1890 = vpop.f32.mrb[0].mxu0
        %v1891 = vadd.f32 %v1730, %v1890
        %v1892 = vpop.f32.mrb[0].mxu0
        %1893 = vmatprep.mubr.bf16.mxu0 0
        %1894 = vmatmul.mubr.bf16.gmra.mrb[0].mxu0 %v1463
        %v1895 = vpop.f32.mrb[0].mxu0
        %v1896 = vadd.f32 %v1735, %v1895
        %v1897 = vpop.f32.mrb[0].mxu0
        %v1898 = vpop.f32.mrb[0].mxu0
        %v1899 = vadd.f32 %v1738, %v1898
        %v1900 = vpop.f32.mrb[0].mxu0
        %1901 = vmatprep.mubr.bf16.mxu0 0
        %1902 = vmatmul.mubr.bf16.gmra.mrb[0].mxu0 %v1464
        %v1903 = vpop.f32.mrb[0].mxu0
        %v1904 = vadd.f32 %v1743, %v1903
        %v1905 = vpop.f32.mrb[0].mxu0
        %v1906 = vpop.f32.mrb[0].mxu0
        %v1907 = vadd.f32 %v1746, %v1906
        %v1908 = vpop.f32.mrb[0].mxu0
        %1909 = vmatprep.mubr.bf16.mxu0 0
        %1910 = vmatmul.mubr.bf16.gmra.mrb[0].mxu0 %v1465
        %v1911 = vpop.f32.mrb[0].mxu0
        %v1912 = vadd.f32 %v1751, %v1911
        %v1913 = vpop.f32.mrb[0].mxu0
        %v1914 = vpop.f32.mrb[0].mxu0
        %v1915 = vadd.f32 %v1754, %v1914
        %v1916 = vpop.f32.mrb[0].mxu0
        %1917 = vmatprep.mubr.bf16.mxu0 0
        %1918 = vmatmul.mubr.bf16.gmra.mrb[0].mxu0 %v1466
        %v1919 = vpop.f32.mrb[0].mxu0
        %v1920 = vadd.f32 %v1759, %v1919
        %v1921 = vpop.f32.mrb[0].mxu0
        %v1922 = vpop.f32.mrb[0].mxu0
        %v1923 = vadd.f32 %v1762, %v1922
        %v1924 = vpop.f32.mrb[0].mxu0
        %1925 = vmatprep.mubr.bf16.mxu0 0
        %1926 = vmatmul.mubr.bf16.gmra.mrb[0].mxu0 %v1467
        %v1927 = vpop.f32.mrb[0].mxu0
        %v1928 = vadd.f32 %v1767, %v1927
        %v1929 = vpop.f32.mrb[0].mxu0
        %v1930 = vpop.f32.mrb[0].mxu0
        %v1931 = vadd.f32 %v1770, %v1930
        %v1932 = vpop.f32.mrb[0].mxu0
        %1933 = vmatprep.mubr.bf16.mxu0 0
        %1934 = vmatmul.mubr.bf16.gmra.mrb[0].mxu0 %v1468
        %v1935 = vpop.f32.mrb[0].mxu0
        %v1936 = vadd.f32 %v1775, %v1935
        %v1937 = vpop.f32.mrb[0].mxu0
        %v1938 = vpop.f32.mrb[0].mxu0
        %v1939 = vadd.f32 %v1778, %v1938
        %v1940 = vpop.f32.mrb[0].mxu0
        %1941 = vmatprep.mubr.bf16.mxu0 0
        %1942 = vmatmul.mubr.bf16.gmra.mrb[0].mxu0 %v1469
        %v1943 = vpop.f32.mrb[0].mxu0
        %v1944 = vadd.f32 %v1783, %v1943
        %v1945 = vpop.f32.mrb[0].mxu0
        %v1946 = vpop.f32.mrb[0].mxu0
        %v1947 = vadd.f32 %v1786, %v1946
        %v1948 = vpop.f32.mrb[0].mxu0
        %1949 = vmatprep.mubr.bf16.mxu0 0
        %1950 = vmatmul.mubr.bf16.gmra.mrb[0].mxu0 %v1470
        %v1951 = vpop.f32.mrb[0].mxu0
        %v1952 = vadd.f32 %v1791, %v1951
        %v1953 = vpop.f32.mrb[0].mxu0
        %v1954 = vpop.f32.mrb[0].mxu0
        %v1955 = vadd.f32 %v1794, %v1954
        %v1956 = vpop.f32.mrb[0].mxu0
        %1957 = vmatprep.mubr.bf16.mxu0 0
        %1958 = vmatmul.mubr.bf16.gmra.mrb[0].mxu0 %v1471
        %v1959 = vpop.f32.mrb[0].mxu0
        %v1960 = vadd.f32 %v1799, %v1959
        %v1961 = vpop.f32.mrb[0].mxu0
        %v1962 = vpop.f32.mrb[0].mxu0
        %v1963 = vadd.f32 %v1802, %v1962
        %v1964 = vpop.f32.mrb[0].mxu0
        %1965 = vmatprep.mubr.bf16.mxu0 0
        %1966 = vmatmul.mubr.bf16.gmra.mrb[0].mxu0 %v1472
        %v1967 = vpop.f32.mrb[0].mxu0
        %v1968 = vadd.f32 %v1807, %v1967
        %v1969 = vpop.f32.mrb[0].mxu0
        %v1970 = vpop.f32.mrb[0].mxu0
        %v1971 = vadd.f32 %v1810, %v1970
        %v1972 = vpop.f32.mrb[0].mxu0
        %1973 = vmatprep.mubr.bf16.mxu0 0
        %1974 = vmatmul.mubr.bf16.gmra.mrb[0].mxu0 %v1473
        %v1975 = vpop.f32.mrb[0].mxu0
        %v1976 = vadd.f32 %v1815, %v1975
        %v1977 = vpop.f32.mrb[0].mxu0
        %v1978 = vpop.f32.mrb[0].mxu0
        %v1979 = vadd.f32 %v1818, %v1978
        %v1980 = vpop.f32.mrb[0].mxu0
        %1981 = vmatprep.mubr.bf16.mxu0 0
        %1982 = vmatmul.mubr.bf16.gmra.mrb[0].mxu0 %v1474
        %v1983 = vpop.f32.mrb[0].mxu0
        %v1984 = vadd.f32 %v1823, %v1983
        %v1985 = vpop.f32.mrb[0].mxu0
        %v1986 = vpop.f32.mrb[0].mxu0
        %v1987 = vadd.f32 %v1826, %v1986
        %v1988 = vpop.f32.mrb[0].mxu0
        %1989 = vdwg.mxu0
        %v2038 = vunpack.c.l.b16 %v1324
        %v2039 = vunpack.c.l.b16 %v1325
        %v2040 = vunpack.c.l.b16 %v1326
        %v2041 = vunpack.c.l.b16 %v1327
        %v2042 = vunpack.c.l.b16 %v1328
        %v2043 = vunpack.c.l.b16 %v1329
        %v2044 = vunpack.c.l.b16 %v1330
        %v2045 = vunpack.c.l.b16 %v1331
        %v2046 = vunpack.c.l.b16 %v1332
        %v2047 = vunpack.c.l.b16 %v1333
        %v2048 = vunpack.c.l.b16 %v1334
        %v2049 = vunpack.c.l.b16 %v1335
        %v2050 = vunpack.c.l.b16 %v1336
        %v2051 = vunpack.c.l.b16 %v1337
        %v2052 = vunpack.c.l.b16 %v1338
        %v2053 = vunpack.c.l.b16 %v1339
        %v2054 = vunpack.c.l.b16 %v1340
        %v2055 = vunpack.c.l.b16 %v1341
        %v2056 = vunpack.c.l.b16 %v1342
        %v2057 = vunpack.c.l.b16 %v1343
        %v2058 = vunpack.c.l.b16 %v1344
        %v2059 = vunpack.c.l.b16 %v1345
        %v2060 = vunpack.c.l.b16 %v1346
        %v2061 = vunpack.c.l.b16 %v1347
        %v2062 = vunpack.c.l.b16 %v1348
        %v2063 = vunpack.c.l.b16 %v1349
        %v2064 = vunpack.c.l.b16 %v1350
        %v2065 = vunpack.c.l.b16 %v1351
        %v2066 = vunpack.c.l.b16 %v1352
        %v2067 = vunpack.c.l.b16 %v1353
        %v2068 = vunpack.c.l.b16 %v1354
        %v2069 = vunpack.c.l.b16 %v1355
        %v2070 = vunpack.c.l.b16 %v1356
        %v2071 = vunpack.c.l.b16 %v1357
        %v2072 = vunpack.c.l.b16 %v1358
        %v2073 = vunpack.c.l.b16 %v1359
        %v2074 = vunpack.c.l.b16 %v1360
        %v2075 = vunpack.c.l.b16 %v1361
        %v2076 = vunpack.c.l.b16 %v1362
        %v2077 = vunpack.c.l.b16 %v1363
        %v2078 = vunpack.c.l.b16 %v1364
        %v2079 = vunpack.c.l.b16 %v1365
        %v2080 = vunpack.c.l.b16 %v1366
        %v2081 = vunpack.c.l.b16 %v1367
        %v2082 = vunpack.c.l.b16 %v1368
        %v2083 = vunpack.c.l.b16 %v1369
        %v2084 = vunpack.c.l.b16 %v1370
        %v2085 = vunpack.c.l.b16 %v1371
        %v2086 = vpack.c.b16 %v2039, %v2038
        %v2087 = vpack.c.b16 %v2041, %v2040
        %v2088 = vpack.c.b16 %v2043, %v2042
        %v2089 = vpack.c.b16 %v2045, %v2044
        %v2090 = vpack.c.b16 %v2047, %v2046
        %v2091 = vpack.c.b16 %v2049, %v2048
        %v2092 = vpack.c.b16 %v2051, %v2050
        %v2093 = vpack.c.b16 %v2053, %v2052
        %v2094 = vpack.c.b16 %v2055, %v2054
        %v2095 = vpack.c.b16 %v2057, %v2056
        %v2096 = vpack.c.b16 %v2059, %v2058
        %v2097 = vpack.c.b16 %v2061, %v2060
        %v2098 = vpack.c.b16 %v2063, %v2062
        %v2099 = vpack.c.b16 %v2065, %v2064
        %v2100 = vpack.c.b16 %v2067, %v2066
        %v2101 = vpack.c.b16 %v2069, %v2068
        %v2102 = vpack.c.b16 %v2071, %v2070
        %v2103 = vpack.c.b16 %v2073, %v2072
        %v2104 = vpack.c.b16 %v2075, %v2074
        %v2105 = vpack.c.b16 %v2077, %v2076
        %v2106 = vpack.c.b16 %v2079, %v2078
        %v2107 = vpack.c.b16 %v2081, %v2080
        %v2108 = vpack.c.b16 %v2083, %v2082
        %v2109 = vpack.c.b16 %v2085, %v2084
        %2134 = vmatprep.subr.bf16.mxu0 0
        %2135 = vmatpush1.bf16.msra.mxu0 %v2086
        %2136 = vmatprep.subr.bf16.mxu0 0
        %2137 = vmatpush1.bf16.msra.mxu0 %v2087
        %2138 = vmatprep.subr.bf16.mxu0 0
        %2139 = vmatpush1.bf16.msra.mxu0 %v2088
        %2140 = vmatprep.subr.bf16.mxu0 0
        %2141 = vmatpush1.bf16.msra.mxu0 %v2089
        %2142 = vmatprep.subr.bf16.mxu0 0
        %2143 = vmatpush1.bf16.msra.mxu0 %v2090
        %2144 = vmatprep.subr.bf16.mxu0 0
        %2145 = vmatpush1.bf16.msra.mxu0 %v2091
        %2146 = vmatprep.subr.bf16.mxu0 0
        %2147 = vmatpush1.bf16.msra.mxu0 %v2092
        %2148 = vmatprep.subr.bf16.mxu0 0
        %2149 = vmatpush1.bf16.msra.mxu0 %v2093
        %2150 = vmatprep.subr.bf16.mxu0 0
        %2151 = vmatpush1.bf16.msra.mxu0 %v2094
        %2152 = vmatprep.subr.bf16.mxu0 0
        %2153 = vmatpush1.bf16.msra.mxu0 %v2095
        %2154 = vmatprep.subr.bf16.mxu0 0
        %2155 = vmatpush1.bf16.msra.mxu0 %v2096
        %2156 = vmatprep.subr.bf16.mxu0 0
        %2157 = vmatpush1.bf16.msra.mxu0 %v2097
        %2158 = vmatprep.subr.bf16.mxu0 0
        %2159 = vmatpush1.bf16.msra.mxu0 %v2098
        %2160 = vmatprep.subr.bf16.mxu0 0
        %2161 = vmatpush1.bf16.msra.mxu0 %v2099
        %2162 = vmatprep.subr.bf16.mxu0 0
        %2163 = vmatpush1.bf16.msra.mxu0 %v2100
        %2164 = vmatprep.subr.bf16.mxu0 0
        %2165 = vmatpush1.bf16.msra.mxu0 %v2101
        %2166 = vmatprep.mubr.bf16.mxu0 %v1292
        %2167 = vmatmul.mubr.bf16.gmra.mrb[0].mxu0 %v1276
        %v2168 = vpop.f32.mrb[0].mxu0
        %v2169 = vadd.f32 %v1864, %v2168
        %v2170 = vpop.f32.mrb[0].mxu0
        %v2171 = vpop.f32.mrb[0].mxu0
        %v2172 = vadd.f32 %v1867, %v2171
        %v2173 = vpop.f32.mrb[0].mxu0
        %2174 = vmatprep.mubr.bf16.mxu0 %v1293
        %2175 = vmatmul.mubr.bf16.gmra.mrb[0].mxu0 %v1277
        %v2176 = vpop.f32.mrb[0].mxu0
        %v2177 = vadd.f32 %v1872, %v2176
        %v2178 = vpop.f32.mrb[0].mxu0
        %v2179 = vpop.f32.mrb[0].mxu0
        %v2180 = vadd.f32 %v1875, %v2179
        %v2181 = vpop.f32.mrb[0].mxu0
        %2182 = vmatprep.mubr.bf16.mxu0 %v1294
        %2183 = vmatmul.mubr.bf16.gmra.mrb[0].mxu0 %v1278
        %v2184 = vpop.f32.mrb[0].mxu0
        %v2185 = vadd.f32 %v1880, %v2184
        %v2186 = vpop.f32.mrb[0].mxu0
        %v2187 = vpop.f32.mrb[0].mxu0
        %v2188 = vadd.f32 %v1883, %v2187
        %v2189 = vpop.f32.mrb[0].mxu0
        %2190 = vmatprep.mubr.bf16.mxu0 %v1295
        %2191 = vmatmul.mubr.bf16.gmra.mrb[0].mxu0 %v1279
        %v2192 = vpop.f32.mrb[0].mxu0
        %v2193 = vadd.f32 %v1888, %v2192
        %v2194 = vpop.f32.mrb[0].mxu0
        %v2195 = vpop.f32.mrb[0].mxu0
        %v2196 = vadd.f32 %v1891, %v2195
        %v2197 = vpop.f32.mrb[0].mxu0
        %2198 = vmatprep.mubr.bf16.mxu0 %v1296
        %2199 = vmatmul.mubr.bf16.gmra.mrb[0].mxu0 %v1280
        %v2200 = vpop.f32.mrb[0].mxu0
        %v2201 = vadd.f32 %v1896, %v2200
        %v2202 = vpop.f32.mrb[0].mxu0
        %v2203 = vpop.f32.mrb[0].mxu0
        %v2204 = vadd.f32 %v1899, %v2203
        %v2205 = vpop.f32.mrb[0].mxu0
        %2206 = vmatprep.mubr.bf16.mxu0 %v1297
        %2207 = vmatmul.mubr.bf16.gmra.mrb[0].mxu0 %v1281
        %v2208 = vpop.f32.mrb[0].mxu0
        %v2209 = vadd.f32 %v1904, %v2208
        %v2210 = vpop.f32.mrb[0].mxu0
        %v2211 = vpop.f32.mrb[0].mxu0
        %v2212 = vadd.f32 %v1907, %v2211
        %v2213 = vpop.f32.mrb[0].mxu0
        %2214 = vmatprep.mubr.bf16.mxu0 %v1298
        %2215 = vmatmul.mubr.bf16.gmra.mrb[0].mxu0 %v1282
        %v2216 = vpop.f32.mrb[0].mxu0
        %v2217 = vadd.f32 %v1912, %v2216
        %v2218 = vpop.f32.mrb[0].mxu0
        %v2219 = vpop.f32.mrb[0].mxu0
        %v2220 = vadd.f32 %v1915, %v2219
        %v2221 = vpop.f32.mrb[0].mxu0
        %2222 = vmatprep.mubr.bf16.mxu0 %v1299
        %2223 = vmatmul.mubr.bf16.gmra.mrb[0].mxu0 %v1283
        %v2224 = vpop.f32.mrb[0].mxu0
        %v2225 = vadd.f32 %v1920, %v2224
        %v2226 = vpop.f32.mrb[0].mxu0
        %v2227 = vpop.f32.mrb[0].mxu0
        %v2228 = vadd.f32 %v1923, %v2227
        %v2229 = vpop.f32.mrb[0].mxu0
        %2230 = vmatprep.mubr.bf16.mxu0 %v1300
        %2231 = vmatmul.mubr.bf16.gmra.mrb[0].mxu0 %v1284
        %v2232 = vpop.f32.mrb[0].mxu0
        %v2233 = vadd.f32 %v1928, %v2232
        %v2234 = vpop.f32.mrb[0].mxu0
        %v2235 = vpop.f32.mrb[0].mxu0
        %v2236 = vadd.f32 %v1931, %v2235
        %v2237 = vpop.f32.mrb[0].mxu0
        %2238 = vmatprep.mubr.bf16.mxu0 %v1301
        %2239 = vmatmul.mubr.bf16.gmra.mrb[0].mxu0 %v1285
        %v2240 = vpop.f32.mrb[0].mxu0
        %v2241 = vadd.f32 %v1936, %v2240
        %v2242 = vpop.f32.mrb[0].mxu0
        %v2243 = vpop.f32.mrb[0].mxu0
        %v2244 = vadd.f32 %v1939, %v2243
        %v2245 = vpop.f32.mrb[0].mxu0
        %2246 = vmatprep.mubr.bf16.mxu0 %v1302
        %2247 = vmatmul.mubr.bf16.gmra.mrb[0].mxu0 %v1286
        %v2248 = vpop.f32.mrb[0].mxu0
        %v2249 = vadd.f32 %v1944, %v2248
        %v2250 = vpop.f32.mrb[0].mxu0
        %v2251 = vpop.f32.mrb[0].mxu0
        %v2252 = vadd.f32 %v1947, %v2251
        %v2253 = vpop.f32.mrb[0].mxu0
        %2254 = vmatprep.mubr.bf16.mxu0 %v1303
        %2255 = vmatmul.mubr.bf16.gmra.mrb[0].mxu0 %v1287
        %v2256 = vpop.f32.mrb[0].mxu0
        %v2257 = vadd.f32 %v1952, %v2256
        %v2258 = vpop.f32.mrb[0].mxu0
        %v2259 = vpop.f32.mrb[0].mxu0
        %v2260 = vadd.f32 %v1955, %v2259
        %v2261 = vpop.f32.mrb[0].mxu0
        %2262 = vmatprep.mubr.bf16.mxu0 %v1304
        %2263 = vmatmul.mubr.bf16.gmra.mrb[0].mxu0 %v1288
        %v2264 = vpop.f32.mrb[0].mxu0
        %v2265 = vadd.f32 %v1960, %v2264
        %v2266 = vpop.f32.mrb[0].mxu0
        %v2267 = vpop.f32.mrb[0].mxu0
        %v2268 = vadd.f32 %v1963, %v2267
        %v2269 = vpop.f32.mrb[0].mxu0
        %2270 = vmatprep.mubr.bf16.mxu0 %v1305
        %2271 = vmatmul.mubr.bf16.gmra.mrb[0].mxu0 %v1289
        %v2272 = vpop.f32.mrb[0].mxu0
        %v2273 = vadd.f32 %v1968, %v2272
        %v2274 = vpop.f32.mrb[0].mxu0
        %v2275 = vpop.f32.mrb[0].mxu0
        %v2276 = vadd.f32 %v1971, %v2275
        %v2277 = vpop.f32.mrb[0].mxu0
        %2278 = vmatprep.mubr.bf16.mxu0 %v1306
        %2279 = vmatmul.mubr.bf16.gmra.mrb[0].mxu0 %v1290
        %v2280 = vpop.f32.mrb[0].mxu0
        %v2281 = vadd.f32 %v1976, %v2280
        %v2282 = vpop.f32.mrb[0].mxu0
        %v2283 = vpop.f32.mrb[0].mxu0
        %v2284 = vadd.f32 %v1979, %v2283
        %v2285 = vpop.f32.mrb[0].mxu0
        %2286 = vmatprep.mubr.bf16.mxu0 %v1307
        %2287 = vmatmul.mubr.bf16.gmra.mrb[0].mxu0 %v1291
        %v2288 = vpop.f32.mrb[0].mxu0
        %v2289 = vadd.f32 %v1984, %v2288
        %v2290 = vpop.f32.mrb[0].mxu0
        %v2291 = vpop.f32.mrb[0].mxu0
        %v2292 = vadd.f32 %v1987, %v2291
        %v2293 = vpop.f32.mrb[0].mxu0
        %2294 = vdwg.mxu0
        %2295 = vmatprep.subr.bf16.mxu0 0
        %2296 = vmatpush1.bf16.msra.mxu0 %v2102
        %2297 = vmatprep.subr.bf16.mxu0 0
        %2298 = vmatpush1.bf16.msra.mxu0 %v2103
        %2299 = vmatprep.subr.bf16.mxu0 0
        %2300 = vmatpush1.bf16.msra.mxu0 %v2104
        %2301 = vmatprep.subr.bf16.mxu0 0
        %2302 = vmatpush1.bf16.msra.mxu0 %v2105
        %2303 = vmatprep.subr.bf16.mxu0 0
        %2304 = vmatpush1.bf16.msra.mxu0 %v2106
        %2305 = vmatprep.subr.bf16.mxu0 0
        %2306 = vmatpush1.bf16.msra.mxu0 %v2107
        %2307 = vmatprep.subr.bf16.mxu0 0
        %2308 = vmatpush1.bf16.msra.mxu0 %v2108
        %2309 = vmatprep.subr.bf16.mxu0 0
        %2310 = vmatpush1.bf16.msra.mxu0 %v2109
        %2311 = vmatprep.subr.bf16.mxu0 0
        %2312 = vmatpush1.bf16.msra.mxu0 0
        %2313 = vmatprep.subr.bf16.mxu0 0
        %2314 = vmatpush1.bf16.msra.mxu0 0
        %2315 = vmatprep.subr.bf16.mxu0 0
        %2316 = vmatpush1.bf16.msra.mxu0 0
        %2317 = vmatprep.subr.bf16.mxu0 0
        %2318 = vmatpush1.bf16.msra.mxu0 0
        %2319 = vmatprep.subr.bf16.mxu0 0
        %2320 = vmatpush1.bf16.msra.mxu0 0
        %2321 = vmatprep.subr.bf16.mxu0 0
        %2322 = vmatpush1.bf16.msra.mxu0 0
        %2323 = vmatprep.subr.bf16.mxu0 0
        %2324 = vmatpush1.bf16.msra.mxu0 0
        %2325 = vmatprep.subr.bf16.mxu0 0
        %2326 = vmatpush1.bf16.msra.mxu0 0
        %2327 = vmatprep.mubr.bf16.mxu0 0
        %2328 = vmatmul.mubr.bf16.gmra.mrb[0].mxu0 %v1308
        %v2329 = vpop.f32.mrb[0].mxu0
        %v2330 = vadd.f32 %v2169, %v2329
        %v2331 = vpop.f32.mrb[0].mxu0
        %v2332 = vpop.f32.mrb[0].mxu0
        %v2333 = vadd.f32 %v2172, %v2332
        %v2334 = vpop.f32.mrb[0].mxu0
        %2335 = vmatprep.mubr.bf16.mxu0 0
        %2336 = vmatmul.mubr.bf16.gmra.mrb[0].mxu0 %v1309
        %v2337 = vpop.f32.mrb[0].mxu0
        %v2338 = vadd.f32 %v2177, %v2337
        %v2339 = vpop.f32.mrb[0].mxu0
        %v2340 = vpop.f32.mrb[0].mxu0
        %v2341 = vadd.f32 %v2180, %v2340
        %v2342 = vpop.f32.mrb[0].mxu0
        %2343 = vmatprep.mubr.bf16.mxu0 0
        %2344 = vmatmul.mubr.bf16.gmra.mrb[0].mxu0 %v1310
        %v2345 = vpop.f32.mrb[0].mxu0
        %v2346 = vadd.f32 %v2185, %v2345
        %v2347 = vpop.f32.mrb[0].mxu0
        %v2348 = vpop.f32.mrb[0].mxu0
        %v2349 = vadd.f32 %v2188, %v2348
        %v2350 = vpop.f32.mrb[0].mxu0
        %2351 = vmatprep.mubr.bf16.mxu0 0
        %2352 = vmatmul.mubr.bf16.gmra.mrb[0].mxu0 %v1311
        %v2353 = vpop.f32.mrb[0].mxu0
        %v2354 = vadd.f32 %v2193, %v2353
        %v2355 = vpop.f32.mrb[0].mxu0
        %v2356 = vpop.f32.mrb[0].mxu0
        %v2357 = vadd.f32 %v2196, %v2356
        %v2358 = vpop.f32.mrb[0].mxu0
        %2359 = vmatprep.mubr.bf16.mxu0 0
        %2360 = vmatmul.mubr.bf16.gmra.mrb[0].mxu0 %v1312
        %v2361 = vpop.f32.mrb[0].mxu0
        %v2362 = vadd.f32 %v2201, %v2361
        %v2363 = vpop.f32.mrb[0].mxu0
        %v2364 = vpop.f32.mrb[0].mxu0
        %v2365 = vadd.f32 %v2204, %v2364
        %v2366 = vpop.f32.mrb[0].mxu0
        %2367 = vmatprep.mubr.bf16.mxu0 0
        %2368 = vmatmul.mubr.bf16.gmra.mrb[0].mxu0 %v1313
        %v2369 = vpop.f32.mrb[0].mxu0
        %v2370 = vadd.f32 %v2209, %v2369
        %v2371 = vpop.f32.mrb[0].mxu0
        %v2372 = vpop.f32.mrb[0].mxu0
        %v2373 = vadd.f32 %v2212, %v2372
        %v2374 = vpop.f32.mrb[0].mxu0
        %2375 = vmatprep.mubr.bf16.mxu0 0
        %2376 = vmatmul.mubr.bf16.gmra.mrb[0].mxu0 %v1314
        %v2377 = vpop.f32.mrb[0].mxu0
        %v2378 = vadd.f32 %v2217, %v2377
        %v2379 = vpop.f32.mrb[0].mxu0
        %v2380 = vpop.f32.mrb[0].mxu0
        %v2381 = vadd.f32 %v2220, %v2380
        %v2382 = vpop.f32.mrb[0].mxu0
        %2383 = vmatprep.mubr.bf16.mxu0 0
        %2384 = vmatmul.mubr.bf16.gmra.mrb[0].mxu0 %v1315
        %v2385 = vpop.f32.mrb[0].mxu0
        %v2386 = vadd.f32 %v2225, %v2385
        %v2387 = vpop.f32.mrb[0].mxu0
        %v2388 = vpop.f32.mrb[0].mxu0
        %v2389 = vadd.f32 %v2228, %v2388
        %v2390 = vpop.f32.mrb[0].mxu0
        %2391 = vmatprep.mubr.bf16.mxu0 0
        %2392 = vmatmul.mubr.bf16.gmra.mrb[0].mxu0 %v1316
        %v2393 = vpop.f32.mrb[0].mxu0
        %v2394 = vadd.f32 %v2233, %v2393
        %v2395 = vpop.f32.mrb[0].mxu0
        %v2396 = vpop.f32.mrb[0].mxu0
        %v2397 = vadd.f32 %v2236, %v2396
        %v2398 = vpop.f32.mrb[0].mxu0
        %2399 = vmatprep.mubr.bf16.mxu0 0
        %2400 = vmatmul.mubr.bf16.gmra.mrb[0].mxu0 %v1317
        %v2401 = vpop.f32.mrb[0].mxu0
        %v2402 = vadd.f32 %v2241, %v2401
        %v2403 = vpop.f32.mrb[0].mxu0
        %v2404 = vpop.f32.mrb[0].mxu0
        %v2405 = vadd.f32 %v2244, %v2404
        %v2406 = vpop.f32.mrb[0].mxu0
        %2407 = vmatprep.mubr.bf16.mxu0 0
        %2408 = vmatmul.mubr.bf16.gmra.mrb[0].mxu0 %v1318
        %v2409 = vpop.f32.mrb[0].mxu0
        %v2410 = vadd.f32 %v2249, %v2409
        %v2411 = vpop.f32.mrb[0].mxu0
        %v2412 = vpop.f32.mrb[0].mxu0
        %v2413 = vadd.f32 %v2252, %v2412
        %v2414 = vpop.f32.mrb[0].mxu0
        %2415 = vmatprep.mubr.bf16.mxu0 0
        %2416 = vmatmul.mubr.bf16.gmra.mrb[0].mxu0 %v1319
        %v2417 = vpop.f32.mrb[0].mxu0
        %v2418 = vadd.f32 %v2257, %v2417
        %v2419 = vpop.f32.mrb[0].mxu0
        %v2420 = vpop.f32.mrb[0].mxu0
        %v2421 = vadd.f32 %v2260, %v2420
        %v2422 = vpop.f32.mrb[0].mxu0
        %2423 = vmatprep.mubr.bf16.mxu0 0
        %2424 = vmatmul.mubr.bf16.gmra.mrb[0].mxu0 %v1320
        %v2425 = vpop.f32.mrb[0].mxu0
        %v2426 = vadd.f32 %v2265, %v2425
        %v2427 = vpop.f32.mrb[0].mxu0
        %v2428 = vpop.f32.mrb[0].mxu0
        %v2429 = vadd.f32 %v2268, %v2428
        %v2430 = vpop.f32.mrb[0].mxu0
        %2431 = vmatprep.mubr.bf16.mxu0 0
        %2432 = vmatmul.mubr.bf16.gmra.mrb[0].mxu0 %v1321
        %v2433 = vpop.f32.mrb[0].mxu0
        %v2434 = vadd.f32 %v2273, %v2433
        %v2435 = vpop.f32.mrb[0].mxu0
        %v2436 = vpop.f32.mrb[0].mxu0
        %v2437 = vadd.f32 %v2276, %v2436
        %v2438 = vpop.f32.mrb[0].mxu0
        %2439 = vmatprep.mubr.bf16.mxu0 0
        %2440 = vmatmul.mubr.bf16.gmra.mrb[0].mxu0 %v1322
        %v2441 = vpop.f32.mrb[0].mxu0
        %v2442 = vadd.f32 %v2281, %v2441
        %v2443 = vpop.f32.mrb[0].mxu0
        %v2444 = vpop.f32.mrb[0].mxu0
        %v2445 = vadd.f32 %v2284, %v2444
        %v2446 = vpop.f32.mrb[0].mxu0
        %2447 = vmatprep.mubr.bf16.mxu0 0
        %2448 = vmatmul.mubr.bf16.gmra.mrb[0].mxu0 %v1323
        %v2449 = vpop.f32.mrb[0].mxu0
        %v2450 = vadd.f32 %v2289, %v2449
        %v2451 = vpop.f32.mrb[0].mxu0
        %v2452 = vpop.f32.mrb[0].mxu0
        %v2453 = vadd.f32 %v2292, %v2452
        %v2454 = vpop.f32.mrb[0].mxu0
        %2455 = vdwg.mxu0
        %v2456 = vld [vmem:[#allocation2 + $0x27] sm:$0xff]
        %v2457 = vld [vmem:[#allocation2 + $0x2f] sm:$0xff]
        %v2458 = vld [vmem:[#allocation2 + $0x37] sm:$0xff]
        %v2459 = vld [vmem:[#allocation2 + $0x3f] sm:$0xff]
        %v2460 = vld [vmem:[#allocation2 + $0x47] sm:$0xff]
        %v2461 = vld [vmem:[#allocation2 + $0x4f] sm:$0xff]
        %v2462 = vld [vmem:[#allocation2 + $0x57] sm:$0xff]
        %v2463 = vld [vmem:[#allocation2 + $0x5f] sm:$0xff]
        %v2464 = vld [vmem:[#allocation2 + $0x67] sm:$0xff]
        %v2465 = vld [vmem:[#allocation2 + $0x6f] sm:$0xff]
        %v2466 = vld [vmem:[#allocation2 + $0x77] sm:$0xff]
        %v2467 = vld [vmem:[#allocation2 + $0x7f] sm:$0xff]
        %v2468 = vld [vmem:[#allocation2 + $0x87] sm:$0xff]
        %v2469 = vld [vmem:[#allocation2 + $0x8f] sm:$0xff]
        %v2470 = vld [vmem:[#allocation2 + $0x97] sm:$0xff]
        %v2471 = vld [vmem:[#allocation2 + $0x9f] sm:$0xff]
        %v2472 = vld [vmem:[#allocation2 + $0xa7] sm:$0xff]
        %v2473 = vld [vmem:[#allocation2 + $0xaf] sm:$0xff]
        %v2474 = vld [vmem:[#allocation2 + $0xb7] sm:$0xff]
        %v2475 = vld [vmem:[#allocation2 + $0xbf] sm:$0xff]
        %v2476 = vld [vmem:[#allocation2 + $0xc7] sm:$0xff]
        %v2477 = vld [vmem:[#allocation2 + $0xcf] sm:$0xff]
        %v2478 = vld [vmem:[#allocation2 + $0xd7] sm:$0xff]
        %v2479 = vld [vmem:[#allocation2 + $0xdf] sm:$0xff]
        %v2480 = vld [vmem:[#allocation2 + $0xe7] sm:$0xff]
        %v2481 = vld [vmem:[#allocation2 + $0xef] sm:$0xff]
        %v2482 = vld [vmem:[#allocation2 + $0xf7] sm:$0xff]
        %v2483 = vld [vmem:[#allocation2 + $0xff] sm:$0xff]
        %v2484 = vld [vmem:[#allocation2 + $0x107] sm:$0xff]
        %v2485 = vld [vmem:[#allocation2 + $0x10f] sm:$0xff]
        %v2486 = vld [vmem:[#allocation2 + $0x117] sm:$0xff]
        %v2487 = vld [vmem:[#allocation2 + $0x11f] sm:$0xff]
        %v2488 = vsel %vm1052, 0.0, %v2456
        %v2489 = vsel %vm1053, 0.0, %v2457
        %v2490 = vsel %vm1054, 0.0, %v2458
        %v2491 = vsel %vm1055, 0.0, %v2459
        %v2492 = vsel %vm1056, 0.0, %v2460
        %v2493 = vsel %vm1057, 0.0, %v2461
        %v2494 = vsel %vm1058, 0.0, %v2462
        %v2495 = vsel %vm1059, 0.0, %v2463
        %v2496 = vsel %vm1060, 0.0, %v2464
        %v2497 = vsel %vm1061, 0.0, %v2465
        %v2498 = vsel %vm1062, 0.0, %v2466
        %v2499 = vsel %vm1063, 0.0, %v2467
        %v2500 = vsel %vm1064, 0.0, %v2468
        %v2501 = vsel %vm1065, 0.0, %v2469
        %v2502 = vsel %vm1066, 0.0, %v2470
        %v2503 = vsel %vm1067, 0.0, %v2471
        %v2504 = vsel %vm1068, 0.0, %v2472
        %v2505 = vsel %vm1069, 0.0, %v2473
        %v2506 = vsel %vm1070, 0.0, %v2474
        %v2507 = vsel %vm1071, 0.0, %v2475
        %v2508 = vsel %vm1072, 0.0, %v2476
        %v2509 = vsel %vm1073, 0.0, %v2477
        %v2510 = vsel %vm1074, 0.0, %v2478
        %v2511 = vsel %vm1075, 0.0, %v2479
        %v2512 = vsel %vm1076, 0.0, %v2480
        %v2513 = vsel %vm1077, 0.0, %v2481
        %v2514 = vsel %vm1078, 0.0, %v2482
        %v2515 = vsel %vm1079, 0.0, %v2483
        %v2516 = vsel %vm1080, 0.0, %v2484
        %v2517 = vsel %vm1081, 0.0, %v2485
        %v2518 = vsel %vm1082, 0.0, %v2486
        %v2519 = vsel %vm1083, 0.0, %v2487
        %v2520 = vld [vmem:[#allocation2 + $0x28] sm:$0xff]
        %v2521 = vld [vmem:[#allocation2 + $0x30] sm:$0xff]
        %v2522 = vld [vmem:[#allocation2 + $0x38] sm:$0xff]
        %v2523 = vld [vmem:[#allocation2 + $0x40] sm:$0xff]
        %v2524 = vld [vmem:[#allocation2 + $0x48] sm:$0xff]
        %v2525 = vld [vmem:[#allocation2 + $0x50] sm:$0xff]
        %v2526 = vld [vmem:[#allocation2 + $0x58] sm:$0xff]
        %v2527 = vld [vmem:[#allocation2 + $0x60] sm:$0xff]
        %v2528 = vld [vmem:[#allocation2 + $0x68] sm:$0xff]
        %v2529 = vld [vmem:[#allocation2 + $0x70] sm:$0xff]
        %v2530 = vld [vmem:[#allocation2 + $0x78] sm:$0xff]
        %v2531 = vld [vmem:[#allocation2 + $0x80] sm:$0xff]
        %v2532 = vld [vmem:[#allocation2 + $0x88] sm:$0xff]
        %v2533 = vld [vmem:[#allocation2 + $0x90] sm:$0xff]
        %v2534 = vld [vmem:[#allocation2 + $0x98] sm:$0xff]
        %v2535 = vld [vmem:[#allocation2 + $0xa0] sm:$0xff]
        %v2536 = vld [vmem:[#allocation2 + $0xa8] sm:$0xff]
        %v2537 = vld [vmem:[#allocation2 + $0xb0] sm:$0xff]
        %v2538 = vld [vmem:[#allocation2 + $0xb8] sm:$0xff]
        %v2539 = vld [vmem:[#allocation2 + $0xc0] sm:$0xff]
        %v2540 = vld [vmem:[#allocation2 + $0xc8] sm:$0xff]
        %v2541 = vld [vmem:[#allocation2 + $0xd0] sm:$0xff]
        %v2542 = vld [vmem:[#allocation2 + $0xd8] sm:$0xff]
        %v2543 = vld [vmem:[#allocation2 + $0xe0] sm:$0xff]
        %v2544 = vld [vmem:[#allocation2 + $0xe8] sm:$0xff]
        %v2545 = vld [vmem:[#allocation2 + $0xf0] sm:$0xff]
        %v2546 = vld [vmem:[#allocation2 + $0xf8] sm:$0xff]
        %v2547 = vld [vmem:[#allocation2 + $0x100] sm:$0xff]
        %v2548 = vld [vmem:[#allocation2 + $0x108] sm:$0xff]
        %v2549 = vld [vmem:[#allocation2 + $0x110] sm:$0xff]
        %v2550 = vld [vmem:[#allocation2 + $0x118] sm:$0xff]
        %v2551 = vld [vmem:[#allocation2 + $0x120] sm:$0xff]
        %v2552 = vld [vmem:[#allocation2 + $0x29] sm:$0xff]
        %v2553 = vld [vmem:[#allocation2 + $0x31] sm:$0xff]
        %v2554 = vld [vmem:[#allocation2 + $0x39] sm:$0xff]
        %v2555 = vld [vmem:[#allocation2 + $0x41] sm:$0xff]
        %v2556 = vld [vmem:[#allocation2 + $0x49] sm:$0xff]
        %v2557 = vld [vmem:[#allocation2 + $0x51] sm:$0xff]
        %v2558 = vld [vmem:[#allocation2 + $0x59] sm:$0xff]
        %v2559 = vld [vmem:[#allocation2 + $0x61] sm:$0xff]
        %v2560 = vld [vmem:[#allocation2 + $0x69] sm:$0xff]
        %v2561 = vld [vmem:[#allocation2 + $0x71] sm:$0xff]
        %v2562 = vld [vmem:[#allocation2 + $0x79] sm:$0xff]
        %v2563 = vld [vmem:[#allocation2 + $0x81] sm:$0xff]
        %v2564 = vld [vmem:[#allocation2 + $0x89] sm:$0xff]
        %v2565 = vld [vmem:[#allocation2 + $0x91] sm:$0xff]
        %v2566 = vld [vmem:[#allocation2 + $0x99] sm:$0xff]
        %v2567 = vld [vmem:[#allocation2 + $0xa1] sm:$0xff]
        %v2568 = vld [vmem:[#allocation2 + $0xa9] sm:$0xff]
        %v2569 = vld [vmem:[#allocation2 + $0xb1] sm:$0xff]
        %v2570 = vld [vmem:[#allocation2 + $0xb9] sm:$0xff]
        %v2571 = vld [vmem:[#allocation2 + $0xc1] sm:$0xff]
        %v2572 = vld [vmem:[#allocation2 + $0xc9] sm:$0xff]
        %v2573 = vld [vmem:[#allocation2 + $0xd1] sm:$0xff]
        %v2574 = vld [vmem:[#allocation2 + $0xd9] sm:$0xff]
        %v2575 = vld [vmem:[#allocation2 + $0xe1] sm:$0xff]
        %v2576 = vld [vmem:[#allocation2 + $0xe9] sm:$0xff]
        %v2577 = vld [vmem:[#allocation2 + $0xf1] sm:$0xff]
        %v2578 = vld [vmem:[#allocation2 + $0xf9] sm:$0xff]
        %v2579 = vld [vmem:[#allocation2 + $0x101] sm:$0xff]
        %v2580 = vld [vmem:[#allocation2 + $0x109] sm:$0xff]
        %v2581 = vld [vmem:[#allocation2 + $0x111] sm:$0xff]
        %v2582 = vld [vmem:[#allocation2 + $0x119] sm:$0xff]
        %v2583 = vld [vmem:[#allocation2 + $0x121] sm:$0xff]
        %v2584 = vsel %vm1212, 0.0, %v2552
        %v2585 = vsel %vm1213, 0.0, %v2553
        %v2586 = vsel %vm1214, 0.0, %v2554
        %v2587 = vsel %vm1215, 0.0, %v2555
        %v2588 = vsel %vm1216, 0.0, %v2556
        %v2589 = vsel %vm1217, 0.0, %v2557
        %v2590 = vsel %vm1218, 0.0, %v2558
        %v2591 = vsel %vm1219, 0.0, %v2559
        %v2592 = vsel %vm1220, 0.0, %v2560
        %v2593 = vsel %vm1221, 0.0, %v2561
        %v2594 = vsel %vm1222, 0.0, %v2562
        %v2595 = vsel %vm1223, 0.0, %v2563
        %v2596 = vsel %vm1224, 0.0, %v2564
        %v2597 = vsel %vm1225, 0.0, %v2565
        %v2598 = vsel %vm1226, 0.0, %v2566
        %v2599 = vsel %vm1227, 0.0, %v2567
        %v2600 = vsel %vm1228, 0.0, %v2568
        %v2601 = vsel %vm1229, 0.0, %v2569
        %v2602 = vsel %vm1230, 0.0, %v2570
        %v2603 = vsel %vm1231, 0.0, %v2571
        %v2604 = vsel %vm1232, 0.0, %v2572
        %v2605 = vsel %vm1233, 0.0, %v2573
        %v2606 = vsel %vm1234, 0.0, %v2574
        %v2607 = vsel %vm1235, 0.0, %v2575
        %v2608 = vsel %vm1236, 0.0, %v2576
        %v2609 = vsel %vm1237, 0.0, %v2577
        %v2610 = vsel %vm1238, 0.0, %v2578
        %v2611 = vsel %vm1239, 0.0, %v2579
        %v2612 = vsel %vm1240, 0.0, %v2580
        %v2613 = vsel %vm1241, 0.0, %v2581
        %v2614 = vsel %vm1242, 0.0, %v2582
        %v2615 = vsel %vm1243, 0.0, %v2583
        %v2616 = vpack.c.bf16 %v2489, %v2488
        %v2617 = vpack.c.bf16 %v2491, %v2490
        %v2618 = vpack.c.bf16 %v2493, %v2492
        %v2619 = vpack.c.bf16 %v2495, %v2494
        %v2620 = vpack.c.bf16 %v2497, %v2496
        %v2621 = vpack.c.bf16 %v2499, %v2498
        %v2622 = vpack.c.bf16 %v2501, %v2500
        %v2623 = vpack.c.bf16 %v2503, %v2502
        %v2624 = vpack.c.bf16 %v2505, %v2504
        %v2625 = vpack.c.bf16 %v2507, %v2506
        %v2626 = vpack.c.bf16 %v2509, %v2508
        %v2627 = vpack.c.bf16 %v2511, %v2510
        %v2628 = vpack.c.bf16 %v2513, %v2512
        %v2629 = vpack.c.bf16 %v2515, %v2514
        %v2630 = vpack.c.bf16 %v2517, %v2516
        %v2631 = vpack.c.bf16 %v2519, %v2518
        %v2632 = vpack.c.bf16 %v2521, %v2520
        %v2633 = vpack.c.bf16 %v2523, %v2522
        %v2634 = vpack.c.bf16 %v2525, %v2524
        %v2635 = vpack.c.bf16 %v2527, %v2526
        %v2636 = vpack.c.bf16 %v2529, %v2528
        %v2637 = vpack.c.bf16 %v2531, %v2530
        %v2638 = vpack.c.bf16 %v2533, %v2532
        %v2639 = vpack.c.bf16 %v2535, %v2534
        %v2640 = vpack.c.bf16 %v2537, %v2536
        %v2641 = vpack.c.bf16 %v2539, %v2538
        %v2642 = vpack.c.bf16 %v2541, %v2540
        %v2643 = vpack.c.bf16 %v2543, %v2542
        %v2644 = vpack.c.bf16 %v2545, %v2544
        %v2645 = vpack.c.bf16 %v2547, %v2546
        %v2646 = vpack.c.bf16 %v2549, %v2548
        %v2647 = vpack.c.bf16 %v2551, %v2550
        %v2648 = vpack.c.bf16 %v2585, %v2584
        %v2649 = vpack.c.bf16 %v2587, %v2586
        %v2650 = vpack.c.bf16 %v2589, %v2588
        %v2651 = vpack.c.bf16 %v2591, %v2590
        %v2652 = vpack.c.bf16 %v2593, %v2592
        %v2653 = vpack.c.bf16 %v2595, %v2594
        %v2654 = vpack.c.bf16 %v2597, %v2596
        %v2655 = vpack.c.bf16 %v2599, %v2598
        %v2656 = vpack.c.bf16 %v2601, %v2600
        %v2657 = vpack.c.bf16 %v2603, %v2602
        %v2658 = vpack.c.bf16 %v2605, %v2604
        %v2659 = vpack.c.bf16 %v2607, %v2606
        %v2660 = vpack.c.bf16 %v2609, %v2608
        %v2661 = vpack.c.bf16 %v2611, %v2610
        %v2662 = vpack.c.bf16 %v2613, %v2612
        %v2663 = vpack.c.bf16 %v2615, %v2614
        %s2664 = scalar_lea.vmem [#allocation6], 384
        %v2665 = vld [vmem:[%s2664] sm:$0xf]
        %v2666 = vld [vmem:[%s2664 + $0x4] sm:$0xf]
        %v2667 = vld [vmem:[%s2664 + $0x8] sm:$0xf]
        %v2668 = vld [vmem:[%s2664 + $0xc] sm:$0xf]
        %v2669 = vld [vmem:[%s2664 + $0x10] sm:$0xf]
        %v2670 = vld [vmem:[%s2664 + $0x14] sm:$0xf]
        %v2671 = vld [vmem:[%s2664 + $0x18] sm:$0xf]
        %v2672 = vld [vmem:[%s2664 + $0x1c] sm:$0xf]
        %v2673 = vld [vmem:[%s2664 + $0x20] sm:$0xf]
        %v2674 = vld [vmem:[%s2664 + $0x24] sm:$0xf]
        %v2675 = vld [vmem:[%s2664 + $0x28] sm:$0xf]
        %v2676 = vld [vmem:[%s2664 + $0x2c] sm:$0xf]
        %v2677 = vld [vmem:[%s2664 + $0x30] sm:$0xf]
        %v2678 = vld [vmem:[%s2664 + $0x34] sm:$0xf]
        %v2679 = vld [vmem:[%s2664 + $0x38] sm:$0xf]
        %v2680 = vld [vmem:[%s2664 + $0x3c] sm:$0xf]
        %v2681 = vld [vmem:[%s2664 + $0x40] sm:$0xf]
        %v2682 = vld [vmem:[%s2664 + $0x44] sm:$0xf]
        %v2683 = vld [vmem:[%s2664 + $0x48] sm:$0xf]
        %v2684 = vld [vmem:[%s2664 + $0x4c] sm:$0xf]
        %v2685 = vld [vmem:[%s2664 + $0x50] sm:$0xf]
        %v2686 = vld [vmem:[%s2664 + $0x54] sm:$0xf]
        %v2687 = vld [vmem:[%s2664 + $0x58] sm:$0xf]
        %v2688 = vld [vmem:[%s2664 + $0x5c] sm:$0xf]
        %v2689 = vld [vmem:[%s2664 + $0x60] sm:$0xf]
        %v2690 = vld [vmem:[%s2664 + $0x64] sm:$0xf]
        %v2691 = vld [vmem:[%s2664 + $0x68] sm:$0xf]
        %v2692 = vld [vmem:[%s2664 + $0x6c] sm:$0xf]
        %v2693 = vld [vmem:[%s2664 + $0x70] sm:$0xf]
        %v2694 = vld [vmem:[%s2664 + $0x74] sm:$0xf]
        %v2695 = vld [vmem:[%s2664 + $0x78] sm:$0xf]
        %v2696 = vld [vmem:[%s2664 + $0x7c] sm:$0xf]
        %v2697 = vld [vmem:[%s2664 + $0x80] sm:$0xf]
        %v2698 = vld [vmem:[%s2664 + $0x84] sm:$0xf]
        %v2699 = vld [vmem:[%s2664 + $0x88] sm:$0xf]
        %v2700 = vld [vmem:[%s2664 + $0x8c] sm:$0xf]
        %v2701 = vld [vmem:[%s2664 + $0x90] sm:$0xf]
        %v2702 = vld [vmem:[%s2664 + $0x94] sm:$0xf]
        %v2703 = vld [vmem:[%s2664 + $0x98] sm:$0xf]
        %v2704 = vld [vmem:[%s2664 + $0x9c] sm:$0xf]
        %v2705 = vld [vmem:[%s2664 + $0xa0] sm:$0xf]
        %v2706 = vld [vmem:[%s2664 + $0xa4] sm:$0xf]
        %v2707 = vld [vmem:[%s2664 + $0xa8] sm:$0xf]
        %v2708 = vld [vmem:[%s2664 + $0xac] sm:$0xf]
        %v2709 = vld [vmem:[%s2664 + $0xb0] sm:$0xf]
        %v2710 = vld [vmem:[%s2664 + $0xb4] sm:$0xf]
        %v2711 = vld [vmem:[%s2664 + $0xb8] sm:$0xf]
        %v2712 = vld [vmem:[%s2664 + $0xbc] sm:$0xf]
        %v2761 = vunpack.c.l.b16 %v2665
        %v2762 = vunpack.c.l.b16 %v2666
        %v2763 = vunpack.c.l.b16 %v2667
        %v2764 = vunpack.c.l.b16 %v2668
        %v2765 = vunpack.c.l.b16 %v2669
        %v2766 = vunpack.c.l.b16 %v2670
        %v2767 = vunpack.c.l.b16 %v2671
        %v2768 = vunpack.c.l.b16 %v2672
        %v2769 = vunpack.c.l.b16 %v2673
        %v2770 = vunpack.c.l.b16 %v2674
        %v2771 = vunpack.c.l.b16 %v2675
        %v2772 = vunpack.c.l.b16 %v2676
        %v2773 = vunpack.c.l.b16 %v2677
        %v2774 = vunpack.c.l.b16 %v2678
        %v2775 = vunpack.c.l.b16 %v2679
        %v2776 = vunpack.c.l.b16 %v2680
        %v2777 = vunpack.c.l.b16 %v2681
        %v2778 = vunpack.c.l.b16 %v2682
        %v2779 = vunpack.c.l.b16 %v2683
        %v2780 = vunpack.c.l.b16 %v2684
        %v2781 = vunpack.c.l.b16 %v2685
        %v2782 = vunpack.c.l.b16 %v2686
        %v2783 = vunpack.c.l.b16 %v2687
        %v2784 = vunpack.c.l.b16 %v2688
        %v2785 = vunpack.c.l.b16 %v2689
        %v2786 = vunpack.c.l.b16 %v2690
        %v2787 = vunpack.c.l.b16 %v2691
        %v2788 = vunpack.c.l.b16 %v2692
        %v2789 = vunpack.c.l.b16 %v2693
        %v2790 = vunpack.c.l.b16 %v2694
        %v2791 = vunpack.c.l.b16 %v2695
        %v2792 = vunpack.c.l.b16 %v2696
        %v2793 = vunpack.c.l.b16 %v2697
        %v2794 = vunpack.c.l.b16 %v2698
        %v2795 = vunpack.c.l.b16 %v2699
        %v2796 = vunpack.c.l.b16 %v2700
        %v2797 = vunpack.c.l.b16 %v2701
        %v2798 = vunpack.c.l.b16 %v2702
        %v2799 = vunpack.c.l.b16 %v2703
        %v2800 = vunpack.c.l.b16 %v2704
        %v2801 = vunpack.c.l.b16 %v2705
        %v2802 = vunpack.c.l.b16 %v2706
        %v2803 = vunpack.c.l.b16 %v2707
        %v2804 = vunpack.c.l.b16 %v2708
        %v2805 = vunpack.c.l.b16 %v2709
        %v2806 = vunpack.c.l.b16 %v2710
        %v2807 = vunpack.c.l.b16 %v2711
        %v2808 = vunpack.c.l.b16 %v2712
        %v2809 = vpack.c.b16 %v2762, %v2761
        %v2810 = vpack.c.b16 %v2764, %v2763
        %v2811 = vpack.c.b16 %v2766, %v2765
        %v2812 = vpack.c.b16 %v2768, %v2767
        %v2813 = vpack.c.b16 %v2770, %v2769
        %v2814 = vpack.c.b16 %v2772, %v2771
        %v2815 = vpack.c.b16 %v2774, %v2773
        %v2816 = vpack.c.b16 %v2776, %v2775
        %v2817 = vpack.c.b16 %v2778, %v2777
        %v2818 = vpack.c.b16 %v2780, %v2779
        %v2819 = vpack.c.b16 %v2782, %v2781
        %v2820 = vpack.c.b16 %v2784, %v2783
        %v2821 = vpack.c.b16 %v2786, %v2785
        %v2822 = vpack.c.b16 %v2788, %v2787
        %v2823 = vpack.c.b16 %v2790, %v2789
        %v2824 = vpack.c.b16 %v2792, %v2791
        %v2825 = vpack.c.b16 %v2794, %v2793
        %v2826 = vpack.c.b16 %v2796, %v2795
        %v2827 = vpack.c.b16 %v2798, %v2797
        %v2828 = vpack.c.b16 %v2800, %v2799
        %v2829 = vpack.c.b16 %v2802, %v2801
        %v2830 = vpack.c.b16 %v2804, %v2803
        %v2831 = vpack.c.b16 %v2806, %v2805
        %v2832 = vpack.c.b16 %v2808, %v2807
        %2857 = vmatprep.subr.bf16.mxu0 0
        %2858 = vmatpush1.bf16.msra.mxu0 %v2809
        %2859 = vmatprep.subr.bf16.mxu0 0
        %2860 = vmatpush1.bf16.msra.mxu0 %v2810
        %2861 = vmatprep.subr.bf16.mxu0 0
        %2862 = vmatpush1.bf16.msra.mxu0 %v2811
        %2863 = vmatprep.subr.bf16.mxu0 0
        %2864 = vmatpush1.bf16.msra.mxu0 %v2812
        %2865 = vmatprep.subr.bf16.mxu0 0
        %2866 = vmatpush1.bf16.msra.mxu0 %v2813
        %2867 = vmatprep.subr.bf16.mxu0 0
        %2868 = vmatpush1.bf16.msra.mxu0 %v2814
        %2869 = vmatprep.subr.bf16.mxu0 0
        %2870 = vmatpush1.bf16.msra.mxu0 %v2815
        %2871 = vmatprep.subr.bf16.mxu0 0
        %2872 = vmatpush1.bf16.msra.mxu0 %v2816
        %2873 = vmatprep.subr.bf16.mxu0 0
        %2874 = vmatpush1.bf16.msra.mxu0 %v2817
        %2875 = vmatprep.subr.bf16.mxu0 0
        %2876 = vmatpush1.bf16.msra.mxu0 %v2818
        %2877 = vmatprep.subr.bf16.mxu0 0
        %2878 = vmatpush1.bf16.msra.mxu0 %v2819
        %2879 = vmatprep.subr.bf16.mxu0 0
        %2880 = vmatpush1.bf16.msra.mxu0 %v2820
        %2881 = vmatprep.subr.bf16.mxu0 0
        %2882 = vmatpush1.bf16.msra.mxu0 %v2821
        %2883 = vmatprep.subr.bf16.mxu0 0
        %2884 = vmatpush1.bf16.msra.mxu0 %v2822
        %2885 = vmatprep.subr.bf16.mxu0 0
        %2886 = vmatpush1.bf16.msra.mxu0 %v2823
        %2887 = vmatprep.subr.bf16.mxu0 0
        %2888 = vmatpush1.bf16.msra.mxu0 %v2824
        %2889 = vmatprep.mubr.bf16.mxu0 %v2632
        %2890 = vmatmul.mubr.bf16.gmra.mrb[0].mxu0 %v2616
        %v2891 = vpop.f32.mrb[0].mxu0
        %v2892 = vadd.f32 0.0, %v2891
        %v2893 = vpop.f32.mrb[0].mxu0
        %v2894 = vpop.f32.mrb[0].mxu0
        %v2895 = vadd.f32 0.0, %v2894
        %v2896 = vpop.f32.mrb[0].mxu0
        %2897 = vmatprep.mubr.bf16.mxu0 %v2633
        %2898 = vmatmul.mubr.bf16.gmra.mrb[0].mxu0 %v2617
        %v2899 = vpop.f32.mrb[0].mxu0
        %v2900 = vadd.f32 0.0, %v2899
        %v2901 = vpop.f32.mrb[0].mxu0
        %v2902 = vpop.f32.mrb[0].mxu0
        %v2903 = vadd.f32 0.0, %v2902
        %v2904 = vpop.f32.mrb[0].mxu0
        %2905 = vmatprep.mubr.bf16.mxu0 %v2634
        %2906 = vmatmul.mubr.bf16.gmra.mrb[0].mxu0 %v2618
        %v2907 = vpop.f32.mrb[0].mxu0
        %v2908 = vadd.f32 0.0, %v2907
        %v2909 = vpop.f32.mrb[0].mxu0
        %v2910 = vpop.f32.mrb[0].mxu0
        %v2911 = vadd.f32 0.0, %v2910
        %v2912 = vpop.f32.mrb[0].mxu0
        %2913 = vmatprep.mubr.bf16.mxu0 %v2635
        %2914 = vmatmul.mubr.bf16.gmra.mrb[0].mxu0 %v2619
        %v2915 = vpop.f32.mrb[0].mxu0
        %v2916 = vadd.f32 0.0, %v2915
        %v2917 = vpop.f32.mrb[0].mxu0
        %v2918 = vpop.f32.mrb[0].mxu0
        %v2919 = vadd.f32 0.0, %v2918
        %v2920 = vpop.f32.mrb[0].mxu0
        %2921 = vmatprep.mubr.bf16.mxu0 %v2636
        %2922 = vmatmul.mubr.bf16.gmra.mrb[0].mxu0 %v2620
        %v2923 = vpop.f32.mrb[0].mxu0
        %v2924 = vadd.f32 0.0, %v2923
        %v2925 = vpop.f32.mrb[0].mxu0
        %v2926 = vpop.f32.mrb[0].mxu0
        %v2927 = vadd.f32 0.0, %v2926
        %v2928 = vpop.f32.mrb[0].mxu0
        %2929 = vmatprep.mubr.bf16.mxu0 %v2637
        %2930 = vmatmul.mubr.bf16.gmra.mrb[0].mxu0 %v2621
        %v2931 = vpop.f32.mrb[0].mxu0
        %v2932 = vadd.f32 0.0, %v2931
        %v2933 = vpop.f32.mrb[0].mxu0
        %v2934 = vpop.f32.mrb[0].mxu0
        %v2935 = vadd.f32 0.0, %v2934
        %v2936 = vpop.f32.mrb[0].mxu0
        %2937 = vmatprep.mubr.bf16.mxu0 %v2638
        %2938 = vmatmul.mubr.bf16.gmra.mrb[0].mxu0 %v2622
        %v2939 = vpop.f32.mrb[0].mxu0
        %v2940 = vadd.f32 0.0, %v2939
        %v2941 = vpop.f32.mrb[0].mxu0
        %v2942 = vpop.f32.mrb[0].mxu0
        %v2943 = vadd.f32 0.0, %v2942
        %v2944 = vpop.f32.mrb[0].mxu0
        %2945 = vmatprep.mubr.bf16.mxu0 %v2639
        %2946 = vmatmul.mubr.bf16.gmra.mrb[0].mxu0 %v2623
        %v2947 = vpop.f32.mrb[0].mxu0
        %v2948 = vadd.f32 0.0, %v2947
        %v2949 = vpop.f32.mrb[0].mxu0
        %v2950 = vpop.f32.mrb[0].mxu0
        %v2951 = vadd.f32 0.0, %v2950
        %v2952 = vpop.f32.mrb[0].mxu0
        %2953 = vmatprep.mubr.bf16.mxu0 %v2640
        %2954 = vmatmul.mubr.bf16.gmra.mrb[0].mxu0 %v2624
        %v2955 = vpop.f32.mrb[0].mxu0
        %v2956 = vadd.f32 0.0, %v2955
        %v2957 = vpop.f32.mrb[0].mxu0
        %v2958 = vpop.f32.mrb[0].mxu0
        %v2959 = vadd.f32 0.0, %v2958
        %v2960 = vpop.f32.mrb[0].mxu0
        %2961 = vmatprep.mubr.bf16.mxu0 %v2641
        %2962 = vmatmul.mubr.bf16.gmra.mrb[0].mxu0 %v2625
        %v2963 = vpop.f32.mrb[0].mxu0
        %v2964 = vadd.f32 0.0, %v2963
        %v2965 = vpop.f32.mrb[0].mxu0
        %v2966 = vpop.f32.mrb[0].mxu0
        %v2967 = vadd.f32 0.0, %v2966
        %v2968 = vpop.f32.mrb[0].mxu0
        %2969 = vmatprep.mubr.bf16.mxu0 %v2642
        %2970 = vmatmul.mubr.bf16.gmra.mrb[0].mxu0 %v2626
        %v2971 = vpop.f32.mrb[0].mxu0
        %v2972 = vadd.f32 0.0, %v2971
        %v2973 = vpop.f32.mrb[0].mxu0
        %v2974 = vpop.f32.mrb[0].mxu0
        %v2975 = vadd.f32 0.0, %v2974
        %v2976 = vpop.f32.mrb[0].mxu0
        %2977 = vmatprep.mubr.bf16.mxu0 %v2643
        %2978 = vmatmul.mubr.bf16.gmra.mrb[0].mxu0 %v2627
        %v2979 = vpop.f32.mrb[0].mxu0
        %v2980 = vadd.f32 0.0, %v2979
        %v2981 = vpop.f32.mrb[0].mxu0
        %v2982 = vpop.f32.mrb[0].mxu0
        %v2983 = vadd.f32 0.0, %v2982
        %v2984 = vpop.f32.mrb[0].mxu0
        %2985 = vmatprep.mubr.bf16.mxu0 %v2644
        %2986 = vmatmul.mubr.bf16.gmra.mrb[0].mxu0 %v2628
        %v2987 = vpop.f32.mrb[0].mxu0
        %v2988 = vadd.f32 0.0, %v2987
        %v2989 = vpop.f32.mrb[0].mxu0
        %v2990 = vpop.f32.mrb[0].mxu0
        %v2991 = vadd.f32 0.0, %v2990
        %v2992 = vpop.f32.mrb[0].mxu0
        %2993 = vmatprep.mubr.bf16.mxu0 %v2645
        %2994 = vmatmul.mubr.bf16.gmra.mrb[0].mxu0 %v2629
        %v2995 = vpop.f32.mrb[0].mxu0
        %v2996 = vadd.f32 0.0, %v2995
        %v2997 = vpop.f32.mrb[0].mxu0
        %v2998 = vpop.f32.mrb[0].mxu0
        %v2999 = vadd.f32 0.0, %v2998
        %v3000 = vpop.f32.mrb[0].mxu0
        %3001 = vmatprep.mubr.bf16.mxu0 %v2646
        %3002 = vmatmul.mubr.bf16.gmra.mrb[0].mxu0 %v2630
        %v3003 = vpop.f32.mrb[0].mxu0
        %v3004 = vadd.f32 0.0, %v3003
        %v3005 = vpop.f32.mrb[0].mxu0
        %v3006 = vpop.f32.mrb[0].mxu0
        %v3007 = vadd.f32 0.0, %v3006
        %v3008 = vpop.f32.mrb[0].mxu0
        %3009 = vmatprep.mubr.bf16.mxu0 %v2647
        %3010 = vmatmul.mubr.bf16.gmra.mrb[0].mxu0 %v2631
        %v3011 = vpop.f32.mrb[0].mxu0
        %v3012 = vadd.f32 0.0, %v3011
        %v3013 = vpop.f32.mrb[0].mxu0
        %v3014 = vpop.f32.mrb[0].mxu0
        %v3015 = vadd.f32 0.0, %v3014
        %v3016 = vpop.f32.mrb[0].mxu0
        %3017 = vdwg.mxu0
        %3018 = vmatprep.subr.bf16.mxu0 0
        %3019 = vmatpush1.bf16.msra.mxu0 %v2825
        %3020 = vmatprep.subr.bf16.mxu0 0
        %3021 = vmatpush1.bf16.msra.mxu0 %v2826
        %3022 = vmatprep.subr.bf16.mxu0 0
        %3023 = vmatpush1.bf16.msra.mxu0 %v2827
        %3024 = vmatprep.subr.bf16.mxu0 0
        %3025 = vmatpush1.bf16.msra.mxu0 %v2828
        %3026 = vmatprep.subr.bf16.mxu0 0
        %3027 = vmatpush1.bf16.msra.mxu0 %v2829
        %3028 = vmatprep.subr.bf16.mxu0 0
        %3029 = vmatpush1.bf16.msra.mxu0 %v2830
        %3030 = vmatprep.subr.bf16.mxu0 0
        %3031 = vmatpush1.bf16.msra.mxu0 %v2831
        %3032 = vmatprep.subr.bf16.mxu0 0
        %3033 = vmatpush1.bf16.msra.mxu0 %v2832
        %3034 = vmatprep.subr.bf16.mxu0 0
        %3035 = vmatpush1.bf16.msra.mxu0 0
        %3036 = vmatprep.subr.bf16.mxu0 0
        %3037 = vmatpush1.bf16.msra.mxu0 0
        %3038 = vmatprep.subr.bf16.mxu0 0
        %3039 = vmatpush1.bf16.msra.mxu0 0
        %3040 = vmatprep.subr.bf16.mxu0 0
        %3041 = vmatpush1.bf16.msra.mxu0 0
        %3042 = vmatprep.subr.bf16.mxu0 0
        %3043 = vmatpush1.bf16.msra.mxu0 0
        %3044 = vmatprep.subr.bf16.mxu0 0
        %3045 = vmatpush1.bf16.msra.mxu0 0
        %3046 = vmatprep.subr.bf16.mxu0 0
        %3047 = vmatpush1.bf16.msra.mxu0 0
        %3048 = vmatprep.subr.bf16.mxu0 0
        %3049 = vmatpush1.bf16.msra.mxu0 0
        %3050 = vmatprep.mubr.bf16.mxu0 0
        %3051 = vmatmul.mubr.bf16.gmra.mrb[0].mxu0 %v2648
        %v3052 = vpop.f32.mrb[0].mxu0
        %v3053 = vadd.f32 %v2892, %v3052
        %v3054 = vpop.f32.mrb[0].mxu0
        %v3055 = vpop.f32.mrb[0].mxu0
        %v3056 = vadd.f32 %v2895, %v3055
        %v3057 = vpop.f32.mrb[0].mxu0
        %3058 = vmatprep.mubr.bf16.mxu0 0
        %3059 = vmatmul.mubr.bf16.gmra.mrb[0].mxu0 %v2649
        %v3060 = vpop.f32.mrb[0].mxu0
        %v3061 = vadd.f32 %v2900, %v3060
        %v3062 = vpop.f32.mrb[0].mxu0
        %v3063 = vpop.f32.mrb[0].mxu0
        %v3064 = vadd.f32 %v2903, %v3063
        %v3065 = vpop.f32.mrb[0].mxu0
        %3066 = vmatprep.mubr.bf16.mxu0 0
        %3067 = vmatmul.mubr.bf16.gmra.mrb[0].mxu0 %v2650
        %v3068 = vpop.f32.mrb[0].mxu0
        %v3069 = vadd.f32 %v2908, %v3068
        %v3070 = vpop.f32.mrb[0].mxu0
        %v3071 = vpop.f32.mrb[0].mxu0
        %v3072 = vadd.f32 %v2911, %v3071
        %v3073 = vpop.f32.mrb[0].mxu0
        %3074 = vmatprep.mubr.bf16.mxu0 0
        %3075 = vmatmul.mubr.bf16.gmra.mrb[0].mxu0 %v2651
        %v3076 = vpop.f32.mrb[0].mxu0
        %v3077 = vadd.f32 %v2916, %v3076
        %v3078 = vpop.f32.mrb[0].mxu0
        %v3079 = vpop.f32.mrb[0].mxu0
        %v3080 = vadd.f32 %v2919, %v3079
        %v3081 = vpop.f32.mrb[0].mxu0
        %3082 = vmatprep.mubr.bf16.mxu0 0
        %3083 = vmatmul.mubr.bf16.gmra.mrb[0].mxu0 %v2652
        %v3084 = vpop.f32.mrb[0].mxu0
        %v3085 = vadd.f32 %v2924, %v3084
        %v3086 = vpop.f32.mrb[0].mxu0
        %v3087 = vpop.f32.mrb[0].mxu0
        %v3088 = vadd.f32 %v2927, %v3087
        %v3089 = vpop.f32.mrb[0].mxu0
        %3090 = vmatprep.mubr.bf16.mxu0 0
        %3091 = vmatmul.mubr.bf16.gmra.mrb[0].mxu0 %v2653
        %v3092 = vpop.f32.mrb[0].mxu0
        %v3093 = vadd.f32 %v2932, %v3092
        %v3094 = vpop.f32.mrb[0].mxu0
        %v3095 = vpop.f32.mrb[0].mxu0
        %v3096 = vadd.f32 %v2935, %v3095
        %v3097 = vpop.f32.mrb[0].mxu0
        %3098 = vmatprep.mubr.bf16.mxu0 0
        %3099 = vmatmul.mubr.bf16.gmra.mrb[0].mxu0 %v2654
        %v3100 = vpop.f32.mrb[0].mxu0
        %v3101 = vadd.f32 %v2940, %v3100
        %v3102 = vpop.f32.mrb[0].mxu0
        %v3103 = vpop.f32.mrb[0].mxu0
        %v3104 = vadd.f32 %v2943, %v3103
        %v3105 = vpop.f32.mrb[0].mxu0
        %3106 = vmatprep.mubr.bf16.mxu0 0
        %3107 = vmatmul.mubr.bf16.gmra.mrb[0].mxu0 %v2655
        %v3108 = vpop.f32.mrb[0].mxu0
        %v3109 = vadd.f32 %v2948, %v3108
        %v3110 = vpop.f32.mrb[0].mxu0
        %v3111 = vpop.f32.mrb[0].mxu0
        %v3112 = vadd.f32 %v2951, %v3111
        %v3113 = vpop.f32.mrb[0].mxu0
        %3114 = vmatprep.mubr.bf16.mxu0 0
        %3115 = vmatmul.mubr.bf16.gmra.mrb[0].mxu0 %v2656
        %v3116 = vpop.f32.mrb[0].mxu0
        %v3117 = vadd.f32 %v2956, %v3116
        %v3118 = vpop.f32.mrb[0].mxu0
        %v3119 = vpop.f32.mrb[0].mxu0
        %v3120 = vadd.f32 %v2959, %v3119
        %v3121 = vpop.f32.mrb[0].mxu0
        %3122 = vmatprep.mubr.bf16.mxu0 0
        %3123 = vmatmul.mubr.bf16.gmra.mrb[0].mxu0 %v2657
        %v3124 = vpop.f32.mrb[0].mxu0
        %v3125 = vadd.f32 %v2964, %v3124
        %v3126 = vpop.f32.mrb[0].mxu0
        %v3127 = vpop.f32.mrb[0].mxu0
        %v3128 = vadd.f32 %v2967, %v3127
        %v3129 = vpop.f32.mrb[0].mxu0
        %3130 = vmatprep.mubr.bf16.mxu0 0
        %3131 = vmatmul.mubr.bf16.gmra.mrb[0].mxu0 %v2658
        %v3132 = vpop.f32.mrb[0].mxu0
        %v3133 = vadd.f32 %v2972, %v3132
        %v3134 = vpop.f32.mrb[0].mxu0
        %v3135 = vpop.f32.mrb[0].mxu0
        %v3136 = vadd.f32 %v2975, %v3135
        %v3137 = vpop.f32.mrb[0].mxu0
        %3138 = vmatprep.mubr.bf16.mxu0 0
        %3139 = vmatmul.mubr.bf16.gmra.mrb[0].mxu0 %v2659
        %v3140 = vpop.f32.mrb[0].mxu0
        %v3141 = vadd.f32 %v2980, %v3140
        %v3142 = vpop.f32.mrb[0].mxu0
        %v3143 = vpop.f32.mrb[0].mxu0
        %v3144 = vadd.f32 %v2983, %v3143
        %v3145 = vpop.f32.mrb[0].mxu0
        %3146 = vmatprep.mubr.bf16.mxu0 0
        %3147 = vmatmul.mubr.bf16.gmra.mrb[0].mxu0 %v2660
        %v3148 = vpop.f32.mrb[0].mxu0
        %v3149 = vadd.f32 %v2988, %v3148
        %v3150 = vpop.f32.mrb[0].mxu0
        %v3151 = vpop.f32.mrb[0].mxu0
        %v3152 = vadd.f32 %v2991, %v3151
        %v3153 = vpop.f32.mrb[0].mxu0
        %3154 = vmatprep.mubr.bf16.mxu0 0
        %3155 = vmatmul.mubr.bf16.gmra.mrb[0].mxu0 %v2661
        %v3156 = vpop.f32.mrb[0].mxu0
        %v3157 = vadd.f32 %v2996, %v3156
        %v3158 = vpop.f32.mrb[0].mxu0
        %v3159 = vpop.f32.mrb[0].mxu0
        %v3160 = vadd.f32 %v2999, %v3159
        %v3161 = vpop.f32.mrb[0].mxu0
        %3162 = vmatprep.mubr.bf16.mxu0 0
        %3163 = vmatmul.mubr.bf16.gmra.mrb[0].mxu0 %v2662
        %v3164 = vpop.f32.mrb[0].mxu0
        %v3165 = vadd.f32 %v3004, %v3164
        %v3166 = vpop.f32.mrb[0].mxu0
        %v3167 = vpop.f32.mrb[0].mxu0
        %v3168 = vadd.f32 %v3007, %v3167
        %v3169 = vpop.f32.mrb[0].mxu0
        %3170 = vmatprep.mubr.bf16.mxu0 0
        %3171 = vmatmul.mubr.bf16.gmra.mrb[0].mxu0 %v2663
        %v3172 = vpop.f32.mrb[0].mxu0
        %v3173 = vadd.f32 %v3012, %v3172
        %v3174 = vpop.f32.mrb[0].mxu0
        %v3175 = vpop.f32.mrb[0].mxu0
        %v3176 = vadd.f32 %v3015, %v3175
        %v3177 = vpop.f32.mrb[0].mxu0
        %3178 = vdwg.mxu0
        %v3179 = vadd.f32 %v2330, %v3053
        %v3180 = vadd.f32 %v2333, %v3056
        %v3181 = vadd.f32 %v2338, %v3061
        %v3182 = vadd.f32 %v2341, %v3064
        %v3183 = vadd.f32 %v2346, %v3069
        %v3184 = vadd.f32 %v2349, %v3072
        %v3185 = vadd.f32 %v2354, %v3077
        %v3186 = vadd.f32 %v2357, %v3080
        %v3187 = vadd.f32 %v2362, %v3085
        %v3188 = vadd.f32 %v2365, %v3088
        %v3189 = vadd.f32 %v2370, %v3093
        %v3190 = vadd.f32 %v2373, %v3096
        %v3191 = vadd.f32 %v2378, %v3101
        %v3192 = vadd.f32 %v2381, %v3104
        %v3193 = vadd.f32 %v2386, %v3109
        %v3194 = vadd.f32 %v2389, %v3112
        %v3195 = vadd.f32 %v2394, %v3117
        %v3196 = vadd.f32 %v2397, %v3120
        %v3197 = vadd.f32 %v2402, %v3125
        %v3198 = vadd.f32 %v2405, %v3128
        %v3199 = vadd.f32 %v2410, %v3133
        %v3200 = vadd.f32 %v2413, %v3136
        %v3201 = vadd.f32 %v2418, %v3141
        %v3202 = vadd.f32 %v2421, %v3144
        %v3203 = vadd.f32 %v2426, %v3149
        %v3204 = vadd.f32 %v2429, %v3152
        %v3205 = vadd.f32 %v2434, %v3157
        %v3206 = vadd.f32 %v2437, %v3160
        %v3207 = vadd.f32 %v2442, %v3165
        %v3208 = vadd.f32 %v2445, %v3168
        %v3209 = vadd.f32 %v2450, %v3173
        %v3210 = vadd.f32 %v2453, %v3176
        %v3211 = vld [vmem:[%s4] sm:$0x1]
        %v3213 = vlaneseq
        %v3214 = vshrl.u32 %v3213, 7
        %v3215 = vsub.s32 0, %v3214
        %v3216 = vrot.slane %v3211, %v3215
        %v3218 = vmul.f32 %v3179, %v3216
        %v3219 = vmul.f32 %v3180, %v3216
        %v3220 = vmul.f32 %v3181, %v3216
        %v3221 = vmul.f32 %v3182, %v3216
        %v3222 = vmul.f32 %v3183, %v3216
        %v3223 = vmul.f32 %v3184, %v3216
        %v3224 = vmul.f32 %v3185, %v3216
        %v3225 = vmul.f32 %v3186, %v3216
        %v3226 = vmul.f32 %v3187, %v3216
        %v3227 = vmul.f32 %v3188, %v3216
        %v3228 = vmul.f32 %v3189, %v3216
        %v3229 = vmul.f32 %v3190, %v3216
        %v3230 = vmul.f32 %v3191, %v3216
        %v3231 = vmul.f32 %v3192, %v3216
        %v3232 = vmul.f32 %v3193, %v3216
        %v3233 = vmul.f32 %v3194, %v3216
        %v3234 = vmul.f32 %v3195, %v3216
        %v3235 = vmul.f32 %v3196, %v3216
        %v3236 = vmul.f32 %v3197, %v3216
        %v3237 = vmul.f32 %v3198, %v3216
        %v3238 = vmul.f32 %v3199, %v3216
        %v3239 = vmul.f32 %v3200, %v3216
        %v3240 = vmul.f32 %v3201, %v3216
        %v3241 = vmul.f32 %v3202, %v3216
        %v3242 = vmul.f32 %v3203, %v3216
        %v3243 = vmul.f32 %v3204, %v3216
        %v3244 = vmul.f32 %v3205, %v3216
        %v3245 = vmul.f32 %v3206, %v3216
        %v3246 = vmul.f32 %v3207, %v3216
        %v3247 = vmul.f32 %v3208, %v3216
        %v3248 = vmul.f32 %v3209, %v3216
        %v3249 = vmul.f32 %v3210, %v3216
        %v3250 = vld [vmem:[%s5] sm:$0x1]
        %v3252 = vlaneseq
        %v3253 = vshrl.u32 %v3252, 7
        %v3254 = vsub.s32 0, %v3253
        %v3255 = vrot.slane %v3250, %v3254
        %v3257 = vadd.f32 %v3218, %v3255
        %v3258 = vadd.f32 %v3219, %v3255
        %v3259 = vadd.f32 %v3220, %v3255
        %v3260 = vadd.f32 %v3221, %v3255
        %v3261 = vadd.f32 %v3222, %v3255
        %v3262 = vadd.f32 %v3223, %v3255
        %v3263 = vadd.f32 %v3224, %v3255
        %v3264 = vadd.f32 %v3225, %v3255
        %v3265 = vadd.f32 %v3226, %v3255
        %v3266 = vadd.f32 %v3227, %v3255
        %v3267 = vadd.f32 %v3228, %v3255
        %v3268 = vadd.f32 %v3229, %v3255
        %v3269 = vadd.f32 %v3230, %v3255
        %v3270 = vadd.f32 %v3231, %v3255
        %v3271 = vadd.f32 %v3232, %v3255
        %v3272 = vadd.f32 %v3233, %v3255
        %v3273 = vadd.f32 %v3234, %v3255
        %v3274 = vadd.f32 %v3235, %v3255
        %v3275 = vadd.f32 %v3236, %v3255
        %v3276 = vadd.f32 %v3237, %v3255
        %v3277 = vadd.f32 %v3238, %v3255
        %v3278 = vadd.f32 %v3239, %v3255
        %v3279 = vadd.f32 %v3240, %v3255
        %v3280 = vadd.f32 %v3241, %v3255
        %v3281 = vadd.f32 %v3242, %v3255
        %v3282 = vadd.f32 %v3243, %v3255
        %v3283 = vadd.f32 %v3244, %v3255
        %v3284 = vadd.f32 %v3245, %v3255
        %v3285 = vadd.f32 %v3246, %v3255
        %v3286 = vadd.f32 %v3247, %v3255
        %v3287 = vadd.f32 %v3248, %v3255
        %v3288 = vadd.f32 %v3249, %v3255
        %v3289 = vmax.f32 %v3257, 0.0
        %v3290 = vmax.f32 %v3258, 0.0
        %v3291 = vmax.f32 %v3259, 0.0
        %v3292 = vmax.f32 %v3260, 0.0
        %v3293 = vmax.f32 %v3261, 0.0
        %v3294 = vmax.f32 %v3262, 0.0
        %v3295 = vmax.f32 %v3263, 0.0
        %v3296 = vmax.f32 %v3264, 0.0
        %v3297 = vmax.f32 %v3265, 0.0
        %v3298 = vmax.f32 %v3266, 0.0
        %v3299 = vmax.f32 %v3267, 0.0
        %v3300 = vmax.f32 %v3268, 0.0
        %v3301 = vmax.f32 %v3269, 0.0
        %v3302 = vmax.f32 %v3270, 0.0
        %v3303 = vmax.f32 %v3271, 0.0
        %v3304 = vmax.f32 %v3272, 0.0
        %v3305 = vmax.f32 %v3273, 0.0
        %v3306 = vmax.f32 %v3274, 0.0
        %v3307 = vmax.f32 %v3275, 0.0
        %v3308 = vmax.f32 %v3276, 0.0
        %v3309 = vmax.f32 %v3277, 0.0
        %v3310 = vmax.f32 %v3278, 0.0
        %v3311 = vmax.f32 %v3279, 0.0
        %v3312 = vmax.f32 %v3280, 0.0
        %v3313 = vmax.f32 %v3281, 0.0
        %v3314 = vmax.f32 %v3282, 0.0
        %v3315 = vmax.f32 %v3283, 0.0
        %v3316 = vmax.f32 %v3284, 0.0
        %v3317 = vmax.f32 %v3285, 0.0
        %v3318 = vmax.f32 %v3286, 0.0
        %v3319 = vmax.f32 %v3287, 0.0
        %v3320 = vmax.f32 %v3288, 0.0
        %3321 = vst [vmem:[#allocation2 + $0x18] sm:$0xff] %v3289
        %3322 = vst [vmem:[#allocation2 + $0x20] sm:$0xff] %v3290
        %3323 = vst [vmem:[#allocation2 + $0x28] sm:$0xff] %v3291
        %3324 = vst [vmem:[#allocation2 + $0x30] sm:$0xff] %v3292
        %3325 = vst [vmem:[#allocation2 + $0x38] sm:$0xff] %v3293
        %3326 = vst [vmem:[#allocation2 + $0x40] sm:$0xff] %v3294
        %3327 = vst [vmem:[#allocation2 + $0x48] sm:$0xff] %v3295
        %3328 = vst [vmem:[#allocation2 + $0x50] sm:$0xff] %v3296
        %3329 = vst [vmem:[#allocation2 + $0x58] sm:$0xff] %v3297
        %3330 = vst [vmem:[#allocation2 + $0x60] sm:$0xff] %v3298
        %3331 = vst [vmem:[#allocation2 + $0x68] sm:$0xff] %v3299
        %3332 = vst [vmem:[#allocation2 + $0x70] sm:$0xff] %v3300
        %3333 = vst [vmem:[#allocation2 + $0x78] sm:$0xff] %v3301
        %3334 = vst [vmem:[#allocation2 + $0x80] sm:$0xff] %v3302
        %3335 = vst [vmem:[#allocation2 + $0x88] sm:$0xff] %v3303
        %3336 = vst [vmem:[#allocation2 + $0x90] sm:$0xff] %v3304
        %3337 = vst [vmem:[#allocation2 + $0x98] sm:$0xff] %v3305
        %3338 = vst [vmem:[#allocation2 + $0xa0] sm:$0xff] %v3306
        %3339 = vst [vmem:[#allocation2 + $0xa8] sm:$0xff] %v3307
        %3340 = vst [vmem:[#allocation2 + $0xb0] sm:$0xff] %v3308
        %3341 = vst [vmem:[#allocation2 + $0xb8] sm:$0xff] %v3309
        %3342 = vst [vmem:[#allocation2 + $0xc0] sm:$0xff] %v3310
        %3343 = vst [vmem:[#allocation2 + $0xc8] sm:$0xff] %v3311
        %3344 = vst [vmem:[#allocation2 + $0xd0] sm:$0xff] %v3312
        %3345 = vst [vmem:[#allocation2 + $0xd8] sm:$0xff] %v3313
        %3346 = vst [vmem:[#allocation2 + $0xe0] sm:$0xff] %v3314
        %3347 = vst [vmem:[#allocation2 + $0xe8] sm:$0xff] %v3315
        %3348 = vst [vmem:[#allocation2 + $0xf0] sm:$0xff] %v3316
        %3349 = vst [vmem:[#allocation2 + $0xf8] sm:$0xff] %v3317
        %3350 = vst [vmem:[#allocation2 + $0x100] sm:$0xff] %v3318
        %3351 = vst [vmem:[#allocation2 + $0x108] sm:$0xff] %v3319
        %3352 = vst [vmem:[#allocation2 + $0x110] sm:$0xff] %v3320
        %v3353 = vld [vmem:[#allocation2 + $0x7] sm:$0xff]
        %v3354 = vld [vmem:[#allocation2 + $0xf] sm:$0xff]
        %v3355 = vld [vmem:[#allocation2 + $0x17] sm:$0xff]
        %v3356 = vld [vmem:[#allocation2 + $0x1f] sm:$0xff]
        %v3357 = vld [vmem:[#allocation2 + $0x27] sm:$0xff]
        %v3358 = vld [vmem:[#allocation2 + $0x2f] sm:$0xff]
        %v3359 = vld [vmem:[#allocation2 + $0x37] sm:$0xff]
        %v3360 = vld [vmem:[#allocation2 + $0x3f] sm:$0xff]
        %v3361 = vld [vmem:[#allocation2 + $0x47] sm:$0xff]
        %v3362 = vld [vmem:[#allocation2 + $0x4f] sm:$0xff]
        %v3363 = vld [vmem:[#allocation2 + $0x57] sm:$0xff]
        %v3364 = vld [vmem:[#allocation2 + $0x5f] sm:$0xff]
        %v3365 = vld [vmem:[#allocation2 + $0x67] sm:$0xff]
        %v3366 = vld [vmem:[#allocation2 + $0x6f] sm:$0xff]
        %v3367 = vld [vmem:[#allocation2 + $0x77] sm:$0xff]
        %v3368 = vld [vmem:[#allocation2 + $0x7f] sm:$0xff]
        %v3369 = vld [vmem:[#allocation2 + $0x87] sm:$0xff]
        %v3370 = vld [vmem:[#allocation2 + $0x8f] sm:$0xff]
        %v3371 = vld [vmem:[#allocation2 + $0x97] sm:$0xff]
        %v3372 = vld [vmem:[#allocation2 + $0x9f] sm:$0xff]
        %v3373 = vld [vmem:[#allocation2 + $0xa7] sm:$0xff]
        %v3374 = vld [vmem:[#allocation2 + $0xaf] sm:$0xff]
        %v3375 = vld [vmem:[#allocation2 + $0xb7] sm:$0xff]
        %v3376 = vld [vmem:[#allocation2 + $0xbf] sm:$0xff]
        %v3377 = vld [vmem:[#allocation2 + $0xc7] sm:$0xff]
        %v3378 = vld [vmem:[#allocation2 + $0xcf] sm:$0xff]
        %v3379 = vld [vmem:[#allocation2 + $0xd7] sm:$0xff]
        %v3380 = vld [vmem:[#allocation2 + $0xdf] sm:$0xff]
        %v3381 = vld [vmem:[#allocation2 + $0xe7] sm:$0xff]
        %v3382 = vld [vmem:[#allocation2 + $0xef] sm:$0xff]
        %v3383 = vld [vmem:[#allocation2 + $0xf7] sm:$0xff]
        %v3384 = vld [vmem:[#allocation2 + $0xff] sm:$0xff]
        %v3385 = vsel %vm1052, 0.0, %v3353
        %v3386 = vsel %vm1053, 0.0, %v3354
        %v3387 = vsel %vm1054, 0.0, %v3355
        %v3388 = vsel %vm1055, 0.0, %v3356
        %v3389 = vsel %vm1056, 0.0, %v3357
        %v3390 = vsel %vm1057, 0.0, %v3358
        %v3391 = vsel %vm1058, 0.0, %v3359
        %v3392 = vsel %vm1059, 0.0, %v3360
        %v3393 = vsel %vm1060, 0.0, %v3361
        %v3394 = vsel %vm1061, 0.0, %v3362
        %v3395 = vsel %vm1062, 0.0, %v3363
        %v3396 = vsel %vm1063, 0.0, %v3364
        %v3397 = vsel %vm1064, 0.0, %v3365
        %v3398 = vsel %vm1065, 0.0, %v3366
        %v3399 = vsel %vm1066, 0.0, %v3367
        %v3400 = vsel %vm1067, 0.0, %v3368
        %v3401 = vsel %vm1068, 0.0, %v3369
        %v3402 = vsel %vm1069, 0.0, %v3370
        %v3403 = vsel %vm1070, 0.0, %v3371
        %v3404 = vsel %vm1071, 0.0, %v3372
        %v3405 = vsel %vm1072, 0.0, %v3373
        %v3406 = vsel %vm1073, 0.0, %v3374
        %v3407 = vsel %vm1074, 0.0, %v3375
        %v3408 = vsel %vm1075, 0.0, %v3376
        %v3409 = vsel %vm1076, 0.0, %v3377
        %v3410 = vsel %vm1077, 0.0, %v3378
        %v3411 = vsel %vm1078, 0.0, %v3379
        %v3412 = vsel %vm1079, 0.0, %v3380
        %v3413 = vsel %vm1080, 0.0, %v3381
        %v3414 = vsel %vm1081, 0.0, %v3382
        %v3415 = vsel %vm1082, 0.0, %v3383
        %v3416 = vsel %vm1083, 0.0, %v3384
        %v3417 = vld [vmem:[#allocation2 + $0x8] sm:$0xff]
        %v3418 = vld [vmem:[#allocation2 + $0x10] sm:$0xff]
        %v3419 = vld [vmem:[#allocation2 + $0x18] sm:$0xff]
        %v3420 = vld [vmem:[#allocation2 + $0x20] sm:$0xff]
        %v3421 = vld [vmem:[#allocation2 + $0x28] sm:$0xff]
        %v3422 = vld [vmem:[#allocation2 + $0x30] sm:$0xff]
        %v3423 = vld [vmem:[#allocation2 + $0x38] sm:$0xff]
        %v3424 = vld [vmem:[#allocation2 + $0x40] sm:$0xff]
        %v3425 = vld [vmem:[#allocation2 + $0x48] sm:$0xff]
        %v3426 = vld [vmem:[#allocation2 + $0x50] sm:$0xff]
        %v3427 = vld [vmem:[#allocation2 + $0x58] sm:$0xff]
        %v3428 = vld [vmem:[#allocation2 + $0x60] sm:$0xff]
        %v3429 = vld [vmem:[#allocation2 + $0x68] sm:$0xff]
        %v3430 = vld [vmem:[#allocation2 + $0x70] sm:$0xff]
        %v3431 = vld [vmem:[#allocation2 + $0x78] sm:$0xff]
        %v3432 = vld [vmem:[#allocation2 + $0x80] sm:$0xff]
        %v3433 = vld [vmem:[#allocation2 + $0x88] sm:$0xff]
        %v3434 = vld [vmem:[#allocation2 + $0x90] sm:$0xff]
        %v3435 = vld [vmem:[#allocation2 + $0x98] sm:$0xff]
        %v3436 = vld [vmem:[#allocation2 + $0xa0] sm:$0xff]
        %v3437 = vld [vmem:[#allocation2 + $0xa8] sm:$0xff]
        %v3438 = vld [vmem:[#allocation2 + $0xb0] sm:$0xff]
        %v3439 = vld [vmem:[#allocation2 + $0xb8] sm:$0xff]
        %v3440 = vld [vmem:[#allocation2 + $0xc0] sm:$0xff]
        %v3441 = vld [vmem:[#allocation2 + $0xc8] sm:$0xff]
        %v3442 = vld [vmem:[#allocation2 + $0xd0] sm:$0xff]
        %v3443 = vld [vmem:[#allocation2 + $0xd8] sm:$0xff]
        %v3444 = vld [vmem:[#allocation2 + $0xe0] sm:$0xff]
        %v3445 = vld [vmem:[#allocation2 + $0xe8] sm:$0xff]
        %v3446 = vld [vmem:[#allocation2 + $0xf0] sm:$0xff]
        %v3447 = vld [vmem:[#allocation2 + $0xf8] sm:$0xff]
        %v3448 = vld [vmem:[#allocation2 + $0x100] sm:$0xff]
        %v3449 = vld [vmem:[#allocation2 + $0x9] sm:$0xff]
        %v3450 = vld [vmem:[#allocation2 + $0x11] sm:$0xff]
        %v3451 = vld [vmem:[#allocation2 + $0x19] sm:$0xff]
        %v3452 = vld [vmem:[#allocation2 + $0x21] sm:$0xff]
        %v3453 = vld [vmem:[#allocation2 + $0x29] sm:$0xff]
        %v3454 = vld [vmem:[#allocation2 + $0x31] sm:$0xff]
        %v3455 = vld [vmem:[#allocation2 + $0x39] sm:$0xff]
        %v3456 = vld [vmem:[#allocation2 + $0x41] sm:$0xff]
        %v3457 = vld [vmem:[#allocation2 + $0x49] sm:$0xff]
        %v3458 = vld [vmem:[#allocation2 + $0x51] sm:$0xff]
        %v3459 = vld [vmem:[#allocation2 + $0x59] sm:$0xff]
        %v3460 = vld [vmem:[#allocation2 + $0x61] sm:$0xff]
        %v3461 = vld [vmem:[#allocation2 + $0x69] sm:$0xff]
        %v3462 = vld [vmem:[#allocation2 + $0x71] sm:$0xff]
        %v3463 = vld [vmem:[#allocation2 + $0x79] sm:$0xff]
        %v3464 = vld [vmem:[#allocation2 + $0x81] sm:$0xff]
        %v3465 = vld [vmem:[#allocation2 + $0x89] sm:$0xff]
        %v3466 = vld [vmem:[#allocation2 + $0x91] sm:$0xff]
        %v3467 = vld [vmem:[#allocation2 + $0x99] sm:$0xff]
        %v3468 = vld [vmem:[#allocation2 + $0xa1] sm:$0xff]
        %v3469 = vld [vmem:[#allocation2 + $0xa9] sm:$0xff]
        %v3470 = vld [vmem:[#allocation2 + $0xb1] sm:$0xff]
        %v3471 = vld [vmem:[#allocation2 + $0xb9] sm:$0xff]
        %v3472 = vld [vmem:[#allocation2 + $0xc1] sm:$0xff]
        %v3473 = vld [vmem:[#allocation2 + $0xc9] sm:$0xff]
        %v3474 = vld [vmem:[#allocation2 + $0xd1] sm:$0xff]
        %v3475 = vld [vmem:[#allocation2 + $0xd9] sm:$0xff]
        %v3476 = vld [vmem:[#allocation2 + $0xe1] sm:$0xff]
        %v3477 = vld [vmem:[#allocation2 + $0xe9] sm:$0xff]
        %v3478 = vld [vmem:[#allocation2 + $0xf1] sm:$0xff]
        %v3479 = vld [vmem:[#allocation2 + $0xf9] sm:$0xff]
        %v3480 = vld [vmem:[#allocation2 + $0x101] sm:$0xff]
        %v3481 = vsel %vm1212, 0.0, %v3449
        %v3482 = vsel %vm1213, 0.0, %v3450
        %v3483 = vsel %vm1214, 0.0, %v3451
        %v3484 = vsel %vm1215, 0.0, %v3452
        %v3485 = vsel %vm1216, 0.0, %v3453
        %v3486 = vsel %vm1217, 0.0, %v3454
        %v3487 = vsel %vm1218, 0.0, %v3455
        %v3488 = vsel %vm1219, 0.0, %v3456
        %v3489 = vsel %vm1220, 0.0, %v3457
        %v3490 = vsel %vm1221, 0.0, %v3458
        %v3491 = vsel %vm1222, 0.0, %v3459
        %v3492 = vsel %vm1223, 0.0, %v3460
        %v3493 = vsel %vm1224, 0.0, %v3461
        %v3494 = vsel %vm1225, 0.0, %v3462
        %v3495 = vsel %vm1226, 0.0, %v3463
        %v3496 = vsel %vm1227, 0.0, %v3464
        %v3497 = vsel %vm1228, 0.0, %v3465
        %v3498 = vsel %vm1229, 0.0, %v3466
        %v3499 = vsel %vm1230, 0.0, %v3467
        %v3500 = vsel %vm1231, 0.0, %v3468
        %v3501 = vsel %vm1232, 0.0, %v3469
        %v3502 = vsel %vm1233, 0.0, %v3470
        %v3503 = vsel %vm1234, 0.0, %v3471
        %v3504 = vsel %vm1235, 0.0, %v3472
        %v3505 = vsel %vm1236, 0.0, %v3473
        %v3506 = vsel %vm1237, 0.0, %v3474
        %v3507 = vsel %vm1238, 0.0, %v3475
        %v3508 = vsel %vm1239, 0.0, %v3476
        %v3509 = vsel %vm1240, 0.0, %v3477
        %v3510 = vsel %vm1241, 0.0, %v3478
        %v3511 = vsel %vm1242, 0.0, %v3479
        %v3512 = vsel %vm1243, 0.0, %v3480
        %v3513 = vpack.c.bf16 %v3386, %v3385
        %v3514 = vpack.c.bf16 %v3388, %v3387
        %v3515 = vpack.c.bf16 %v3390, %v3389
        %v3516 = vpack.c.bf16 %v3392, %v3391
        %v3517 = vpack.c.bf16 %v3394, %v3393
        %v3518 = vpack.c.bf16 %v3396, %v3395
        %v3519 = vpack.c.bf16 %v3398, %v3397
        %v3520 = vpack.c.bf16 %v3400, %v3399
        %v3521 = vpack.c.bf16 %v3402, %v3401
        %v3522 = vpack.c.bf16 %v3404, %v3403
        %v3523 = vpack.c.bf16 %v3406, %v3405
        %v3524 = vpack.c.bf16 %v3408, %v3407
        %v3525 = vpack.c.bf16 %v3410, %v3409
        %v3526 = vpack.c.bf16 %v3412, %v3411
        %v3527 = vpack.c.bf16 %v3414, %v3413
        %v3528 = vpack.c.bf16 %v3416, %v3415
        %v3529 = vpack.c.bf16 %v3418, %v3417
        %v3530 = vpack.c.bf16 %v3420, %v3419
        %v3531 = vpack.c.bf16 %v3422, %v3421
        %v3532 = vpack.c.bf16 %v3424, %v3423
        %v3533 = vpack.c.bf16 %v3426, %v3425
        %v3534 = vpack.c.bf16 %v3428, %v3427
        %v3535 = vpack.c.bf16 %v3430, %v3429
        %v3536 = vpack.c.bf16 %v3432, %v3431
        %v3537 = vpack.c.bf16 %v3434, %v3433
        %v3538 = vpack.c.bf16 %v3436, %v3435
        %v3539 = vpack.c.bf16 %v3438, %v3437
        %v3540 = vpack.c.bf16 %v3440, %v3439
        %v3541 = vpack.c.bf16 %v3442, %v3441
        %v3542 = vpack.c.bf16 %v3444, %v3443
        %v3543 = vpack.c.bf16 %v3446, %v3445
        %v3544 = vpack.c.bf16 %v3448, %v3447
        %v3545 = vpack.c.bf16 %v3482, %v3481
        %v3546 = vpack.c.bf16 %v3484, %v3483
        %v3547 = vpack.c.bf16 %v3486, %v3485
        %v3548 = vpack.c.bf16 %v3488, %v3487
        %v3549 = vpack.c.bf16 %v3490, %v3489
        %v3550 = vpack.c.bf16 %v3492, %v3491
        %v3551 = vpack.c.bf16 %v3494, %v3493
        %v3552 = vpack.c.bf16 %v3496, %v3495
        %v3553 = vpack.c.bf16 %v3498, %v3497
        %v3554 = vpack.c.bf16 %v3500, %v3499
        %v3555 = vpack.c.bf16 %v3502, %v3501
        %v3556 = vpack.c.bf16 %v3504, %v3503
        %v3557 = vpack.c.bf16 %v3506, %v3505
        %v3558 = vpack.c.bf16 %v3508, %v3507
        %v3559 = vpack.c.bf16 %v3510, %v3509
        %v3560 = vpack.c.bf16 %v3512, %v3511
        %v3561 = vld [vmem:[#allocation8] sm:$0xf]
        %v3562 = vld [vmem:[#allocation8 + $0x4] sm:$0xf]
        %v3563 = vld [vmem:[#allocation8 + $0x8] sm:$0xf]
        %v3564 = vld [vmem:[#allocation8 + $0xc] sm:$0xf]
        %v3565 = vld [vmem:[#allocation8 + $0x10] sm:$0xf]
        %v3566 = vld [vmem:[#allocation8 + $0x14] sm:$0xf]
        %v3567 = vld [vmem:[#allocation8 + $0x18] sm:$0xf]
        %v3568 = vld [vmem:[#allocation8 + $0x1c] sm:$0xf]
        %v3569 = vld [vmem:[#allocation8 + $0x20] sm:$0xf]
        %v3570 = vld [vmem:[#allocation8 + $0x24] sm:$0xf]
        %v3571 = vld [vmem:[#allocation8 + $0x28] sm:$0xf]
        %v3572 = vld [vmem:[#allocation8 + $0x2c] sm:$0xf]
        %v3573 = vld [vmem:[#allocation8 + $0x30] sm:$0xf]
        %v3574 = vld [vmem:[#allocation8 + $0x34] sm:$0xf]
        %v3575 = vld [vmem:[#allocation8 + $0x38] sm:$0xf]
        %v3576 = vld [vmem:[#allocation8 + $0x3c] sm:$0xf]
        %v3577 = vld [vmem:[#allocation8 + $0x40] sm:$0xf]
        %v3578 = vld [vmem:[#allocation8 + $0x44] sm:$0xf]
        %v3579 = vld [vmem:[#allocation8 + $0x48] sm:$0xf]
        %v3580 = vld [vmem:[#allocation8 + $0x4c] sm:$0xf]
        %v3581 = vld [vmem:[#allocation8 + $0x50] sm:$0xf]
        %v3582 = vld [vmem:[#allocation8 + $0x54] sm:$0xf]
        %v3583 = vld [vmem:[#allocation8 + $0x58] sm:$0xf]
        %v3584 = vld [vmem:[#allocation8 + $0x5c] sm:$0xf]
        %v3585 = vld [vmem:[#allocation8 + $0x60] sm:$0xf]
        %v3586 = vld [vmem:[#allocation8 + $0x64] sm:$0xf]
        %v3587 = vld [vmem:[#allocation8 + $0x68] sm:$0xf]
        %v3588 = vld [vmem:[#allocation8 + $0x6c] sm:$0xf]
        %v3589 = vld [vmem:[#allocation8 + $0x70] sm:$0xf]
        %v3590 = vld [vmem:[#allocation8 + $0x74] sm:$0xf]
        %v3591 = vld [vmem:[#allocation8 + $0x78] sm:$0xf]
        %v3592 = vld [vmem:[#allocation8 + $0x7c] sm:$0xf]
        %v3593 = vld [vmem:[#allocation8 + $0x80] sm:$0xf]
        %v3594 = vld [vmem:[#allocation8 + $0x84] sm:$0xf]
        %v3595 = vld [vmem:[#allocation8 + $0x88] sm:$0xf]
        %v3596 = vld [vmem:[#allocation8 + $0x8c] sm:$0xf]
        %v3597 = vld [vmem:[#allocation8 + $0x90] sm:$0xf]
        %v3598 = vld [vmem:[#allocation8 + $0x94] sm:$0xf]
        %v3599 = vld [vmem:[#allocation8 + $0x98] sm:$0xf]
        %v3600 = vld [vmem:[#allocation8 + $0x9c] sm:$0xf]
        %v3601 = vld [vmem:[#allocation8 + $0xa0] sm:$0xf]
        %v3602 = vld [vmem:[#allocation8 + $0xa4] sm:$0xf]
        %v3603 = vld [vmem:[#allocation8 + $0xa8] sm:$0xf]
        %v3604 = vld [vmem:[#allocation8 + $0xac] sm:$0xf]
        %v3605 = vld [vmem:[#allocation8 + $0xb0] sm:$0xf]
        %v3606 = vld [vmem:[#allocation8 + $0xb4] sm:$0xf]
        %v3607 = vld [vmem:[#allocation8 + $0xb8] sm:$0xf]
        %v3608 = vld [vmem:[#allocation8 + $0xbc] sm:$0xf]
        %v3609 = vld [vmem:[#allocation2 + $0x107] sm:$0xff]
        %v3610 = vld [vmem:[#allocation2 + $0x10f] sm:$0xff]
        %v3611 = vsel %vm1052, 0.0, %v3355
        %v3612 = vsel %vm1053, 0.0, %v3356
        %v3613 = vsel %vm1054, 0.0, %v3357
        %v3614 = vsel %vm1055, 0.0, %v3358
        %v3615 = vsel %vm1056, 0.0, %v3359
        %v3616 = vsel %vm1057, 0.0, %v3360
        %v3617 = vsel %vm1058, 0.0, %v3361
        %v3618 = vsel %vm1059, 0.0, %v3362
        %v3619 = vsel %vm1060, 0.0, %v3363
        %v3620 = vsel %vm1061, 0.0, %v3364
        %v3621 = vsel %vm1062, 0.0, %v3365
        %v3622 = vsel %vm1063, 0.0, %v3366
        %v3623 = vsel %vm1064, 0.0, %v3367
        %v3624 = vsel %vm1065, 0.0, %v3368
        %v3625 = vsel %vm1066, 0.0, %v3369
        %v3626 = vsel %vm1067, 0.0, %v3370
        %v3627 = vsel %vm1068, 0.0, %v3371
        %v3628 = vsel %vm1069, 0.0, %v3372
        %v3629 = vsel %vm1070, 0.0, %v3373
        %v3630 = vsel %vm1071, 0.0, %v3374
        %v3631 = vsel %vm1072, 0.0, %v3375
        %v3632 = vsel %vm1073, 0.0, %v3376
        %v3633 = vsel %vm1074, 0.0, %v3377
        %v3634 = vsel %vm1075, 0.0, %v3378
        %v3635 = vsel %vm1076, 0.0, %v3379
        %v3636 = vsel %vm1077, 0.0, %v3380
        %v3637 = vsel %vm1078, 0.0, %v3381
        %v3638 = vsel %vm1079, 0.0, %v3382
        %v3639 = vsel %vm1080, 0.0, %v3383
        %v3640 = vsel %vm1081, 0.0, %v3384
        %v3641 = vsel %vm1082, 0.0, %v3609
        %v3642 = vsel %vm1083, 0.0, %v3610
        %v3643 = vld [vmem:[#allocation2 + $0x108] sm:$0xff]
        %v3644 = vld [vmem:[#allocation2 + $0x110] sm:$0xff]
        %v3645 = vld [vmem:[#allocation2 + $0x109] sm:$0xff]
        %v3646 = vld [vmem:[#allocation2 + $0x111] sm:$0xff]
        %v3647 = vsel %vm1212, 0.0, %v3451
        %v3648 = vsel %vm1213, 0.0, %v3452
        %v3649 = vsel %vm1214, 0.0, %v3453
        %v3650 = vsel %vm1215, 0.0, %v3454
        %v3651 = vsel %vm1216, 0.0, %v3455
        %v3652 = vsel %vm1217, 0.0, %v3456
        %v3653 = vsel %vm1218, 0.0, %v3457
        %v3654 = vsel %vm1219, 0.0, %v3458
        %v3655 = vsel %vm1220, 0.0, %v3459
        %v3656 = vsel %vm1221, 0.0, %v3460
        %v3657 = vsel %vm1222, 0.0, %v3461
        %v3658 = vsel %vm1223, 0.0, %v3462
        %v3659 = vsel %vm1224, 0.0, %v3463
        %v3660 = vsel %vm1225, 0.0, %v3464
        %v3661 = vsel %vm1226, 0.0, %v3465
        %v3662 = vsel %vm1227, 0.0, %v3466
        %v3663 = vsel %vm1228, 0.0, %v3467
        %v3664 = vsel %vm1229, 0.0, %v3468
        %v3665 = vsel %vm1230, 0.0, %v3469
        %v3666 = vsel %vm1231, 0.0, %v3470
        %v3667 = vsel %vm1232, 0.0, %v3471
        %v3668 = vsel %vm1233, 0.0, %v3472
        %v3669 = vsel %vm1234, 0.0, %v3473
        %v3670 = vsel %vm1235, 0.0, %v3474
        %v3671 = vsel %vm1236, 0.0, %v3475
        %v3672 = vsel %vm1237, 0.0, %v3476
        %v3673 = vsel %vm1238, 0.0, %v3477
        %v3674 = vsel %vm1239, 0.0, %v3478
        %v3675 = vsel %vm1240, 0.0, %v3479
        %v3676 = vsel %vm1241, 0.0, %v3480
        %v3677 = vsel %vm1242, 0.0, %v3645
        %v3678 = vsel %vm1243, 0.0, %v3646
        %v3679 = vpack.c.bf16 %v3612, %v3611
        %v3680 = vpack.c.bf16 %v3614, %v3613
        %v3681 = vpack.c.bf16 %v3616, %v3615
        %v3682 = vpack.c.bf16 %v3618, %v3617
        %v3683 = vpack.c.bf16 %v3620, %v3619
        %v3684 = vpack.c.bf16 %v3622, %v3621
        %v3685 = vpack.c.bf16 %v3624, %v3623
        %v3686 = vpack.c.bf16 %v3626, %v3625
        %v3687 = vpack.c.bf16 %v3628, %v3627
        %v3688 = vpack.c.bf16 %v3630, %v3629
        %v3689 = vpack.c.bf16 %v3632, %v3631
        %v3690 = vpack.c.bf16 %v3634, %v3633
        %v3691 = vpack.c.bf16 %v3636, %v3635
        %v3692 = vpack.c.bf16 %v3638, %v3637
        %v3693 = vpack.c.bf16 %v3640, %v3639
        %v3694 = vpack.c.bf16 %v3642, %v3641
        %v3695 = vpack.c.bf16 %v3644, %v3643
        %v3696 = vpack.c.bf16 %v3648, %v3647
        %v3697 = vpack.c.bf16 %v3650, %v3649
        %v3698 = vpack.c.bf16 %v3652, %v3651
        %v3699 = vpack.c.bf16 %v3654, %v3653
        %v3700 = vpack.c.bf16 %v3656, %v3655
        %v3701 = vpack.c.bf16 %v3658, %v3657
        %v3702 = vpack.c.bf16 %v3660, %v3659
        %v3703 = vpack.c.bf16 %v3662, %v3661
        %v3704 = vpack.c.bf16 %v3664, %v3663
        %v3705 = vpack.c.bf16 %v3666, %v3665
        %v3706 = vpack.c.bf16 %v3668, %v3667
        %v3707 = vpack.c.bf16 %v3670, %v3669
        %v3708 = vpack.c.bf16 %v3672, %v3671
        %v3709 = vpack.c.bf16 %v3674, %v3673
        %v3710 = vpack.c.bf16 %v3676, %v3675
        %v3711 = vpack.c.bf16 %v3678, %v3677
        %s3712 = scalar_lea.vmem [#allocation8], 192
        %v3713 = vld [vmem:[%s3712] sm:$0xf]
        %v3714 = vld [vmem:[%s3712 + $0x4] sm:$0xf]
        %v3715 = vld [vmem:[%s3712 + $0x8] sm:$0xf]
        %v3716 = vld [vmem:[%s3712 + $0xc] sm:$0xf]
        %v3717 = vld [vmem:[%s3712 + $0x10] sm:$0xf]
        %v3718 = vld [vmem:[%s3712 + $0x14] sm:$0xf]
        %v3719 = vld [vmem:[%s3712 + $0x18] sm:$0xf]
        %v3720 = vld [vmem:[%s3712 + $0x1c] sm:$0xf]
        %v3721 = vld [vmem:[%s3712 + $0x20] sm:$0xf]
        %v3722 = vld [vmem:[%s3712 + $0x24] sm:$0xf]
        %v3723 = vld [vmem:[%s3712 + $0x28] sm:$0xf]
        %v3724 = vld [vmem:[%s3712 + $0x2c] sm:$0xf]
        %v3725 = vld [vmem:[%s3712 + $0x30] sm:$0xf]
        %v3726 = vld [vmem:[%s3712 + $0x34] sm:$0xf]
        %v3727 = vld [vmem:[%s3712 + $0x38] sm:$0xf]
        %v3728 = vld [vmem:[%s3712 + $0x3c] sm:$0xf]
        %v3729 = vld [vmem:[%s3712 + $0x40] sm:$0xf]
        %v3730 = vld [vmem:[%s3712 + $0x44] sm:$0xf]
        %v3731 = vld [vmem:[%s3712 + $0x48] sm:$0xf]
        %v3732 = vld [vmem:[%s3712 + $0x4c] sm:$0xf]
        %v3733 = vld [vmem:[%s3712 + $0x50] sm:$0xf]
        %v3734 = vld [vmem:[%s3712 + $0x54] sm:$0xf]
        %v3735 = vld [vmem:[%s3712 + $0x58] sm:$0xf]
        %v3736 = vld [vmem:[%s3712 + $0x5c] sm:$0xf]
        %v3737 = vld [vmem:[%s3712 + $0x60] sm:$0xf]
        %v3738 = vld [vmem:[%s3712 + $0x64] sm:$0xf]
        %v3739 = vld [vmem:[%s3712 + $0x68] sm:$0xf]
        %v3740 = vld [vmem:[%s3712 + $0x6c] sm:$0xf]
        %v3741 = vld [vmem:[%s3712 + $0x70] sm:$0xf]
        %v3742 = vld [vmem:[%s3712 + $0x74] sm:$0xf]
        %v3743 = vld [vmem:[%s3712 + $0x78] sm:$0xf]
        %v3744 = vld [vmem:[%s3712 + $0x7c] sm:$0xf]
        %v3745 = vld [vmem:[%s3712 + $0x80] sm:$0xf]
        %v3746 = vld [vmem:[%s3712 + $0x84] sm:$0xf]
        %v3747 = vld [vmem:[%s3712 + $0x88] sm:$0xf]
        %v3748 = vld [vmem:[%s3712 + $0x8c] sm:$0xf]
        %v3749 = vld [vmem:[%s3712 + $0x90] sm:$0xf]
        %v3750 = vld [vmem:[%s3712 + $0x94] sm:$0xf]
        %v3751 = vld [vmem:[%s3712 + $0x98] sm:$0xf]
        %v3752 = vld [vmem:[%s3712 + $0x9c] sm:$0xf]
        %v3753 = vld [vmem:[%s3712 + $0xa0] sm:$0xf]
        %v3754 = vld [vmem:[%s3712 + $0xa4] sm:$0xf]
        %v3755 = vld [vmem:[%s3712 + $0xa8] sm:$0xf]
        %v3756 = vld [vmem:[%s3712 + $0xac] sm:$0xf]
        %v3757 = vld [vmem:[%s3712 + $0xb0] sm:$0xf]
        %v3758 = vld [vmem:[%s3712 + $0xb4] sm:$0xf]
        %v3759 = vld [vmem:[%s3712 + $0xb8] sm:$0xf]
        %v3760 = vld [vmem:[%s3712 + $0xbc] sm:$0xf]
        %v3809 = vunpack.c.l.b16 %v3713
        %v3810 = vunpack.c.l.b16 %v3714
        %v3811 = vunpack.c.l.b16 %v3715
        %v3812 = vunpack.c.l.b16 %v3716
        %v3813 = vunpack.c.l.b16 %v3717
        %v3814 = vunpack.c.l.b16 %v3718
        %v3815 = vunpack.c.l.b16 %v3719
        %v3816 = vunpack.c.l.b16 %v3720
        %v3817 = vunpack.c.l.b16 %v3721
        %v3818 = vunpack.c.l.b16 %v3722
        %v3819 = vunpack.c.l.b16 %v3723
        %v3820 = vunpack.c.l.b16 %v3724
        %v3821 = vunpack.c.l.b16 %v3725
        %v3822 = vunpack.c.l.b16 %v3726
        %v3823 = vunpack.c.l.b16 %v3727
        %v3824 = vunpack.c.l.b16 %v3728
        %v3825 = vunpack.c.l.b16 %v3729
        %v3826 = vunpack.c.l.b16 %v3730
        %v3827 = vunpack.c.l.b16 %v3731
        %v3828 = vunpack.c.l.b16 %v3732
        %v3829 = vunpack.c.l.b16 %v3733
        %v3830 = vunpack.c.l.b16 %v3734
        %v3831 = vunpack.c.l.b16 %v3735
        %v3832 = vunpack.c.l.b16 %v3736
        %v3833 = vunpack.c.l.b16 %v3737
        %v3834 = vunpack.c.l.b16 %v3738
        %v3835 = vunpack.c.l.b16 %v3739
        %v3836 = vunpack.c.l.b16 %v3740
        %v3837 = vunpack.c.l.b16 %v3741
        %v3838 = vunpack.c.l.b16 %v3742
        %v3839 = vunpack.c.l.b16 %v3743
        %v3840 = vunpack.c.l.b16 %v3744
        %v3841 = vunpack.c.l.b16 %v3745
        %v3842 = vunpack.c.l.b16 %v3746
        %v3843 = vunpack.c.l.b16 %v3747
        %v3844 = vunpack.c.l.b16 %v3748
        %v3845 = vunpack.c.l.b16 %v3749
        %v3846 = vunpack.c.l.b16 %v3750
        %v3847 = vunpack.c.l.b16 %v3751
        %v3848 = vunpack.c.l.b16 %v3752
        %v3849 = vunpack.c.l.b16 %v3753
        %v3850 = vunpack.c.l.b16 %v3754
        %v3851 = vunpack.c.l.b16 %v3755
        %v3852 = vunpack.c.l.b16 %v3756
        %v3853 = vunpack.c.l.b16 %v3757
        %v3854 = vunpack.c.l.b16 %v3758
        %v3855 = vunpack.c.l.b16 %v3759
        %v3856 = vunpack.c.l.b16 %v3760
        %v3857 = vpack.c.b16 %v3810, %v3809
        %v3858 = vpack.c.b16 %v3812, %v3811
        %v3859 = vpack.c.b16 %v3814, %v3813
        %v3860 = vpack.c.b16 %v3816, %v3815
        %v3861 = vpack.c.b16 %v3818, %v3817
        %v3862 = vpack.c.b16 %v3820, %v3819
        %v3863 = vpack.c.b16 %v3822, %v3821
        %v3864 = vpack.c.b16 %v3824, %v3823
        %v3865 = vpack.c.b16 %v3826, %v3825
        %v3866 = vpack.c.b16 %v3828, %v3827
        %v3867 = vpack.c.b16 %v3830, %v3829
        %v3868 = vpack.c.b16 %v3832, %v3831
        %v3869 = vpack.c.b16 %v3834, %v3833
        %v3870 = vpack.c.b16 %v3836, %v3835
        %v3871 = vpack.c.b16 %v3838, %v3837
        %v3872 = vpack.c.b16 %v3840, %v3839
        %v3873 = vpack.c.b16 %v3842, %v3841
        %v3874 = vpack.c.b16 %v3844, %v3843
        %v3875 = vpack.c.b16 %v3846, %v3845
        %v3876 = vpack.c.b16 %v3848, %v3847
        %v3877 = vpack.c.b16 %v3850, %v3849
        %v3878 = vpack.c.b16 %v3852, %v3851
        %v3879 = vpack.c.b16 %v3854, %v3853
        %v3880 = vpack.c.b16 %v3856, %v3855
        %3905 = vmatprep.subr.bf16.mxu0 0
        %3906 = vmatpush1.bf16.msra.mxu0 %v3857
        %3907 = vmatprep.subr.bf16.mxu0 0
        %3908 = vmatpush1.bf16.msra.mxu0 %v3858
        %3909 = vmatprep.subr.bf16.mxu0 0
        %3910 = vmatpush1.bf16.msra.mxu0 %v3859
        %3911 = vmatprep.subr.bf16.mxu0 0
        %3912 = vmatpush1.bf16.msra.mxu0 %v3860
        %3913 = vmatprep.subr.bf16.mxu0 0
        %3914 = vmatpush1.bf16.msra.mxu0 %v3861
        %3915 = vmatprep.subr.bf16.mxu0 0
        %3916 = vmatpush1.bf16.msra.mxu0 %v3862
        %3917 = vmatprep.subr.bf16.mxu0 0
        %3918 = vmatpush1.bf16.msra.mxu0 %v3863
        %3919 = vmatprep.subr.bf16.mxu0 0
        %3920 = vmatpush1.bf16.msra.mxu0 %v3864
        %3921 = vmatprep.subr.bf16.mxu0 0
        %3922 = vmatpush1.bf16.msra.mxu0 %v3865
        %3923 = vmatprep.subr.bf16.mxu0 0
        %3924 = vmatpush1.bf16.msra.mxu0 %v3866
        %3925 = vmatprep.subr.bf16.mxu0 0
        %3926 = vmatpush1.bf16.msra.mxu0 %v3867
        %3927 = vmatprep.subr.bf16.mxu0 0
        %3928 = vmatpush1.bf16.msra.mxu0 %v3868
        %3929 = vmatprep.subr.bf16.mxu0 0
        %3930 = vmatpush1.bf16.msra.mxu0 %v3869
        %3931 = vmatprep.subr.bf16.mxu0 0
        %3932 = vmatpush1.bf16.msra.mxu0 %v3870
        %3933 = vmatprep.subr.bf16.mxu0 0
        %3934 = vmatpush1.bf16.msra.mxu0 %v3871
        %3935 = vmatprep.subr.bf16.mxu0 0
        %3936 = vmatpush1.bf16.msra.mxu0 %v3872
        %3937 = vmatprep.mubr.bf16.mxu0 %v3530
        %3938 = vmatmul.mubr.bf16.gmra.mrb[0].mxu0 %v3679
        %v3939 = vpop.f32.mrb[0].mxu0
        %v3940 = vadd.f32 0.0, %v3939
        %v3941 = vpop.f32.mrb[0].mxu0
        %v3942 = vpop.f32.mrb[0].mxu0
        %v3943 = vadd.f32 0.0, %v3942
        %v3944 = vpop.f32.mrb[0].mxu0
        %3945 = vmatprep.mubr.bf16.mxu0 %v3531
        %3946 = vmatmul.mubr.bf16.gmra.mrb[0].mxu0 %v3680
        %v3947 = vpop.f32.mrb[0].mxu0
        %v3948 = vadd.f32 0.0, %v3947
        %v3949 = vpop.f32.mrb[0].mxu0
        %v3950 = vpop.f32.mrb[0].mxu0
        %v3951 = vadd.f32 0.0, %v3950
        %v3952 = vpop.f32.mrb[0].mxu0
        %3953 = vmatprep.mubr.bf16.mxu0 %v3532
        %3954 = vmatmul.mubr.bf16.gmra.mrb[0].mxu0 %v3681
        %v3955 = vpop.f32.mrb[0].mxu0
        %v3956 = vadd.f32 0.0, %v3955
        %v3957 = vpop.f32.mrb[0].mxu0
        %v3958 = vpop.f32.mrb[0].mxu0
        %v3959 = vadd.f32 0.0, %v3958
        %v3960 = vpop.f32.mrb[0].mxu0
        %3961 = vmatprep.mubr.bf16.mxu0 %v3533
        %3962 = vmatmul.mubr.bf16.gmra.mrb[0].mxu0 %v3682
        %v3963 = vpop.f32.mrb[0].mxu0
        %v3964 = vadd.f32 0.0, %v3963
        %v3965 = vpop.f32.mrb[0].mxu0
        %v3966 = vpop.f32.mrb[0].mxu0
        %v3967 = vadd.f32 0.0, %v3966
        %v3968 = vpop.f32.mrb[0].mxu0
        %3969 = vmatprep.mubr.bf16.mxu0 %v3534
        %3970 = vmatmul.mubr.bf16.gmra.mrb[0].mxu0 %v3683
        %v3971 = vpop.f32.mrb[0].mxu0
        %v3972 = vadd.f32 0.0, %v3971
        %v3973 = vpop.f32.mrb[0].mxu0
        %v3974 = vpop.f32.mrb[0].mxu0
        %v3975 = vadd.f32 0.0, %v3974
        %v3976 = vpop.f32.mrb[0].mxu0
        %3977 = vmatprep.mubr.bf16.mxu0 %v3535
        %3978 = vmatmul.mubr.bf16.gmra.mrb[0].mxu0 %v3684
        %v3979 = vpop.f32.mrb[0].mxu0
        %v3980 = vadd.f32 0.0, %v3979
        %v3981 = vpop.f32.mrb[0].mxu0
        %v3982 = vpop.f32.mrb[0].mxu0
        %v3983 = vadd.f32 0.0, %v3982
        %v3984 = vpop.f32.mrb[0].mxu0
        %3985 = vmatprep.mubr.bf16.mxu0 %v3536
        %3986 = vmatmul.mubr.bf16.gmra.mrb[0].mxu0 %v3685
        %v3987 = vpop.f32.mrb[0].mxu0
        %v3988 = vadd.f32 0.0, %v3987
        %v3989 = vpop.f32.mrb[0].mxu0
        %v3990 = vpop.f32.mrb[0].mxu0
        %v3991 = vadd.f32 0.0, %v3990
        %v3992 = vpop.f32.mrb[0].mxu0
        %3993 = vmatprep.mubr.bf16.mxu0 %v3537
        %3994 = vmatmul.mubr.bf16.gmra.mrb[0].mxu0 %v3686
        %v3995 = vpop.f32.mrb[0].mxu0
        %v3996 = vadd.f32 0.0, %v3995
        %v3997 = vpop.f32.mrb[0].mxu0
        %v3998 = vpop.f32.mrb[0].mxu0
        %v3999 = vadd.f32 0.0, %v3998
        %v4000 = vpop.f32.mrb[0].mxu0
        %4001 = vmatprep.mubr.bf16.mxu0 %v3538
        %4002 = vmatmul.mubr.bf16.gmra.mrb[0].mxu0 %v3687
        %v4003 = vpop.f32.mrb[0].mxu0
        %v4004 = vadd.f32 0.0, %v4003
        %v4005 = vpop.f32.mrb[0].mxu0
        %v4006 = vpop.f32.mrb[0].mxu0
        %v4007 = vadd.f32 0.0, %v4006
        %v4008 = vpop.f32.mrb[0].mxu0
        %4009 = vmatprep.mubr.bf16.mxu0 %v3539
        %4010 = vmatmul.mubr.bf16.gmra.mrb[0].mxu0 %v3688
        %v4011 = vpop.f32.mrb[0].mxu0
        %v4012 = vadd.f32 0.0, %v4011
        %v4013 = vpop.f32.mrb[0].mxu0
        %v4014 = vpop.f32.mrb[0].mxu0
        %v4015 = vadd.f32 0.0, %v4014
        %v4016 = vpop.f32.mrb[0].mxu0
        %4017 = vmatprep.mubr.bf16.mxu0 %v3540
        %4018 = vmatmul.mubr.bf16.gmra.mrb[0].mxu0 %v3689
        %v4019 = vpop.f32.mrb[0].mxu0
        %v4020 = vadd.f32 0.0, %v4019
        %v4021 = vpop.f32.mrb[0].mxu0
        %v4022 = vpop.f32.mrb[0].mxu0
        %v4023 = vadd.f32 0.0, %v4022
        %v4024 = vpop.f32.mrb[0].mxu0
        %4025 = vmatprep.mubr.bf16.mxu0 %v3541
        %4026 = vmatmul.mubr.bf16.gmra.mrb[0].mxu0 %v3690
        %v4027 = vpop.f32.mrb[0].mxu0
        %v4028 = vadd.f32 0.0, %v4027
        %v4029 = vpop.f32.mrb[0].mxu0
        %v4030 = vpop.f32.mrb[0].mxu0
        %v4031 = vadd.f32 0.0, %v4030
        %v4032 = vpop.f32.mrb[0].mxu0
        %4033 = vmatprep.mubr.bf16.mxu0 %v3542
        %4034 = vmatmul.mubr.bf16.gmra.mrb[0].mxu0 %v3691
        %v4035 = vpop.f32.mrb[0].mxu0
        %v4036 = vadd.f32 0.0, %v4035
        %v4037 = vpop.f32.mrb[0].mxu0
        %v4038 = vpop.f32.mrb[0].mxu0
        %v4039 = vadd.f32 0.0, %v4038
        %v4040 = vpop.f32.mrb[0].mxu0
        %4041 = vmatprep.mubr.bf16.mxu0 %v3543
        %4042 = vmatmul.mubr.bf16.gmra.mrb[0].mxu0 %v3692
        %v4043 = vpop.f32.mrb[0].mxu0
        %v4044 = vadd.f32 0.0, %v4043
        %v4045 = vpop.f32.mrb[0].mxu0
        %v4046 = vpop.f32.mrb[0].mxu0
        %v4047 = vadd.f32 0.0, %v4046
        %v4048 = vpop.f32.mrb[0].mxu0
        %4049 = vmatprep.mubr.bf16.mxu0 %v3544
        %4050 = vmatmul.mubr.bf16.gmra.mrb[0].mxu0 %v3693
        %v4051 = vpop.f32.mrb[0].mxu0
        %v4052 = vadd.f32 0.0, %v4051
        %v4053 = vpop.f32.mrb[0].mxu0
        %v4054 = vpop.f32.mrb[0].mxu0
        %v4055 = vadd.f32 0.0, %v4054
        %v4056 = vpop.f32.mrb[0].mxu0
        %4057 = vmatprep.mubr.bf16.mxu0 %v3695
        %4058 = vmatmul.mubr.bf16.gmra.mrb[0].mxu0 %v3694
        %v4059 = vpop.f32.mrb[0].mxu0
        %v4060 = vadd.f32 0.0, %v4059
        %v4061 = vpop.f32.mrb[0].mxu0
        %v4062 = vpop.f32.mrb[0].mxu0
        %v4063 = vadd.f32 0.0, %v4062
        %v4064 = vpop.f32.mrb[0].mxu0
        %4065 = vdwg.mxu0
        %4066 = vmatprep.subr.bf16.mxu0 0
        %4067 = vmatpush1.bf16.msra.mxu0 %v3873
        %4068 = vmatprep.subr.bf16.mxu0 0
        %4069 = vmatpush1.bf16.msra.mxu0 %v3874
        %4070 = vmatprep.subr.bf16.mxu0 0
        %4071 = vmatpush1.bf16.msra.mxu0 %v3875
        %4072 = vmatprep.subr.bf16.mxu0 0
        %4073 = vmatpush1.bf16.msra.mxu0 %v3876
        %4074 = vmatprep.subr.bf16.mxu0 0
        %4075 = vmatpush1.bf16.msra.mxu0 %v3877
        %4076 = vmatprep.subr.bf16.mxu0 0
        %4077 = vmatpush1.bf16.msra.mxu0 %v3878
        %4078 = vmatprep.subr.bf16.mxu0 0
        %4079 = vmatpush1.bf16.msra.mxu0 %v3879
        %4080 = vmatprep.subr.bf16.mxu0 0
        %4081 = vmatpush1.bf16.msra.mxu0 %v3880
        %4082 = vmatprep.subr.bf16.mxu0 0
        %4083 = vmatpush1.bf16.msra.mxu0 0
        %4084 = vmatprep.subr.bf16.mxu0 0
        %4085 = vmatpush1.bf16.msra.mxu0 0
        %4086 = vmatprep.subr.bf16.mxu0 0
        %4087 = vmatpush1.bf16.msra.mxu0 0
        %4088 = vmatprep.subr.bf16.mxu0 0
        %4089 = vmatpush1.bf16.msra.mxu0 0
        %4090 = vmatprep.subr.bf16.mxu0 0
        %4091 = vmatpush1.bf16.msra.mxu0 0
        %4092 = vmatprep.subr.bf16.mxu0 0
        %4093 = vmatpush1.bf16.msra.mxu0 0
        %4094 = vmatprep.subr.bf16.mxu0 0
        %4095 = vmatpush1.bf16.msra.mxu0 0
        %4096 = vmatprep.subr.bf16.mxu0 0
        %4097 = vmatpush1.bf16.msra.mxu0 0
        %4098 = vmatprep.mubr.bf16.mxu0 0
        %4099 = vmatmul.mubr.bf16.gmra.mrb[0].mxu0 %v3696
        %v4100 = vpop.f32.mrb[0].mxu0
        %v4101 = vadd.f32 %v3940, %v4100
        %v4102 = vpop.f32.mrb[0].mxu0
        %v4103 = vpop.f32.mrb[0].mxu0
        %v4104 = vadd.f32 %v3943, %v4103
        %v4105 = vpop.f32.mrb[0].mxu0
        %4106 = vmatprep.mubr.bf16.mxu0 0
        %4107 = vmatmul.mubr.bf16.gmra.mrb[0].mxu0 %v3697
        %v4108 = vpop.f32.mrb[0].mxu0
        %v4109 = vadd.f32 %v3948, %v4108
        %v4110 = vpop.f32.mrb[0].mxu0
        %v4111 = vpop.f32.mrb[0].mxu0
        %v4112 = vadd.f32 %v3951, %v4111
        %v4113 = vpop.f32.mrb[0].mxu0
        %4114 = vmatprep.mubr.bf16.mxu0 0
        %4115 = vmatmul.mubr.bf16.gmra.mrb[0].mxu0 %v3698
        %v4116 = vpop.f32.mrb[0].mxu0
        %v4117 = vadd.f32 %v3956, %v4116
        %v4118 = vpop.f32.mrb[0].mxu0
        %v4119 = vpop.f32.mrb[0].mxu0
        %v4120 = vadd.f32 %v3959, %v4119
        %v4121 = vpop.f32.mrb[0].mxu0
        %4122 = vmatprep.mubr.bf16.mxu0 0
        %4123 = vmatmul.mubr.bf16.gmra.mrb[0].mxu0 %v3699
        %v4124 = vpop.f32.mrb[0].mxu0
        %v4125 = vadd.f32 %v3964, %v4124
        %v4126 = vpop.f32.mrb[0].mxu0
        %v4127 = vpop.f32.mrb[0].mxu0
        %v4128 = vadd.f32 %v3967, %v4127
        %v4129 = vpop.f32.mrb[0].mxu0
        %4130 = vmatprep.mubr.bf16.mxu0 0
        %4131 = vmatmul.mubr.bf16.gmra.mrb[0].mxu0 %v3700
        %v4132 = vpop.f32.mrb[0].mxu0
        %v4133 = vadd.f32 %v3972, %v4132
        %v4134 = vpop.f32.mrb[0].mxu0
        %v4135 = vpop.f32.mrb[0].mxu0
        %v4136 = vadd.f32 %v3975, %v4135
        %v4137 = vpop.f32.mrb[0].mxu0
        %4138 = vmatprep.mubr.bf16.mxu0 0
        %4139 = vmatmul.mubr.bf16.gmra.mrb[0].mxu0 %v3701
        %v4140 = vpop.f32.mrb[0].mxu0
        %v4141 = vadd.f32 %v3980, %v4140
        %v4142 = vpop.f32.mrb[0].mxu0
        %v4143 = vpop.f32.mrb[0].mxu0
        %v4144 = vadd.f32 %v3983, %v4143
        %v4145 = vpop.f32.mrb[0].mxu0
        %4146 = vmatprep.mubr.bf16.mxu0 0
        %4147 = vmatmul.mubr.bf16.gmra.mrb[0].mxu0 %v3702
        %v4148 = vpop.f32.mrb[0].mxu0
        %v4149 = vadd.f32 %v3988, %v4148
        %v4150 = vpop.f32.mrb[0].mxu0
        %v4151 = vpop.f32.mrb[0].mxu0
        %v4152 = vadd.f32 %v3991, %v4151
        %v4153 = vpop.f32.mrb[0].mxu0
        %4154 = vmatprep.mubr.bf16.mxu0 0
        %4155 = vmatmul.mubr.bf16.gmra.mrb[0].mxu0 %v3703
        %v4156 = vpop.f32.mrb[0].mxu0
        %v4157 = vadd.f32 %v3996, %v4156
        %v4158 = vpop.f32.mrb[0].mxu0
        %v4159 = vpop.f32.mrb[0].mxu0
        %v4160 = vadd.f32 %v3999, %v4159
        %v4161 = vpop.f32.mrb[0].mxu0
        %4162 = vmatprep.mubr.bf16.mxu0 0
        %4163 = vmatmul.mubr.bf16.gmra.mrb[0].mxu0 %v3704
        %v4164 = vpop.f32.mrb[0].mxu0
        %v4165 = vadd.f32 %v4004, %v4164
        %v4166 = vpop.f32.mrb[0].mxu0
        %v4167 = vpop.f32.mrb[0].mxu0
        %v4168 = vadd.f32 %v4007, %v4167
        %v4169 = vpop.f32.mrb[0].mxu0
        %4170 = vmatprep.mubr.bf16.mxu0 0
        %4171 = vmatmul.mubr.bf16.gmra.mrb[0].mxu0 %v3705
        %v4172 = vpop.f32.mrb[0].mxu0
        %v4173 = vadd.f32 %v4012, %v4172
        %v4174 = vpop.f32.mrb[0].mxu0
        %v4175 = vpop.f32.mrb[0].mxu0
        %v4176 = vadd.f32 %v4015, %v4175
        %v4177 = vpop.f32.mrb[0].mxu0
        %4178 = vmatprep.mubr.bf16.mxu0 0
        %4179 = vmatmul.mubr.bf16.gmra.mrb[0].mxu0 %v3706
        %v4180 = vpop.f32.mrb[0].mxu0
        %v4181 = vadd.f32 %v4020, %v4180
        %v4182 = vpop.f32.mrb[0].mxu0
        %v4183 = vpop.f32.mrb[0].mxu0
        %v4184 = vadd.f32 %v4023, %v4183
        %v4185 = vpop.f32.mrb[0].mxu0
        %4186 = vmatprep.mubr.bf16.mxu0 0
        %4187 = vmatmul.mubr.bf16.gmra.mrb[0].mxu0 %v3707
        %v4188 = vpop.f32.mrb[0].mxu0
        %v4189 = vadd.f32 %v4028, %v4188
        %v4190 = vpop.f32.mrb[0].mxu0
        %v4191 = vpop.f32.mrb[0].mxu0
        %v4192 = vadd.f32 %v4031, %v4191
        %v4193 = vpop.f32.mrb[0].mxu0
        %4194 = vmatprep.mubr.bf16.mxu0 0
        %4195 = vmatmul.mubr.bf16.gmra.mrb[0].mxu0 %v3708
        %v4196 = vpop.f32.mrb[0].mxu0
        %v4197 = vadd.f32 %v4036, %v4196
        %v4198 = vpop.f32.mrb[0].mxu0
        %v4199 = vpop.f32.mrb[0].mxu0
        %v4200 = vadd.f32 %v4039, %v4199
        %v4201 = vpop.f32.mrb[0].mxu0
        %4202 = vmatprep.mubr.bf16.mxu0 0
        %4203 = vmatmul.mubr.bf16.gmra.mrb[0].mxu0 %v3709
        %v4204 = vpop.f32.mrb[0].mxu0
        %v4205 = vadd.f32 %v4044, %v4204
        %v4206 = vpop.f32.mrb[0].mxu0
        %v4207 = vpop.f32.mrb[0].mxu0
        %v4208 = vadd.f32 %v4047, %v4207
        %v4209 = vpop.f32.mrb[0].mxu0
        %4210 = vmatprep.mubr.bf16.mxu0 0
        %4211 = vmatmul.mubr.bf16.gmra.mrb[0].mxu0 %v3710
        %v4212 = vpop.f32.mrb[0].mxu0
        %v4213 = vadd.f32 %v4052, %v4212
        %v4214 = vpop.f32.mrb[0].mxu0
        %v4215 = vpop.f32.mrb[0].mxu0
        %v4216 = vadd.f32 %v4055, %v4215
        %v4217 = vpop.f32.mrb[0].mxu0
        %4218 = vmatprep.mubr.bf16.mxu0 0
        %4219 = vmatmul.mubr.bf16.gmra.mrb[0].mxu0 %v3711
        %v4220 = vpop.f32.mrb[0].mxu0
        %v4221 = vadd.f32 %v4060, %v4220
        %v4222 = vpop.f32.mrb[0].mxu0
        %v4223 = vpop.f32.mrb[0].mxu0
        %v4224 = vadd.f32 %v4063, %v4223
        %v4225 = vpop.f32.mrb[0].mxu0
        %4226 = vdwg.mxu0
        %v4275 = vunpack.c.l.b16 %v3561
        %v4276 = vunpack.c.l.b16 %v3562
        %v4277 = vunpack.c.l.b16 %v3563
        %v4278 = vunpack.c.l.b16 %v3564
        %v4279 = vunpack.c.l.b16 %v3565
        %v4280 = vunpack.c.l.b16 %v3566
        %v4281 = vunpack.c.l.b16 %v3567
        %v4282 = vunpack.c.l.b16 %v3568
        %v4283 = vunpack.c.l.b16 %v3569
        %v4284 = vunpack.c.l.b16 %v3570
        %v4285 = vunpack.c.l.b16 %v3571
        %v4286 = vunpack.c.l.b16 %v3572
        %v4287 = vunpack.c.l.b16 %v3573
        %v4288 = vunpack.c.l.b16 %v3574
        %v4289 = vunpack.c.l.b16 %v3575
        %v4290 = vunpack.c.l.b16 %v3576
        %v4291 = vunpack.c.l.b16 %v3577
        %v4292 = vunpack.c.l.b16 %v3578
        %v4293 = vunpack.c.l.b16 %v3579
        %v4294 = vunpack.c.l.b16 %v3580
        %v4295 = vunpack.c.l.b16 %v3581
        %v4296 = vunpack.c.l.b16 %v3582
        %v4297 = vunpack.c.l.b16 %v3583
        %v4298 = vunpack.c.l.b16 %v3584
        %v4299 = vunpack.c.l.b16 %v3585
        %v4300 = vunpack.c.l.b16 %v3586
        %v4301 = vunpack.c.l.b16 %v3587
        %v4302 = vunpack.c.l.b16 %v3588
        %v4303 = vunpack.c.l.b16 %v3589
        %v4304 = vunpack.c.l.b16 %v3590
        %v4305 = vunpack.c.l.b16 %v3591
        %v4306 = vunpack.c.l.b16 %v3592
        %v4307 = vunpack.c.l.b16 %v3593
        %v4308 = vunpack.c.l.b16 %v3594
        %v4309 = vunpack.c.l.b16 %v3595
        %v4310 = vunpack.c.l.b16 %v3596
        %v4311 = vunpack.c.l.b16 %v3597
        %v4312 = vunpack.c.l.b16 %v3598
        %v4313 = vunpack.c.l.b16 %v3599
        %v4314 = vunpack.c.l.b16 %v3600
        %v4315 = vunpack.c.l.b16 %v3601
        %v4316 = vunpack.c.l.b16 %v3602
        %v4317 = vunpack.c.l.b16 %v3603
        %v4318 = vunpack.c.l.b16 %v3604
        %v4319 = vunpack.c.l.b16 %v3605
        %v4320 = vunpack.c.l.b16 %v3606
        %v4321 = vunpack.c.l.b16 %v3607
        %v4322 = vunpack.c.l.b16 %v3608
        %v4323 = vpack.c.b16 %v4276, %v4275
        %v4324 = vpack.c.b16 %v4278, %v4277
        %v4325 = vpack.c.b16 %v4280, %v4279
        %v4326 = vpack.c.b16 %v4282, %v4281
        %v4327 = vpack.c.b16 %v4284, %v4283
        %v4328 = vpack.c.b16 %v4286, %v4285
        %v4329 = vpack.c.b16 %v4288, %v4287
        %v4330 = vpack.c.b16 %v4290, %v4289
        %v4331 = vpack.c.b16 %v4292, %v4291
        %v4332 = vpack.c.b16 %v4294, %v4293
        %v4333 = vpack.c.b16 %v4296, %v4295
        %v4334 = vpack.c.b16 %v4298, %v4297
        %v4335 = vpack.c.b16 %v4300, %v4299
        %v4336 = vpack.c.b16 %v4302, %v4301
        %v4337 = vpack.c.b16 %v4304, %v4303
        %v4338 = vpack.c.b16 %v4306, %v4305
        %v4339 = vpack.c.b16 %v4308, %v4307
        %v4340 = vpack.c.b16 %v4310, %v4309
        %v4341 = vpack.c.b16 %v4312, %v4311
        %v4342 = vpack.c.b16 %v4314, %v4313
        %v4343 = vpack.c.b16 %v4316, %v4315
        %v4344 = vpack.c.b16 %v4318, %v4317
        %v4345 = vpack.c.b16 %v4320, %v4319
        %v4346 = vpack.c.b16 %v4322, %v4321
        %4371 = vmatprep.subr.bf16.mxu0 0
        %4372 = vmatpush1.bf16.msra.mxu0 %v4323
        %4373 = vmatprep.subr.bf16.mxu0 0
        %4374 = vmatpush1.bf16.msra.mxu0 %v4324
        %4375 = vmatprep.subr.bf16.mxu0 0
        %4376 = vmatpush1.bf16.msra.mxu0 %v4325
        %4377 = vmatprep.subr.bf16.mxu0 0
        %4378 = vmatpush1.bf16.msra.mxu0 %v4326
        %4379 = vmatprep.subr.bf16.mxu0 0
        %4380 = vmatpush1.bf16.msra.mxu0 %v4327
        %4381 = vmatprep.subr.bf16.mxu0 0
        %4382 = vmatpush1.bf16.msra.mxu0 %v4328
        %4383 = vmatprep.subr.bf16.mxu0 0
        %4384 = vmatpush1.bf16.msra.mxu0 %v4329
        %4385 = vmatprep.subr.bf16.mxu0 0
        %4386 = vmatpush1.bf16.msra.mxu0 %v4330
        %4387 = vmatprep.subr.bf16.mxu0 0
        %4388 = vmatpush1.bf16.msra.mxu0 %v4331
        %4389 = vmatprep.subr.bf16.mxu0 0
        %4390 = vmatpush1.bf16.msra.mxu0 %v4332
        %4391 = vmatprep.subr.bf16.mxu0 0
        %4392 = vmatpush1.bf16.msra.mxu0 %v4333
        %4393 = vmatprep.subr.bf16.mxu0 0
        %4394 = vmatpush1.bf16.msra.mxu0 %v4334
        %4395 = vmatprep.subr.bf16.mxu0 0
        %4396 = vmatpush1.bf16.msra.mxu0 %v4335
        %4397 = vmatprep.subr.bf16.mxu0 0
        %4398 = vmatpush1.bf16.msra.mxu0 %v4336
        %4399 = vmatprep.subr.bf16.mxu0 0
        %4400 = vmatpush1.bf16.msra.mxu0 %v4337
        %4401 = vmatprep.subr.bf16.mxu0 0
        %4402 = vmatpush1.bf16.msra.mxu0 %v4338
        %4403 = vmatprep.mubr.bf16.mxu0 %v3529
        %4404 = vmatmul.mubr.bf16.gmra.mrb[0].mxu0 %v3513
        %v4405 = vpop.f32.mrb[0].mxu0
        %v4406 = vadd.f32 %v4101, %v4405
        %v4407 = vpop.f32.mrb[0].mxu0
        %v4408 = vpop.f32.mrb[0].mxu0
        %v4409 = vadd.f32 %v4104, %v4408
        %v4410 = vpop.f32.mrb[0].mxu0
        %4411 = vmatprep.mubr.bf16.mxu0 %v3530
        %4412 = vmatmul.mubr.bf16.gmra.mrb[0].mxu0 %v3514
        %v4413 = vpop.f32.mrb[0].mxu0
        %v4414 = vadd.f32 %v4109, %v4413
        %v4415 = vpop.f32.mrb[0].mxu0
        %v4416 = vpop.f32.mrb[0].mxu0
        %v4417 = vadd.f32 %v4112, %v4416
        %v4418 = vpop.f32.mrb[0].mxu0
        %4419 = vmatprep.mubr.bf16.mxu0 %v3531
        %4420 = vmatmul.mubr.bf16.gmra.mrb[0].mxu0 %v3515
        %v4421 = vpop.f32.mrb[0].mxu0
        %v4422 = vadd.f32 %v4117, %v4421
        %v4423 = vpop.f32.mrb[0].mxu0
        %v4424 = vpop.f32.mrb[0].mxu0
        %v4425 = vadd.f32 %v4120, %v4424
        %v4426 = vpop.f32.mrb[0].mxu0
        %4427 = vmatprep.mubr.bf16.mxu0 %v3532
        %4428 = vmatmul.mubr.bf16.gmra.mrb[0].mxu0 %v3516
        %v4429 = vpop.f32.mrb[0].mxu0
        %v4430 = vadd.f32 %v4125, %v4429
        %v4431 = vpop.f32.mrb[0].mxu0
        %v4432 = vpop.f32.mrb[0].mxu0
        %v4433 = vadd.f32 %v4128, %v4432
        %v4434 = vpop.f32.mrb[0].mxu0
        %4435 = vmatprep.mubr.bf16.mxu0 %v3533
        %4436 = vmatmul.mubr.bf16.gmra.mrb[0].mxu0 %v3517
        %v4437 = vpop.f32.mrb[0].mxu0
        %v4438 = vadd.f32 %v4133, %v4437
        %v4439 = vpop.f32.mrb[0].mxu0
        %v4440 = vpop.f32.mrb[0].mxu0
        %v4441 = vadd.f32 %v4136, %v4440
        %v4442 = vpop.f32.mrb[0].mxu0
        %4443 = vmatprep.mubr.bf16.mxu0 %v3534
        %4444 = vmatmul.mubr.bf16.gmra.mrb[0].mxu0 %v3518
        %v4445 = vpop.f32.mrb[0].mxu0
        %v4446 = vadd.f32 %v4141, %v4445
        %v4447 = vpop.f32.mrb[0].mxu0
        %v4448 = vpop.f32.mrb[0].mxu0
        %v4449 = vadd.f32 %v4144, %v4448
        %v4450 = vpop.f32.mrb[0].mxu0
        %4451 = vmatprep.mubr.bf16.mxu0 %v3535
        %4452 = vmatmul.mubr.bf16.gmra.mrb[0].mxu0 %v3519
        %v4453 = vpop.f32.mrb[0].mxu0
        %v4454 = vadd.f32 %v4149, %v4453
        %v4455 = vpop.f32.mrb[0].mxu0
        %v4456 = vpop.f32.mrb[0].mxu0
        %v4457 = vadd.f32 %v4152, %v4456
        %v4458 = vpop.f32.mrb[0].mxu0
        %4459 = vmatprep.mubr.bf16.mxu0 %v3536
        %4460 = vmatmul.mubr.bf16.gmra.mrb[0].mxu0 %v3520
        %v4461 = vpop.f32.mrb[0].mxu0
        %v4462 = vadd.f32 %v4157, %v4461
        %v4463 = vpop.f32.mrb[0].mxu0
        %v4464 = vpop.f32.mrb[0].mxu0
        %v4465 = vadd.f32 %v4160, %v4464
        %v4466 = vpop.f32.mrb[0].mxu0
        %4467 = vmatprep.mubr.bf16.mxu0 %v3537
        %4468 = vmatmul.mubr.bf16.gmra.mrb[0].mxu0 %v3521
        %v4469 = vpop.f32.mrb[0].mxu0
        %v4470 = vadd.f32 %v4165, %v4469
        %v4471 = vpop.f32.mrb[0].mxu0
        %v4472 = vpop.f32.mrb[0].mxu0
        %v4473 = vadd.f32 %v4168, %v4472
        %v4474 = vpop.f32.mrb[0].mxu0
        %4475 = vmatprep.mubr.bf16.mxu0 %v3538
        %4476 = vmatmul.mubr.bf16.gmra.mrb[0].mxu0 %v3522
        %v4477 = vpop.f32.mrb[0].mxu0
        %v4478 = vadd.f32 %v4173, %v4477
        %v4479 = vpop.f32.mrb[0].mxu0
        %v4480 = vpop.f32.mrb[0].mxu0
        %v4481 = vadd.f32 %v4176, %v4480
        %v4482 = vpop.f32.mrb[0].mxu0
        %4483 = vmatprep.mubr.bf16.mxu0 %v3539
        %4484 = vmatmul.mubr.bf16.gmra.mrb[0].mxu0 %v3523
        %v4485 = vpop.f32.mrb[0].mxu0
        %v4486 = vadd.f32 %v4181, %v4485
        %v4487 = vpop.f32.mrb[0].mxu0
        %v4488 = vpop.f32.mrb[0].mxu0
        %v4489 = vadd.f32 %v4184, %v4488
        %v4490 = vpop.f32.mrb[0].mxu0
        %4491 = vmatprep.mubr.bf16.mxu0 %v3540
        %4492 = vmatmul.mubr.bf16.gmra.mrb[0].mxu0 %v3524
        %v4493 = vpop.f32.mrb[0].mxu0
        %v4494 = vadd.f32 %v4189, %v4493
        %v4495 = vpop.f32.mrb[0].mxu0
        %v4496 = vpop.f32.mrb[0].mxu0
        %v4497 = vadd.f32 %v4192, %v4496
        %v4498 = vpop.f32.mrb[0].mxu0
        %4499 = vmatprep.mubr.bf16.mxu0 %v3541
        %4500 = vmatmul.mubr.bf16.gmra.mrb[0].mxu0 %v3525
        %v4501 = vpop.f32.mrb[0].mxu0
        %v4502 = vadd.f32 %v4197, %v4501
        %v4503 = vpop.f32.mrb[0].mxu0
        %v4504 = vpop.f32.mrb[0].mxu0
        %v4505 = vadd.f32 %v4200, %v4504
        %v4506 = vpop.f32.mrb[0].mxu0
        %4507 = vmatprep.mubr.bf16.mxu0 %v3542
        %4508 = vmatmul.mubr.bf16.gmra.mrb[0].mxu0 %v3526
        %v4509 = vpop.f32.mrb[0].mxu0
        %v4510 = vadd.f32 %v4205, %v4509
        %v4511 = vpop.f32.mrb[0].mxu0
        %v4512 = vpop.f32.mrb[0].mxu0
        %v4513 = vadd.f32 %v4208, %v4512
        %v4514 = vpop.f32.mrb[0].mxu0
        %4515 = vmatprep.mubr.bf16.mxu0 %v3543
        %4516 = vmatmul.mubr.bf16.gmra.mrb[0].mxu0 %v3527
        %v4517 = vpop.f32.mrb[0].mxu0
        %v4518 = vadd.f32 %v4213, %v4517
        %v4519 = vpop.f32.mrb[0].mxu0
        %v4520 = vpop.f32.mrb[0].mxu0
        %v4521 = vadd.f32 %v4216, %v4520
        %v4522 = vpop.f32.mrb[0].mxu0
        %4523 = vmatprep.mubr.bf16.mxu0 %v3544
        %4524 = vmatmul.mubr.bf16.gmra.mrb[0].mxu0 %v3528
        %v4525 = vpop.f32.mrb[0].mxu0
        %v4526 = vadd.f32 %v4221, %v4525
        %v4527 = vpop.f32.mrb[0].mxu0
        %v4528 = vpop.f32.mrb[0].mxu0
        %v4529 = vadd.f32 %v4224, %v4528
        %v4530 = vpop.f32.mrb[0].mxu0
        %4531 = vdwg.mxu0
        %4532 = vmatprep.subr.bf16.mxu0 0
        %4533 = vmatpush1.bf16.msra.mxu0 %v4339
        %4534 = vmatprep.subr.bf16.mxu0 0
        %4535 = vmatpush1.bf16.msra.mxu0 %v4340
        %4536 = vmatprep.subr.bf16.mxu0 0
        %4537 = vmatpush1.bf16.msra.mxu0 %v4341
        %4538 = vmatprep.subr.bf16.mxu0 0
        %4539 = vmatpush1.bf16.msra.mxu0 %v4342
        %4540 = vmatprep.subr.bf16.mxu0 0
        %4541 = vmatpush1.bf16.msra.mxu0 %v4343
        %4542 = vmatprep.subr.bf16.mxu0 0
        %4543 = vmatpush1.bf16.msra.mxu0 %v4344
        %4544 = vmatprep.subr.bf16.mxu0 0
        %4545 = vmatpush1.bf16.msra.mxu0 %v4345
        %4546 = vmatprep.subr.bf16.mxu0 0
        %4547 = vmatpush1.bf16.msra.mxu0 %v4346
        %4548 = vmatprep.subr.bf16.mxu0 0
        %4549 = vmatpush1.bf16.msra.mxu0 0
        %4550 = vmatprep.subr.bf16.mxu0 0
        %4551 = vmatpush1.bf16.msra.mxu0 0
        %4552 = vmatprep.subr.bf16.mxu0 0
        %4553 = vmatpush1.bf16.msra.mxu0 0
        %4554 = vmatprep.subr.bf16.mxu0 0
        %4555 = vmatpush1.bf16.msra.mxu0 0
        %4556 = vmatprep.subr.bf16.mxu0 0
        %4557 = vmatpush1.bf16.msra.mxu0 0
        %4558 = vmatprep.subr.bf16.mxu0 0
        %4559 = vmatpush1.bf16.msra.mxu0 0
        %4560 = vmatprep.subr.bf16.mxu0 0
        %4561 = vmatpush1.bf16.msra.mxu0 0
        %4562 = vmatprep.subr.bf16.mxu0 0
        %4563 = vmatpush1.bf16.msra.mxu0 0
        %4564 = vmatprep.mubr.bf16.mxu0 0
        %4565 = vmatmul.mubr.bf16.gmra.mrb[0].mxu0 %v3545
        %v4566 = vpop.f32.mrb[0].mxu0
        %v4567 = vadd.f32 %v4406, %v4566
        %v4568 = vpop.f32.mrb[0].mxu0
        %v4569 = vpop.f32.mrb[0].mxu0
        %v4570 = vadd.f32 %v4409, %v4569
        %v4571 = vpop.f32.mrb[0].mxu0
        %4572 = vmatprep.mubr.bf16.mxu0 0
        %4573 = vmatmul.mubr.bf16.gmra.mrb[0].mxu0 %v3546
        %v4574 = vpop.f32.mrb[0].mxu0
        %v4575 = vadd.f32 %v4414, %v4574
        %v4576 = vpop.f32.mrb[0].mxu0
        %v4577 = vpop.f32.mrb[0].mxu0
        %v4578 = vadd.f32 %v4417, %v4577
        %v4579 = vpop.f32.mrb[0].mxu0
        %4580 = vmatprep.mubr.bf16.mxu0 0
        %4581 = vmatmul.mubr.bf16.gmra.mrb[0].mxu0 %v3547
        %v4582 = vpop.f32.mrb[0].mxu0
        %v4583 = vadd.f32 %v4422, %v4582
        %v4584 = vpop.f32.mrb[0].mxu0
        %v4585 = vpop.f32.mrb[0].mxu0
        %v4586 = vadd.f32 %v4425, %v4585
        %v4587 = vpop.f32.mrb[0].mxu0
        %4588 = vmatprep.mubr.bf16.mxu0 0
        %4589 = vmatmul.mubr.bf16.gmra.mrb[0].mxu0 %v3548
        %v4590 = vpop.f32.mrb[0].mxu0
        %v4591 = vadd.f32 %v4430, %v4590
        %v4592 = vpop.f32.mrb[0].mxu0
        %v4593 = vpop.f32.mrb[0].mxu0
        %v4594 = vadd.f32 %v4433, %v4593
        %v4595 = vpop.f32.mrb[0].mxu0
        %4596 = vmatprep.mubr.bf16.mxu0 0
        %4597 = vmatmul.mubr.bf16.gmra.mrb[0].mxu0 %v3549
        %v4598 = vpop.f32.mrb[0].mxu0
        %v4599 = vadd.f32 %v4438, %v4598
        %v4600 = vpop.f32.mrb[0].mxu0
        %v4601 = vpop.f32.mrb[0].mxu0
        %v4602 = vadd.f32 %v4441, %v4601
        %v4603 = vpop.f32.mrb[0].mxu0
        %4604 = vmatprep.mubr.bf16.mxu0 0
        %4605 = vmatmul.mubr.bf16.gmra.mrb[0].mxu0 %v3550
        %v4606 = vpop.f32.mrb[0].mxu0
        %v4607 = vadd.f32 %v4446, %v4606
        %v4608 = vpop.f32.mrb[0].mxu0
        %v4609 = vpop.f32.mrb[0].mxu0
        %v4610 = vadd.f32 %v4449, %v4609
        %v4611 = vpop.f32.mrb[0].mxu0
        %4612 = vmatprep.mubr.bf16.mxu0 0
        %4613 = vmatmul.mubr.bf16.gmra.mrb[0].mxu0 %v3551
        %v4614 = vpop.f32.mrb[0].mxu0
        %v4615 = vadd.f32 %v4454, %v4614
        %v4616 = vpop.f32.mrb[0].mxu0
        %v4617 = vpop.f32.mrb[0].mxu0
        %v4618 = vadd.f32 %v4457, %v4617
        %v4619 = vpop.f32.mrb[0].mxu0
        %4620 = vmatprep.mubr.bf16.mxu0 0
        %4621 = vmatmul.mubr.bf16.gmra.mrb[0].mxu0 %v3552
        %v4622 = vpop.f32.mrb[0].mxu0
        %v4623 = vadd.f32 %v4462, %v4622
        %v4624 = vpop.f32.mrb[0].mxu0
        %v4625 = vpop.f32.mrb[0].mxu0
        %v4626 = vadd.f32 %v4465, %v4625
        %v4627 = vpop.f32.mrb[0].mxu0
        %4628 = vmatprep.mubr.bf16.mxu0 0
        %4629 = vmatmul.mubr.bf16.gmra.mrb[0].mxu0 %v3553
        %v4630 = vpop.f32.mrb[0].mxu0
        %v4631 = vadd.f32 %v4470, %v4630
        %v4632 = vpop.f32.mrb[0].mxu0
        %v4633 = vpop.f32.mrb[0].mxu0
        %v4634 = vadd.f32 %v4473, %v4633
        %v4635 = vpop.f32.mrb[0].mxu0
        %4636 = vmatprep.mubr.bf16.mxu0 0
        %4637 = vmatmul.mubr.bf16.gmra.mrb[0].mxu0 %v3554
        %v4638 = vpop.f32.mrb[0].mxu0
        %v4639 = vadd.f32 %v4478, %v4638
        %v4640 = vpop.f32.mrb[0].mxu0
        %v4641 = vpop.f32.mrb[0].mxu0
        %v4642 = vadd.f32 %v4481, %v4641
        %v4643 = vpop.f32.mrb[0].mxu0
        %4644 = vmatprep.mubr.bf16.mxu0 0
        %4645 = vmatmul.mubr.bf16.gmra.mrb[0].mxu0 %v3555
        %v4646 = vpop.f32.mrb[0].mxu0
        %v4647 = vadd.f32 %v4486, %v4646
        %v4648 = vpop.f32.mrb[0].mxu0
        %v4649 = vpop.f32.mrb[0].mxu0
        %v4650 = vadd.f32 %v4489, %v4649
        %v4651 = vpop.f32.mrb[0].mxu0
        %4652 = vmatprep.mubr.bf16.mxu0 0
        %4653 = vmatmul.mubr.bf16.gmra.mrb[0].mxu0 %v3556
        %v4654 = vpop.f32.mrb[0].mxu0
        %v4655 = vadd.f32 %v4494, %v4654
        %v4656 = vpop.f32.mrb[0].mxu0
        %v4657 = vpop.f32.mrb[0].mxu0
        %v4658 = vadd.f32 %v4497, %v4657
        %v4659 = vpop.f32.mrb[0].mxu0
        %4660 = vmatprep.mubr.bf16.mxu0 0
        %4661 = vmatmul.mubr.bf16.gmra.mrb[0].mxu0 %v3557
        %v4662 = vpop.f32.mrb[0].mxu0
        %v4663 = vadd.f32 %v4502, %v4662
        %v4664 = vpop.f32.mrb[0].mxu0
        %v4665 = vpop.f32.mrb[0].mxu0
        %v4666 = vadd.f32 %v4505, %v4665
        %v4667 = vpop.f32.mrb[0].mxu0
        %4668 = vmatprep.mubr.bf16.mxu0 0
        %4669 = vmatmul.mubr.bf16.gmra.mrb[0].mxu0 %v3558
        %v4670 = vpop.f32.mrb[0].mxu0
        %v4671 = vadd.f32 %v4510, %v4670
        %v4672 = vpop.f32.mrb[0].mxu0
        %v4673 = vpop.f32.mrb[0].mxu0
        %v4674 = vadd.f32 %v4513, %v4673
        %v4675 = vpop.f32.mrb[0].mxu0
        %4676 = vmatprep.mubr.bf16.mxu0 0
        %4677 = vmatmul.mubr.bf16.gmra.mrb[0].mxu0 %v3559
        %v4678 = vpop.f32.mrb[0].mxu0
        %v4679 = vadd.f32 %v4518, %v4678
        %v4680 = vpop.f32.mrb[0].mxu0
        %v4681 = vpop.f32.mrb[0].mxu0
        %v4682 = vadd.f32 %v4521, %v4681
        %v4683 = vpop.f32.mrb[0].mxu0
        %4684 = vmatprep.mubr.bf16.mxu0 0
        %4685 = vmatmul.mubr.bf16.gmra.mrb[0].mxu0 %v3560
        %v4686 = vpop.f32.mrb[0].mxu0
        %v4687 = vadd.f32 %v4526, %v4686
        %v4688 = vpop.f32.mrb[0].mxu0
        %v4689 = vpop.f32.mrb[0].mxu0
        %v4690 = vadd.f32 %v4529, %v4689
        %v4691 = vpop.f32.mrb[0].mxu0
        %4692 = vdwg.mxu0
        %v4693 = vld [vmem:[#allocation2 + $0x27] sm:$0xff]
        %v4694 = vld [vmem:[#allocation2 + $0x2f] sm:$0xff]
        %v4695 = vld [vmem:[#allocation2 + $0x37] sm:$0xff]
        %v4696 = vld [vmem:[#allocation2 + $0x3f] sm:$0xff]
        %v4697 = vld [vmem:[#allocation2 + $0x47] sm:$0xff]
        %v4698 = vld [vmem:[#allocation2 + $0x4f] sm:$0xff]
        %v4699 = vld [vmem:[#allocation2 + $0x57] sm:$0xff]
        %v4700 = vld [vmem:[#allocation2 + $0x5f] sm:$0xff]
        %v4701 = vld [vmem:[#allocation2 + $0x67] sm:$0xff]
        %v4702 = vld [vmem:[#allocation2 + $0x6f] sm:$0xff]
        %v4703 = vld [vmem:[#allocation2 + $0x77] sm:$0xff]
        %v4704 = vld [vmem:[#allocation2 + $0x7f] sm:$0xff]
        %v4705 = vld [vmem:[#allocation2 + $0x87] sm:$0xff]
        %v4706 = vld [vmem:[#allocation2 + $0x8f] sm:$0xff]
        %v4707 = vld [vmem:[#allocation2 + $0x97] sm:$0xff]
        %v4708 = vld [vmem:[#allocation2 + $0x9f] sm:$0xff]
        %v4709 = vld [vmem:[#allocation2 + $0xa7] sm:$0xff]
        %v4710 = vld [vmem:[#allocation2 + $0xaf] sm:$0xff]
        %v4711 = vld [vmem:[#allocation2 + $0xb7] sm:$0xff]
        %v4712 = vld [vmem:[#allocation2 + $0xbf] sm:$0xff]
        %v4713 = vld [vmem:[#allocation2 + $0xc7] sm:$0xff]
        %v4714 = vld [vmem:[#allocation2 + $0xcf] sm:$0xff]
        %v4715 = vld [vmem:[#allocation2 + $0xd7] sm:$0xff]
        %v4716 = vld [vmem:[#allocation2 + $0xdf] sm:$0xff]
        %v4717 = vld [vmem:[#allocation2 + $0xe7] sm:$0xff]
        %v4718 = vld [vmem:[#allocation2 + $0xef] sm:$0xff]
        %v4719 = vld [vmem:[#allocation2 + $0xf7] sm:$0xff]
        %v4720 = vld [vmem:[#allocation2 + $0xff] sm:$0xff]
        %v4721 = vld [vmem:[#allocation2 + $0x107] sm:$0xff]
        %v4722 = vld [vmem:[#allocation2 + $0x10f] sm:$0xff]
        %v4723 = vld [vmem:[#allocation2 + $0x117] sm:$0xff]
        %v4724 = vld [vmem:[#allocation2 + $0x11f] sm:$0xff]
        %v4725 = vsel %vm1052, 0.0, %v4693
        %v4726 = vsel %vm1053, 0.0, %v4694
        %v4727 = vsel %vm1054, 0.0, %v4695
        %v4728 = vsel %vm1055, 0.0, %v4696
        %v4729 = vsel %vm1056, 0.0, %v4697
        %v4730 = vsel %vm1057, 0.0, %v4698
        %v4731 = vsel %vm1058, 0.0, %v4699
        %v4732 = vsel %vm1059, 0.0, %v4700
        %v4733 = vsel %vm1060, 0.0, %v4701
        %v4734 = vsel %vm1061, 0.0, %v4702
        %v4735 = vsel %vm1062, 0.0, %v4703
        %v4736 = vsel %vm1063, 0.0, %v4704
        %v4737 = vsel %vm1064, 0.0, %v4705
        %v4738 = vsel %vm1065, 0.0, %v4706
        %v4739 = vsel %vm1066, 0.0, %v4707
        %v4740 = vsel %vm1067, 0.0, %v4708
        %v4741 = vsel %vm1068, 0.0, %v4709
        %v4742 = vsel %vm1069, 0.0, %v4710
        %v4743 = vsel %vm1070, 0.0, %v4711
        %v4744 = vsel %vm1071, 0.0, %v4712
        %v4745 = vsel %vm1072, 0.0, %v4713
        %v4746 = vsel %vm1073, 0.0, %v4714
        %v4747 = vsel %vm1074, 0.0, %v4715
        %v4748 = vsel %vm1075, 0.0, %v4716
        %v4749 = vsel %vm1076, 0.0, %v4717
        %v4750 = vsel %vm1077, 0.0, %v4718
        %v4751 = vsel %vm1078, 0.0, %v4719
        %v4752 = vsel %vm1079, 0.0, %v4720
        %v4753 = vsel %vm1080, 0.0, %v4721
        %v4754 = vsel %vm1081, 0.0, %v4722
        %v4755 = vsel %vm1082, 0.0, %v4723
        %v4756 = vsel %vm1083, 0.0, %v4724
        %v4757 = vld [vmem:[#allocation2 + $0x28] sm:$0xff]
        %v4758 = vld [vmem:[#allocation2 + $0x30] sm:$0xff]
        %v4759 = vld [vmem:[#allocation2 + $0x38] sm:$0xff]
        %v4760 = vld [vmem:[#allocation2 + $0x40] sm:$0xff]
        %v4761 = vld [vmem:[#allocation2 + $0x48] sm:$0xff]
        %v4762 = vld [vmem:[#allocation2 + $0x50] sm:$0xff]
        %v4763 = vld [vmem:[#allocation2 + $0x58] sm:$0xff]
        %v4764 = vld [vmem:[#allocation2 + $0x60] sm:$0xff]
        %v4765 = vld [vmem:[#allocation2 + $0x68] sm:$0xff]
        %v4766 = vld [vmem:[#allocation2 + $0x70] sm:$0xff]
        %v4767 = vld [vmem:[#allocation2 + $0x78] sm:$0xff]
        %v4768 = vld [vmem:[#allocation2 + $0x80] sm:$0xff]
        %v4769 = vld [vmem:[#allocation2 + $0x88] sm:$0xff]
        %v4770 = vld [vmem:[#allocation2 + $0x90] sm:$0xff]
        %v4771 = vld [vmem:[#allocation2 + $0x98] sm:$0xff]
        %v4772 = vld [vmem:[#allocation2 + $0xa0] sm:$0xff]
        %v4773 = vld [vmem:[#allocation2 + $0xa8] sm:$0xff]
        %v4774 = vld [vmem:[#allocation2 + $0xb0] sm:$0xff]
        %v4775 = vld [vmem:[#allocation2 + $0xb8] sm:$0xff]
        %v4776 = vld [vmem:[#allocation2 + $0xc0] sm:$0xff]
        %v4777 = vld [vmem:[#allocation2 + $0xc8] sm:$0xff]
        %v4778 = vld [vmem:[#allocation2 + $0xd0] sm:$0xff]
        %v4779 = vld [vmem:[#allocation2 + $0xd8] sm:$0xff]
        %v4780 = vld [vmem:[#allocation2 + $0xe0] sm:$0xff]
        %v4781 = vld [vmem:[#allocation2 + $0xe8] sm:$0xff]
        %v4782 = vld [vmem:[#allocation2 + $0xf0] sm:$0xff]
        %v4783 = vld [vmem:[#allocation2 + $0xf8] sm:$0xff]
        %v4784 = vld [vmem:[#allocation2 + $0x100] sm:$0xff]
        %v4785 = vld [vmem:[#allocation2 + $0x108] sm:$0xff]
        %v4786 = vld [vmem:[#allocation2 + $0x110] sm:$0xff]
        %v4787 = vld [vmem:[#allocation2 + $0x118] sm:$0xff]
        %v4788 = vld [vmem:[#allocation2 + $0x120] sm:$0xff]
        %v4789 = vld [vmem:[#allocation2 + $0x29] sm:$0xff]
        %v4790 = vld [vmem:[#allocation2 + $0x31] sm:$0xff]
        %v4791 = vld [vmem:[#allocation2 + $0x39] sm:$0xff]
        %v4792 = vld [vmem:[#allocation2 + $0x41] sm:$0xff]
        %v4793 = vld [vmem:[#allocation2 + $0x49] sm:$0xff]
        %v4794 = vld [vmem:[#allocation2 + $0x51] sm:$0xff]
        %v4795 = vld [vmem:[#allocation2 + $0x59] sm:$0xff]
        %v4796 = vld [vmem:[#allocation2 + $0x61] sm:$0xff]
        %v4797 = vld [vmem:[#allocation2 + $0x69] sm:$0xff]
        %v4798 = vld [vmem:[#allocation2 + $0x71] sm:$0xff]
        %v4799 = vld [vmem:[#allocation2 + $0x79] sm:$0xff]
        %v4800 = vld [vmem:[#allocation2 + $0x81] sm:$0xff]
        %v4801 = vld [vmem:[#allocation2 + $0x89] sm:$0xff]
        %v4802 = vld [vmem:[#allocation2 + $0x91] sm:$0xff]
        %v4803 = vld [vmem:[#allocation2 + $0x99] sm:$0xff]
        %v4804 = vld [vmem:[#allocation2 + $0xa1] sm:$0xff]
        %v4805 = vld [vmem:[#allocation2 + $0xa9] sm:$0xff]
        %v4806 = vld [vmem:[#allocation2 + $0xb1] sm:$0xff]
        %v4807 = vld [vmem:[#allocation2 + $0xb9] sm:$0xff]
        %v4808 = vld [vmem:[#allocation2 + $0xc1] sm:$0xff]
        %v4809 = vld [vmem:[#allocation2 + $0xc9] sm:$0xff]
        %v4810 = vld [vmem:[#allocation2 + $0xd1] sm:$0xff]
        %v4811 = vld [vmem:[#allocation2 + $0xd9] sm:$0xff]
        %v4812 = vld [vmem:[#allocation2 + $0xe1] sm:$0xff]
        %v4813 = vld [vmem:[#allocation2 + $0xe9] sm:$0xff]
        %v4814 = vld [vmem:[#allocation2 + $0xf1] sm:$0xff]
        %v4815 = vld [vmem:[#allocation2 + $0xf9] sm:$0xff]
        %v4816 = vld [vmem:[#allocation2 + $0x101] sm:$0xff]
        %v4817 = vld [vmem:[#allocation2 + $0x109] sm:$0xff]
        %v4818 = vld [vmem:[#allocation2 + $0x111] sm:$0xff]
        %v4819 = vld [vmem:[#allocation2 + $0x119] sm:$0xff]
        %v4820 = vld [vmem:[#allocation2 + $0x121] sm:$0xff]
        %v4821 = vsel %vm1212, 0.0, %v4789
        %v4822 = vsel %vm1213, 0.0, %v4790
        %v4823 = vsel %vm1214, 0.0, %v4791
        %v4824 = vsel %vm1215, 0.0, %v4792
        %v4825 = vsel %vm1216, 0.0, %v4793
        %v4826 = vsel %vm1217, 0.0, %v4794
        %v4827 = vsel %vm1218, 0.0, %v4795
        %v4828 = vsel %vm1219, 0.0, %v4796
        %v4829 = vsel %vm1220, 0.0, %v4797
        %v4830 = vsel %vm1221, 0.0, %v4798
        %v4831 = vsel %vm1222, 0.0, %v4799
        %v4832 = vsel %vm1223, 0.0, %v4800
        %v4833 = vsel %vm1224, 0.0, %v4801
        %v4834 = vsel %vm1225, 0.0, %v4802
        %v4835 = vsel %vm1226, 0.0, %v4803
        %v4836 = vsel %vm1227, 0.0, %v4804
        %v4837 = vsel %vm1228, 0.0, %v4805
        %v4838 = vsel %vm1229, 0.0, %v4806
        %v4839 = vsel %vm1230, 0.0, %v4807
        %v4840 = vsel %vm1231, 0.0, %v4808
        %v4841 = vsel %vm1232, 0.0, %v4809
        %v4842 = vsel %vm1233, 0.0, %v4810
        %v4843 = vsel %vm1234, 0.0, %v4811
        %v4844 = vsel %vm1235, 0.0, %v4812
        %v4845 = vsel %vm1236, 0.0, %v4813
        %v4846 = vsel %vm1237, 0.0, %v4814
        %v4847 = vsel %vm1238, 0.0, %v4815
        %v4848 = vsel %vm1239, 0.0, %v4816
        %v4849 = vsel %vm1240, 0.0, %v4817
        %v4850 = vsel %vm1241, 0.0, %v4818
        %v4851 = vsel %vm1242, 0.0, %v4819
        %v4852 = vsel %vm1243, 0.0, %v4820
        %v4853 = vpack.c.bf16 %v4726, %v4725
        %v4854 = vpack.c.bf16 %v4728, %v4727
        %v4855 = vpack.c.bf16 %v4730, %v4729
        %v4856 = vpack.c.bf16 %v4732, %v4731
        %v4857 = vpack.c.bf16 %v4734, %v4733
        %v4858 = vpack.c.bf16 %v4736, %v4735
        %v4859 = vpack.c.bf16 %v4738, %v4737
        %v4860 = vpack.c.bf16 %v4740, %v4739
        %v4861 = vpack.c.bf16 %v4742, %v4741
        %v4862 = vpack.c.bf16 %v4744, %v4743
        %v4863 = vpack.c.bf16 %v4746, %v4745
        %v4864 = vpack.c.bf16 %v4748, %v4747
        %v4865 = vpack.c.bf16 %v4750, %v4749
        %v4866 = vpack.c.bf16 %v4752, %v4751
        %v4867 = vpack.c.bf16 %v4754, %v4753
        %v4868 = vpack.c.bf16 %v4756, %v4755
        %v4869 = vpack.c.bf16 %v4758, %v4757
        %v4870 = vpack.c.bf16 %v4760, %v4759
        %v4871 = vpack.c.bf16 %v4762, %v4761
        %v4872 = vpack.c.bf16 %v4764, %v4763
        %v4873 = vpack.c.bf16 %v4766, %v4765
        %v4874 = vpack.c.bf16 %v4768, %v4767
        %v4875 = vpack.c.bf16 %v4770, %v4769
        %v4876 = vpack.c.bf16 %v4772, %v4771
        %v4877 = vpack.c.bf16 %v4774, %v4773
        %v4878 = vpack.c.bf16 %v4776, %v4775
        %v4879 = vpack.c.bf16 %v4778, %v4777
        %v4880 = vpack.c.bf16 %v4780, %v4779
        %v4881 = vpack.c.bf16 %v4782, %v4781
        %v4882 = vpack.c.bf16 %v4784, %v4783
        %v4883 = vpack.c.bf16 %v4786, %v4785
        %v4884 = vpack.c.bf16 %v4788, %v4787
        %v4885 = vpack.c.bf16 %v4822, %v4821
        %v4886 = vpack.c.bf16 %v4824, %v4823
        %v4887 = vpack.c.bf16 %v4826, %v4825
        %v4888 = vpack.c.bf16 %v4828, %v4827
        %v4889 = vpack.c.bf16 %v4830, %v4829
        %v4890 = vpack.c.bf16 %v4832, %v4831
        %v4891 = vpack.c.bf16 %v4834, %v4833
        %v4892 = vpack.c.bf16 %v4836, %v4835
        %v4893 = vpack.c.bf16 %v4838, %v4837
        %v4894 = vpack.c.bf16 %v4840, %v4839
        %v4895 = vpack.c.bf16 %v4842, %v4841
        %v4896 = vpack.c.bf16 %v4844, %v4843
        %v4897 = vpack.c.bf16 %v4846, %v4845
        %v4898 = vpack.c.bf16 %v4848, %v4847
        %v4899 = vpack.c.bf16 %v4850, %v4849
        %v4900 = vpack.c.bf16 %v4852, %v4851
        %s4901 = scalar_lea.vmem [#allocation8], 384
        %v4902 = vld [vmem:[%s4901] sm:$0xf]
        %v4903 = vld [vmem:[%s4901 + $0x4] sm:$0xf]
        %v4904 = vld [vmem:[%s4901 + $0x8] sm:$0xf]
        %v4905 = vld [vmem:[%s4901 + $0xc] sm:$0xf]
        %v4906 = vld [vmem:[%s4901 + $0x10] sm:$0xf]
        %v4907 = vld [vmem:[%s4901 + $0x14] sm:$0xf]
        %v4908 = vld [vmem:[%s4901 + $0x18] sm:$0xf]
        %v4909 = vld [vmem:[%s4901 + $0x1c] sm:$0xf]
        %v4910 = vld [vmem:[%s4901 + $0x20] sm:$0xf]
        %v4911 = vld [vmem:[%s4901 + $0x24] sm:$0xf]
        %v4912 = vld [vmem:[%s4901 + $0x28] sm:$0xf]
        %v4913 = vld [vmem:[%s4901 + $0x2c] sm:$0xf]
        %v4914 = vld [vmem:[%s4901 + $0x30] sm:$0xf]
        %v4915 = vld [vmem:[%s4901 + $0x34] sm:$0xf]
        %v4916 = vld [vmem:[%s4901 + $0x38] sm:$0xf]
        %v4917 = vld [vmem:[%s4901 + $0x3c] sm:$0xf]
        %v4918 = vld [vmem:[%s4901 + $0x40] sm:$0xf]
        %v4919 = vld [vmem:[%s4901 + $0x44] sm:$0xf]
        %v4920 = vld [vmem:[%s4901 + $0x48] sm:$0xf]
        %v4921 = vld [vmem:[%s4901 + $0x4c] sm:$0xf]
        %v4922 = vld [vmem:[%s4901 + $0x50] sm:$0xf]
        %v4923 = vld [vmem:[%s4901 + $0x54] sm:$0xf]
        %v4924 = vld [vmem:[%s4901 + $0x58] sm:$0xf]
        %v4925 = vld [vmem:[%s4901 + $0x5c] sm:$0xf]
        %v4926 = vld [vmem:[%s4901 + $0x60] sm:$0xf]
        %v4927 = vld [vmem:[%s4901 + $0x64] sm:$0xf]
        %v4928 = vld [vmem:[%s4901 + $0x68] sm:$0xf]
        %v4929 = vld [vmem:[%s4901 + $0x6c] sm:$0xf]
        %v4930 = vld [vmem:[%s4901 + $0x70] sm:$0xf]
        %v4931 = vld [vmem:[%s4901 + $0x74] sm:$0xf]
        %v4932 = vld [vmem:[%s4901 + $0x78] sm:$0xf]
        %v4933 = vld [vmem:[%s4901 + $0x7c] sm:$0xf]
        %v4934 = vld [vmem:[%s4901 + $0x80] sm:$0xf]
        %v4935 = vld [vmem:[%s4901 + $0x84] sm:$0xf]
        %v4936 = vld [vmem:[%s4901 + $0x88] sm:$0xf]
        %v4937 = vld [vmem:[%s4901 + $0x8c] sm:$0xf]
        %v4938 = vld [vmem:[%s4901 + $0x90] sm:$0xf]
        %v4939 = vld [vmem:[%s4901 + $0x94] sm:$0xf]
        %v4940 = vld [vmem:[%s4901 + $0x98] sm:$0xf]
        %v4941 = vld [vmem:[%s4901 + $0x9c] sm:$0xf]
        %v4942 = vld [vmem:[%s4901 + $0xa0] sm:$0xf]
        %v4943 = vld [vmem:[%s4901 + $0xa4] sm:$0xf]
        %v4944 = vld [vmem:[%s4901 + $0xa8] sm:$0xf]
        %v4945 = vld [vmem:[%s4901 + $0xac] sm:$0xf]
        %v4946 = vld [vmem:[%s4901 + $0xb0] sm:$0xf]
        %v4947 = vld [vmem:[%s4901 + $0xb4] sm:$0xf]
        %v4948 = vld [vmem:[%s4901 + $0xb8] sm:$0xf]
        %v4949 = vld [vmem:[%s4901 + $0xbc] sm:$0xf]
        %v4998 = vunpack.c.l.b16 %v4902
        %v4999 = vunpack.c.l.b16 %v4903
        %v5000 = vunpack.c.l.b16 %v4904
        %v5001 = vunpack.c.l.b16 %v4905
        %v5002 = vunpack.c.l.b16 %v4906
        %v5003 = vunpack.c.l.b16 %v4907
        %v5004 = vunpack.c.l.b16 %v4908
        %v5005 = vunpack.c.l.b16 %v4909
        %v5006 = vunpack.c.l.b16 %v4910
        %v5007 = vunpack.c.l.b16 %v4911
        %v5008 = vunpack.c.l.b16 %v4912
        %v5009 = vunpack.c.l.b16 %v4913
        %v5010 = vunpack.c.l.b16 %v4914
        %v5011 = vunpack.c.l.b16 %v4915
        %v5012 = vunpack.c.l.b16 %v4916
        %v5013 = vunpack.c.l.b16 %v4917
        %v5014 = vunpack.c.l.b16 %v4918
        %v5015 = vunpack.c.l.b16 %v4919
        %v5016 = vunpack.c.l.b16 %v4920
        %v5017 = vunpack.c.l.b16 %v4921
        %v5018 = vunpack.c.l.b16 %v4922
        %v5019 = vunpack.c.l.b16 %v4923
        %v5020 = vunpack.c.l.b16 %v4924
        %v5021 = vunpack.c.l.b16 %v4925
        %v5022 = vunpack.c.l.b16 %v4926
        %v5023 = vunpack.c.l.b16 %v4927
        %v5024 = vunpack.c.l.b16 %v4928
        %v5025 = vunpack.c.l.b16 %v4929
        %v5026 = vunpack.c.l.b16 %v4930
        %v5027 = vunpack.c.l.b16 %v4931
        %v5028 = vunpack.c.l.b16 %v4932
        %v5029 = vunpack.c.l.b16 %v4933
        %v5030 = vunpack.c.l.b16 %v4934
        %v5031 = vunpack.c.l.b16 %v4935
        %v5032 = vunpack.c.l.b16 %v4936
        %v5033 = vunpack.c.l.b16 %v4937
        %v5034 = vunpack.c.l.b16 %v4938
        %v5035 = vunpack.c.l.b16 %v4939
        %v5036 = vunpack.c.l.b16 %v4940
        %v5037 = vunpack.c.l.b16 %v4941
        %v5038 = vunpack.c.l.b16 %v4942
        %v5039 = vunpack.c.l.b16 %v4943
        %v5040 = vunpack.c.l.b16 %v4944
        %v5041 = vunpack.c.l.b16 %v4945
        %v5042 = vunpack.c.l.b16 %v4946
        %v5043 = vunpack.c.l.b16 %v4947
        %v5044 = vunpack.c.l.b16 %v4948
        %v5045 = vunpack.c.l.b16 %v4949
        %v5046 = vpack.c.b16 %v4999, %v4998
        %v5047 = vpack.c.b16 %v5001, %v5000
        %v5048 = vpack.c.b16 %v5003, %v5002
        %v5049 = vpack.c.b16 %v5005, %v5004
        %v5050 = vpack.c.b16 %v5007, %v5006
        %v5051 = vpack.c.b16 %v5009, %v5008
        %v5052 = vpack.c.b16 %v5011, %v5010
        %v5053 = vpack.c.b16 %v5013, %v5012
        %v5054 = vpack.c.b16 %v5015, %v5014
        %v5055 = vpack.c.b16 %v5017, %v5016
        %v5056 = vpack.c.b16 %v5019, %v5018
        %v5057 = vpack.c.b16 %v5021, %v5020
        %v5058 = vpack.c.b16 %v5023, %v5022
        %v5059 = vpack.c.b16 %v5025, %v5024
        %v5060 = vpack.c.b16 %v5027, %v5026
        %v5061 = vpack.c.b16 %v5029, %v5028
        %v5062 = vpack.c.b16 %v5031, %v5030
        %v5063 = vpack.c.b16 %v5033, %v5032
        %v5064 = vpack.c.b16 %v5035, %v5034
        %v5065 = vpack.c.b16 %v5037, %v5036
        %v5066 = vpack.c.b16 %v5039, %v5038
        %v5067 = vpack.c.b16 %v5041, %v5040
        %v5068 = vpack.c.b16 %v5043, %v5042
        %v5069 = vpack.c.b16 %v5045, %v5044
        %5094 = vmatprep.subr.bf16.mxu0 0
        %5095 = vmatpush1.bf16.msra.mxu0 %v5046
        %5096 = vmatprep.subr.bf16.mxu0 0
        %5097 = vmatpush1.bf16.msra.mxu0 %v5047
        %5098 = vmatprep.subr.bf16.mxu0 0
        %5099 = vmatpush1.bf16.msra.mxu0 %v5048
        %5100 = vmatprep.subr.bf16.mxu0 0
        %5101 = vmatpush1.bf16.msra.mxu0 %v5049
        %5102 = vmatprep.subr.bf16.mxu0 0
        %5103 = vmatpush1.bf16.msra.mxu0 %v5050
        %5104 = vmatprep.subr.bf16.mxu0 0
        %5105 = vmatpush1.bf16.msra.mxu0 %v5051
        %5106 = vmatprep.subr.bf16.mxu0 0
        %5107 = vmatpush1.bf16.msra.mxu0 %v5052
        %5108 = vmatprep.subr.bf16.mxu0 0
        %5109 = vmatpush1.bf16.msra.mxu0 %v5053
        %5110 = vmatprep.subr.bf16.mxu0 0
        %5111 = vmatpush1.bf16.msra.mxu0 %v5054
        %5112 = vmatprep.subr.bf16.mxu0 0
        %5113 = vmatpush1.bf16.msra.mxu0 %v5055
        %5114 = vmatprep.subr.bf16.mxu0 0
        %5115 = vmatpush1.bf16.msra.mxu0 %v5056
        %5116 = vmatprep.subr.bf16.mxu0 0
        %5117 = vmatpush1.bf16.msra.mxu0 %v5057
        %5118 = vmatprep.subr.bf16.mxu0 0
        %5119 = vmatpush1.bf16.msra.mxu0 %v5058
        %5120 = vmatprep.subr.bf16.mxu0 0
        %5121 = vmatpush1.bf16.msra.mxu0 %v5059
        %5122 = vmatprep.subr.bf16.mxu0 0
        %5123 = vmatpush1.bf16.msra.mxu0 %v5060
        %5124 = vmatprep.subr.bf16.mxu0 0
        %5125 = vmatpush1.bf16.msra.mxu0 %v5061
        %5126 = vmatprep.mubr.bf16.mxu0 %v4869
        %5127 = vmatmul.mubr.bf16.gmra.mrb[0].mxu0 %v4853
        %v5128 = vpop.f32.mrb[0].mxu0
        %v5129 = vadd.f32 0.0, %v5128
        %v5130 = vpop.f32.mrb[0].mxu0
        %v5131 = vpop.f32.mrb[0].mxu0
        %v5132 = vadd.f32 0.0, %v5131
        %v5133 = vpop.f32.mrb[0].mxu0
        %5134 = vmatprep.mubr.bf16.mxu0 %v4870
        %5135 = vmatmul.mubr.bf16.gmra.mrb[0].mxu0 %v4854
        %v5136 = vpop.f32.mrb[0].mxu0
        %v5137 = vadd.f32 0.0, %v5136
        %v5138 = vpop.f32.mrb[0].mxu0
        %v5139 = vpop.f32.mrb[0].mxu0
        %v5140 = vadd.f32 0.0, %v5139
        %v5141 = vpop.f32.mrb[0].mxu0
        %5142 = vmatprep.mubr.bf16.mxu0 %v4871
        %5143 = vmatmul.mubr.bf16.gmra.mrb[0].mxu0 %v4855
        %v5144 = vpop.f32.mrb[0].mxu0
        %v5145 = vadd.f32 0.0, %v5144
        %v5146 = vpop.f32.mrb[0].mxu0
        %v5147 = vpop.f32.mrb[0].mxu0
        %v5148 = vadd.f32 0.0, %v5147
        %v5149 = vpop.f32.mrb[0].mxu0
        %5150 = vmatprep.mubr.bf16.mxu0 %v4872
        %5151 = vmatmul.mubr.bf16.gmra.mrb[0].mxu0 %v4856
        %v5152 = vpop.f32.mrb[0].mxu0
        %v5153 = vadd.f32 0.0, %v5152
        %v5154 = vpop.f32.mrb[0].mxu0
        %v5155 = vpop.f32.mrb[0].mxu0
        %v5156 = vadd.f32 0.0, %v5155
        %v5157 = vpop.f32.mrb[0].mxu0
        %5158 = vmatprep.mubr.bf16.mxu0 %v4873
        %5159 = vmatmul.mubr.bf16.gmra.mrb[0].mxu0 %v4857
        %v5160 = vpop.f32.mrb[0].mxu0
        %v5161 = vadd.f32 0.0, %v5160
        %v5162 = vpop.f32.mrb[0].mxu0
        %v5163 = vpop.f32.mrb[0].mxu0
        %v5164 = vadd.f32 0.0, %v5163
        %v5165 = vpop.f32.mrb[0].mxu0
        %5166 = vmatprep.mubr.bf16.mxu0 %v4874
        %5167 = vmatmul.mubr.bf16.gmra.mrb[0].mxu0 %v4858
        %v5168 = vpop.f32.mrb[0].mxu0
        %v5169 = vadd.f32 0.0, %v5168
        %v5170 = vpop.f32.mrb[0].mxu0
        %v5171 = vpop.f32.mrb[0].mxu0
        %v5172 = vadd.f32 0.0, %v5171
        %v5173 = vpop.f32.mrb[0].mxu0
        %5174 = vmatprep.mubr.bf16.mxu0 %v4875
        %5175 = vmatmul.mubr.bf16.gmra.mrb[0].mxu0 %v4859
        %v5176 = vpop.f32.mrb[0].mxu0
        %v5177 = vadd.f32 0.0, %v5176
        %v5178 = vpop.f32.mrb[0].mxu0
        %v5179 = vpop.f32.mrb[0].mxu0
        %v5180 = vadd.f32 0.0, %v5179
        %v5181 = vpop.f32.mrb[0].mxu0
        %5182 = vmatprep.mubr.bf16.mxu0 %v4876
        %5183 = vmatmul.mubr.bf16.gmra.mrb[0].mxu0 %v4860
        %v5184 = vpop.f32.mrb[0].mxu0
        %v5185 = vadd.f32 0.0, %v5184
        %v5186 = vpop.f32.mrb[0].mxu0
        %v5187 = vpop.f32.mrb[0].mxu0
        %v5188 = vadd.f32 0.0, %v5187
        %v5189 = vpop.f32.mrb[0].mxu0
        %5190 = vmatprep.mubr.bf16.mxu0 %v4877
        %5191 = vmatmul.mubr.bf16.gmra.mrb[0].mxu0 %v4861
        %v5192 = vpop.f32.mrb[0].mxu0
        %v5193 = vadd.f32 0.0, %v5192
        %v5194 = vpop.f32.mrb[0].mxu0
        %v5195 = vpop.f32.mrb[0].mxu0
        %v5196 = vadd.f32 0.0, %v5195
        %v5197 = vpop.f32.mrb[0].mxu0
        %5198 = vmatprep.mubr.bf16.mxu0 %v4878
        %5199 = vmatmul.mubr.bf16.gmra.mrb[0].mxu0 %v4862
        %v5200 = vpop.f32.mrb[0].mxu0
        %v5201 = vadd.f32 0.0, %v5200
        %v5202 = vpop.f32.mrb[0].mxu0
        %v5203 = vpop.f32.mrb[0].mxu0
        %v5204 = vadd.f32 0.0, %v5203
        %v5205 = vpop.f32.mrb[0].mxu0
        %5206 = vmatprep.mubr.bf16.mxu0 %v4879
        %5207 = vmatmul.mubr.bf16.gmra.mrb[0].mxu0 %v4863
        %v5208 = vpop.f32.mrb[0].mxu0
        %v5209 = vadd.f32 0.0, %v5208
        %v5210 = vpop.f32.mrb[0].mxu0
        %v5211 = vpop.f32.mrb[0].mxu0
        %v5212 = vadd.f32 0.0, %v5211
        %v5213 = vpop.f32.mrb[0].mxu0
        %5214 = vmatprep.mubr.bf16.mxu0 %v4880
        %5215 = vmatmul.mubr.bf16.gmra.mrb[0].mxu0 %v4864
        %v5216 = vpop.f32.mrb[0].mxu0
        %v5217 = vadd.f32 0.0, %v5216
        %v5218 = vpop.f32.mrb[0].mxu0
        %v5219 = vpop.f32.mrb[0].mxu0
        %v5220 = vadd.f32 0.0, %v5219
        %v5221 = vpop.f32.mrb[0].mxu0
        %5222 = vmatprep.mubr.bf16.mxu0 %v4881
        %5223 = vmatmul.mubr.bf16.gmra.mrb[0].mxu0 %v4865
        %v5224 = vpop.f32.mrb[0].mxu0
        %v5225 = vadd.f32 0.0, %v5224
        %v5226 = vpop.f32.mrb[0].mxu0
        %v5227 = vpop.f32.mrb[0].mxu0
        %v5228 = vadd.f32 0.0, %v5227
        %v5229 = vpop.f32.mrb[0].mxu0
        %5230 = vmatprep.mubr.bf16.mxu0 %v4882
        %5231 = vmatmul.mubr.bf16.gmra.mrb[0].mxu0 %v4866
        %v5232 = vpop.f32.mrb[0].mxu0
        %v5233 = vadd.f32 0.0, %v5232
        %v5234 = vpop.f32.mrb[0].mxu0
        %v5235 = vpop.f32.mrb[0].mxu0
        %v5236 = vadd.f32 0.0, %v5235
        %v5237 = vpop.f32.mrb[0].mxu0
        %5238 = vmatprep.mubr.bf16.mxu0 %v4883
        %5239 = vmatmul.mubr.bf16.gmra.mrb[0].mxu0 %v4867
        %v5240 = vpop.f32.mrb[0].mxu0
        %v5241 = vadd.f32 0.0, %v5240
        %v5242 = vpop.f32.mrb[0].mxu0
        %v5243 = vpop.f32.mrb[0].mxu0
        %v5244 = vadd.f32 0.0, %v5243
        %v5245 = vpop.f32.mrb[0].mxu0
        %5246 = vmatprep.mubr.bf16.mxu0 %v4884
        %5247 = vmatmul.mubr.bf16.gmra.mrb[0].mxu0 %v4868
        %v5248 = vpop.f32.mrb[0].mxu0
        %v5249 = vadd.f32 0.0, %v5248
        %v5250 = vpop.f32.mrb[0].mxu0
        %v5251 = vpop.f32.mrb[0].mxu0
        %v5252 = vadd.f32 0.0, %v5251
        %v5253 = vpop.f32.mrb[0].mxu0
        %5254 = vdwg.mxu0
        %5255 = vmatprep.subr.bf16.mxu0 0
        %5256 = vmatpush1.bf16.msra.mxu0 %v5062
        %5257 = vmatprep.subr.bf16.mxu0 0
        %5258 = vmatpush1.bf16.msra.mxu0 %v5063
        %5259 = vmatprep.subr.bf16.mxu0 0
        %5260 = vmatpush1.bf16.msra.mxu0 %v5064
        %5261 = vmatprep.subr.bf16.mxu0 0
        %5262 = vmatpush1.bf16.msra.mxu0 %v5065
        %5263 = vmatprep.subr.bf16.mxu0 0
        %5264 = vmatpush1.bf16.msra.mxu0 %v5066
        %5265 = vmatprep.subr.bf16.mxu0 0
        %5266 = vmatpush1.bf16.msra.mxu0 %v5067
        %5267 = vmatprep.subr.bf16.mxu0 0
        %5268 = vmatpush1.bf16.msra.mxu0 %v5068
        %5269 = vmatprep.subr.bf16.mxu0 0
        %5270 = vmatpush1.bf16.msra.mxu0 %v5069
        %5271 = vmatprep.subr.bf16.mxu0 0
        %5272 = vmatpush1.bf16.msra.mxu0 0
        %5273 = vmatprep.subr.bf16.mxu0 0
        %5274 = vmatpush1.bf16.msra.mxu0 0
        %5275 = vmatprep.subr.bf16.mxu0 0
        %5276 = vmatpush1.bf16.msra.mxu0 0
        %5277 = vmatprep.subr.bf16.mxu0 0
        %5278 = vmatpush1.bf16.msra.mxu0 0
        %5279 = vmatprep.subr.bf16.mxu0 0
        %5280 = vmatpush1.bf16.msra.mxu0 0
        %5281 = vmatprep.subr.bf16.mxu0 0
        %5282 = vmatpush1.bf16.msra.mxu0 0
        %5283 = vmatprep.subr.bf16.mxu0 0
        %5284 = vmatpush1.bf16.msra.mxu0 0
        %5285 = vmatprep.subr.bf16.mxu0 0
        %5286 = vmatpush1.bf16.msra.mxu0 0
        %5287 = vmatprep.mubr.bf16.mxu0 0
        %5288 = vmatmul.mubr.bf16.gmra.mrb[0].mxu0 %v4885
        %v5289 = vpop.f32.mrb[0].mxu0
        %v5290 = vadd.f32 %v5129, %v5289
        %v5291 = vpop.f32.mrb[0].mxu0
        %v5292 = vpop.f32.mrb[0].mxu0
        %v5293 = vadd.f32 %v5132, %v5292
        %v5294 = vpop.f32.mrb[0].mxu0
        %5295 = vmatprep.mubr.bf16.mxu0 0
        %5296 = vmatmul.mubr.bf16.gmra.mrb[0].mxu0 %v4886
        %v5297 = vpop.f32.mrb[0].mxu0
        %v5298 = vadd.f32 %v5137, %v5297
        %v5299 = vpop.f32.mrb[0].mxu0
        %v5300 = vpop.f32.mrb[0].mxu0
        %v5301 = vadd.f32 %v5140, %v5300
        %v5302 = vpop.f32.mrb[0].mxu0
        %5303 = vmatprep.mubr.bf16.mxu0 0
        %5304 = vmatmul.mubr.bf16.gmra.mrb[0].mxu0 %v4887
        %v5305 = vpop.f32.mrb[0].mxu0
        %v5306 = vadd.f32 %v5145, %v5305
        %v5307 = vpop.f32.mrb[0].mxu0
        %v5308 = vpop.f32.mrb[0].mxu0
        %v5309 = vadd.f32 %v5148, %v5308
        %v5310 = vpop.f32.mrb[0].mxu0
        %5311 = vmatprep.mubr.bf16.mxu0 0
        %5312 = vmatmul.mubr.bf16.gmra.mrb[0].mxu0 %v4888
        %v5313 = vpop.f32.mrb[0].mxu0
        %v5314 = vadd.f32 %v5153, %v5313
        %v5315 = vpop.f32.mrb[0].mxu0
        %v5316 = vpop.f32.mrb[0].mxu0
        %v5317 = vadd.f32 %v5156, %v5316
        %v5318 = vpop.f32.mrb[0].mxu0
        %5319 = vmatprep.mubr.bf16.mxu0 0
        %5320 = vmatmul.mubr.bf16.gmra.mrb[0].mxu0 %v4889
        %v5321 = vpop.f32.mrb[0].mxu0
        %v5322 = vadd.f32 %v5161, %v5321
        %v5323 = vpop.f32.mrb[0].mxu0
        %v5324 = vpop.f32.mrb[0].mxu0
        %v5325 = vadd.f32 %v5164, %v5324
        %v5326 = vpop.f32.mrb[0].mxu0
        %5327 = vmatprep.mubr.bf16.mxu0 0
        %5328 = vmatmul.mubr.bf16.gmra.mrb[0].mxu0 %v4890
        %v5329 = vpop.f32.mrb[0].mxu0
        %v5330 = vadd.f32 %v5169, %v5329
        %v5331 = vpop.f32.mrb[0].mxu0
        %v5332 = vpop.f32.mrb[0].mxu0
        %v5333 = vadd.f32 %v5172, %v5332
        %v5334 = vpop.f32.mrb[0].mxu0
        %5335 = vmatprep.mubr.bf16.mxu0 0
        %5336 = vmatmul.mubr.bf16.gmra.mrb[0].mxu0 %v4891
        %v5337 = vpop.f32.mrb[0].mxu0
        %v5338 = vadd.f32 %v5177, %v5337
        %v5339 = vpop.f32.mrb[0].mxu0
        %v5340 = vpop.f32.mrb[0].mxu0
        %v5341 = vadd.f32 %v5180, %v5340
        %v5342 = vpop.f32.mrb[0].mxu0
        %5343 = vmatprep.mubr.bf16.mxu0 0
        %5344 = vmatmul.mubr.bf16.gmra.mrb[0].mxu0 %v4892
        %v5345 = vpop.f32.mrb[0].mxu0
        %v5346 = vadd.f32 %v5185, %v5345
        %v5347 = vpop.f32.mrb[0].mxu0
        %v5348 = vpop.f32.mrb[0].mxu0
        %v5349 = vadd.f32 %v5188, %v5348
        %v5350 = vpop.f32.mrb[0].mxu0
        %5351 = vmatprep.mubr.bf16.mxu0 0
        %5352 = vmatmul.mubr.bf16.gmra.mrb[0].mxu0 %v4893
        %v5353 = vpop.f32.mrb[0].mxu0
        %v5354 = vadd.f32 %v5193, %v5353
        %v5355 = vpop.f32.mrb[0].mxu0
        %v5356 = vpop.f32.mrb[0].mxu0
        %v5357 = vadd.f32 %v5196, %v5356
        %v5358 = vpop.f32.mrb[0].mxu0
        %5359 = vmatprep.mubr.bf16.mxu0 0
        %5360 = vmatmul.mubr.bf16.gmra.mrb[0].mxu0 %v4894
        %v5361 = vpop.f32.mrb[0].mxu0
        %v5362 = vadd.f32 %v5201, %v5361
        %v5363 = vpop.f32.mrb[0].mxu0
        %v5364 = vpop.f32.mrb[0].mxu0
        %v5365 = vadd.f32 %v5204, %v5364
        %v5366 = vpop.f32.mrb[0].mxu0
        %5367 = vmatprep.mubr.bf16.mxu0 0
        %5368 = vmatmul.mubr.bf16.gmra.mrb[0].mxu0 %v4895
        %v5369 = vpop.f32.mrb[0].mxu0
        %v5370 = vadd.f32 %v5209, %v5369
        %v5371 = vpop.f32.mrb[0].mxu0
        %v5372 = vpop.f32.mrb[0].mxu0
        %v5373 = vadd.f32 %v5212, %v5372
        %v5374 = vpop.f32.mrb[0].mxu0
        %5375 = vmatprep.mubr.bf16.mxu0 0
        %5376 = vmatmul.mubr.bf16.gmra.mrb[0].mxu0 %v4896
        %v5377 = vpop.f32.mrb[0].mxu0
        %v5378 = vadd.f32 %v5217, %v5377
        %v5379 = vpop.f32.mrb[0].mxu0
        %v5380 = vpop.f32.mrb[0].mxu0
        %v5381 = vadd.f32 %v5220, %v5380
        %v5382 = vpop.f32.mrb[0].mxu0
        %5383 = vmatprep.mubr.bf16.mxu0 0
        %5384 = vmatmul.mubr.bf16.gmra.mrb[0].mxu0 %v4897
        %v5385 = vpop.f32.mrb[0].mxu0
        %v5386 = vadd.f32 %v5225, %v5385
        %v5387 = vpop.f32.mrb[0].mxu0
        %v5388 = vpop.f32.mrb[0].mxu0
        %v5389 = vadd.f32 %v5228, %v5388
        %v5390 = vpop.f32.mrb[0].mxu0
        %5391 = vmatprep.mubr.bf16.mxu0 0
        %5392 = vmatmul.mubr.bf16.gmra.mrb[0].mxu0 %v4898
        %v5393 = vpop.f32.mrb[0].mxu0
        %v5394 = vadd.f32 %v5233, %v5393
        %v5395 = vpop.f32.mrb[0].mxu0
        %v5396 = vpop.f32.mrb[0].mxu0
        %v5397 = vadd.f32 %v5236, %v5396
        %v5398 = vpop.f32.mrb[0].mxu0
        %5399 = vmatprep.mubr.bf16.mxu0 0
        %5400 = vmatmul.mubr.bf16.gmra.mrb[0].mxu0 %v4899
        %v5401 = vpop.f32.mrb[0].mxu0
        %v5402 = vadd.f32 %v5241, %v5401
        %v5403 = vpop.f32.mrb[0].mxu0
        %v5404 = vpop.f32.mrb[0].mxu0
        %v5405 = vadd.f32 %v5244, %v5404
        %v5406 = vpop.f32.mrb[0].mxu0
        %5407 = vmatprep.mubr.bf16.mxu0 0
        %5408 = vmatmul.mubr.bf16.gmra.mrb[0].mxu0 %v4900
        %v5409 = vpop.f32.mrb[0].mxu0
        %v5410 = vadd.f32 %v5249, %v5409
        %v5411 = vpop.f32.mrb[0].mxu0
        %v5412 = vpop.f32.mrb[0].mxu0
        %v5413 = vadd.f32 %v5252, %v5412
        %v5414 = vpop.f32.mrb[0].mxu0
        %5415 = vdwg.mxu0
        %v5416 = vadd.f32 %v4567, %v5290
        %v5417 = vadd.f32 %v4570, %v5293
        %v5418 = vadd.f32 %v4575, %v5298
        %v5419 = vadd.f32 %v4578, %v5301
        %v5420 = vadd.f32 %v4583, %v5306
        %v5421 = vadd.f32 %v4586, %v5309
        %v5422 = vadd.f32 %v4591, %v5314
        %v5423 = vadd.f32 %v4594, %v5317
        %v5424 = vadd.f32 %v4599, %v5322
        %v5425 = vadd.f32 %v4602, %v5325
        %v5426 = vadd.f32 %v4607, %v5330
        %v5427 = vadd.f32 %v4610, %v5333
        %v5428 = vadd.f32 %v4615, %v5338
        %v5429 = vadd.f32 %v4618, %v5341
        %v5430 = vadd.f32 %v4623, %v5346
        %v5431 = vadd.f32 %v4626, %v5349
        %v5432 = vadd.f32 %v4631, %v5354
        %v5433 = vadd.f32 %v4634, %v5357
        %v5434 = vadd.f32 %v4639, %v5362
        %v5435 = vadd.f32 %v4642, %v5365
        %v5436 = vadd.f32 %v4647, %v5370
        %v5437 = vadd.f32 %v4650, %v5373
        %v5438 = vadd.f32 %v4655, %v5378
        %v5439 = vadd.f32 %v4658, %v5381
        %v5440 = vadd.f32 %v4663, %v5386
        %v5441 = vadd.f32 %v4666, %v5389
        %v5442 = vadd.f32 %v4671, %v5394
        %v5443 = vadd.f32 %v4674, %v5397
        %v5444 = vadd.f32 %v4679, %v5402
        %v5445 = vadd.f32 %v4682, %v5405
        %v5446 = vadd.f32 %v4687, %v5410
        %v5447 = vadd.f32 %v4690, %v5413
        %v5448 = vld [vmem:[%s287] sm:$0xff]
        %v5449 = vld [vmem:[%s287 + $0x8] sm:$0xff]
        %v5450 = vld [vmem:[%s287 + $0x10] sm:$0xff]
        %v5451 = vld [vmem:[%s287 + $0x18] sm:$0xff]
        %v5452 = vld [vmem:[%s287 + $0x20] sm:$0xff]
        %v5453 = vld [vmem:[%s287 + $0x28] sm:$0xff]
        %v5454 = vld [vmem:[%s287 + $0x30] sm:$0xff]
        %v5455 = vld [vmem:[%s287 + $0x38] sm:$0xff]
        %v5456 = vld [vmem:[%s287 + $0x40] sm:$0xff]
        %v5457 = vld [vmem:[%s287 + $0x48] sm:$0xff]
        %v5458 = vld [vmem:[%s287 + $0x50] sm:$0xff]
        %v5459 = vld [vmem:[%s287 + $0x58] sm:$0xff]
        %v5460 = vld [vmem:[%s287 + $0x60] sm:$0xff]
        %v5461 = vld [vmem:[%s287 + $0x68] sm:$0xff]
        %v5462 = vld [vmem:[%s287 + $0x70] sm:$0xff]
        %v5463 = vld [vmem:[%s287 + $0x78] sm:$0xff]
        %v5464 = vld [vmem:[%s287 + $0x80] sm:$0xff]
        %v5465 = vld [vmem:[%s287 + $0x88] sm:$0xff]
        %v5466 = vld [vmem:[%s287 + $0x90] sm:$0xff]
        %v5467 = vld [vmem:[%s287 + $0x98] sm:$0xff]
        %v5468 = vld [vmem:[%s287 + $0xa0] sm:$0xff]
        %v5469 = vld [vmem:[%s287 + $0xa8] sm:$0xff]
        %v5470 = vld [vmem:[%s287 + $0xb0] sm:$0xff]
        %v5471 = vld [vmem:[%s287 + $0xb8] sm:$0xff]
        %v5472 = vld [vmem:[%s287 + $0xc0] sm:$0xff]
        %v5473 = vld [vmem:[%s287 + $0xc8] sm:$0xff]
        %v5474 = vld [vmem:[%s287 + $0xd0] sm:$0xff]
        %v5475 = vld [vmem:[%s287 + $0xd8] sm:$0xff]
        %v5476 = vld [vmem:[%s287 + $0xe0] sm:$0xff]
        %v5477 = vld [vmem:[%s287 + $0xe8] sm:$0xff]
        %v5478 = vld [vmem:[%s287 + $0xf0] sm:$0xff]
        %v5479 = vld [vmem:[%s287 + $0xf8] sm:$0xff]
        %v5480 = vadd.f32 %v5416, %v5448
        %v5481 = vadd.f32 %v5417, %v5449
        %v5482 = vadd.f32 %v5418, %v5450
        %v5483 = vadd.f32 %v5419, %v5451
        %v5484 = vadd.f32 %v5420, %v5452
        %v5485 = vadd.f32 %v5421, %v5453
        %v5486 = vadd.f32 %v5422, %v5454
        %v5487 = vadd.f32 %v5423, %v5455
        %v5488 = vadd.f32 %v5424, %v5456
        %v5489 = vadd.f32 %v5425, %v5457
        %v5490 = vadd.f32 %v5426, %v5458
        %v5491 = vadd.f32 %v5427, %v5459
        %v5492 = vadd.f32 %v5428, %v5460
        %v5493 = vadd.f32 %v5429, %v5461
        %v5494 = vadd.f32 %v5430, %v5462
        %v5495 = vadd.f32 %v5431, %v5463
        %v5496 = vadd.f32 %v5432, %v5464
        %v5497 = vadd.f32 %v5433, %v5465
        %v5498 = vadd.f32 %v5434, %v5466
        %v5499 = vadd.f32 %v5435, %v5467
        %v5500 = vadd.f32 %v5436, %v5468
        %v5501 = vadd.f32 %v5437, %v5469
        %v5502 = vadd.f32 %v5438, %v5470
        %v5503 = vadd.f32 %v5439, %v5471
        %v5504 = vadd.f32 %v5440, %v5472
        %v5505 = vadd.f32 %v5441, %v5473
        %v5506 = vadd.f32 %v5442, %v5474
        %v5507 = vadd.f32 %v5443, %v5475
        %v5508 = vadd.f32 %v5444, %v5476
        %v5509 = vadd.f32 %v5445, %v5477
        %v5510 = vadd.f32 %v5446, %v5478
        %v5511 = vadd.f32 %v5447, %v5479
        %v5512 = vmax.f32 %v5480, 0.0
        %v5513 = vmax.f32 %v5481, 0.0
        %v5514 = vmax.f32 %v5482, 0.0
        %v5515 = vmax.f32 %v5483, 0.0
        %v5516 = vmax.f32 %v5484, 0.0
        %v5517 = vmax.f32 %v5485, 0.0
        %v5518 = vmax.f32 %v5486, 0.0
        %v5519 = vmax.f32 %v5487, 0.0
        %v5520 = vmax.f32 %v5488, 0.0
        %v5521 = vmax.f32 %v5489, 0.0
        %v5522 = vmax.f32 %v5490, 0.0
        %v5523 = vmax.f32 %v5491, 0.0
        %v5524 = vmax.f32 %v5492, 0.0
        %v5525 = vmax.f32 %v5493, 0.0
        %v5526 = vmax.f32 %v5494, 0.0
        %v5527 = vmax.f32 %v5495, 0.0
        %v5528 = vmax.f32 %v5496, 0.0
        %v5529 = vmax.f32 %v5497, 0.0
        %v5530 = vmax.f32 %v5498, 0.0
        %v5531 = vmax.f32 %v5499, 0.0
        %v5532 = vmax.f32 %v5500, 0.0
        %v5533 = vmax.f32 %v5501, 0.0
        %v5534 = vmax.f32 %v5502, 0.0
        %v5535 = vmax.f32 %v5503, 0.0
        %v5536 = vmax.f32 %v5504, 0.0
        %v5537 = vmax.f32 %v5505, 0.0
        %v5538 = vmax.f32 %v5506, 0.0
        %v5539 = vmax.f32 %v5507, 0.0
        %v5540 = vmax.f32 %v5508, 0.0
        %v5541 = vmax.f32 %v5509, 0.0
        %v5542 = vmax.f32 %v5510, 0.0
        %v5543 = vmax.f32 %v5511, 0.0
        %5544 = vst [vmem:[%s325] sm:$0xff] %v5512
        %5545 = vst [vmem:[%s325 + $0x8] sm:$0xff] %v5513
        %5546 = vst [vmem:[%s325 + $0x10] sm:$0xff] %v5514
        %5547 = vst [vmem:[%s325 + $0x18] sm:$0xff] %v5515
        %5548 = vst [vmem:[%s325 + $0x20] sm:$0xff] %v5516
        %5549 = vst [vmem:[%s325 + $0x28] sm:$0xff] %v5517
        %5550 = vst [vmem:[%s325 + $0x30] sm:$0xff] %v5518
        %5551 = vst [vmem:[%s325 + $0x38] sm:$0xff] %v5519
        %5552 = vst [vmem:[%s325 + $0x40] sm:$0xff] %v5520
        %5553 = vst [vmem:[%s325 + $0x48] sm:$0xff] %v5521
        %5554 = vst [vmem:[%s325 + $0x50] sm:$0xff] %v5522
        %5555 = vst [vmem:[%s325 + $0x58] sm:$0xff] %v5523
        %5556 = vst [vmem:[%s325 + $0x60] sm:$0xff] %v5524
        %5557 = vst [vmem:[%s325 + $0x68] sm:$0xff] %v5525
        %5558 = vst [vmem:[%s325 + $0x70] sm:$0xff] %v5526
        %5559 = vst [vmem:[%s325 + $0x78] sm:$0xff] %v5527
        %5560 = vst [vmem:[%s325 + $0x80] sm:$0xff] %v5528
        %5561 = vst [vmem:[%s325 + $0x88] sm:$0xff] %v5529
        %5562 = vst [vmem:[%s325 + $0x90] sm:$0xff] %v5530
        %5563 = vst [vmem:[%s325 + $0x98] sm:$0xff] %v5531
        %5564 = vst [vmem:[%s325 + $0xa0] sm:$0xff] %v5532
        %5565 = vst [vmem:[%s325 + $0xa8] sm:$0xff] %v5533
        %5566 = vst [vmem:[%s325 + $0xb0] sm:$0xff] %v5534
        %5567 = vst [vmem:[%s325 + $0xb8] sm:$0xff] %v5535
        %5568 = vst [vmem:[%s325 + $0xc0] sm:$0xff] %v5536
        %5569 = vst [vmem:[%s325 + $0xc8] sm:$0xff] %v5537
        %5570 = vst [vmem:[%s325 + $0xd0] sm:$0xff] %v5538
        %5571 = vst [vmem:[%s325 + $0xd8] sm:$0xff] %v5539
        %5572 = vst [vmem:[%s325 + $0xe0] sm:$0xff] %v5540
        %5573 = vst [vmem:[%s325 + $0xe8] sm:$0xff] %v5541
        %5574 = vst [vmem:[%s325 + $0xf0] sm:$0xff] %v5542
        %5575 = vst [vmem:[%s325 + $0xf8] sm:$0xff] %v5543
        %s5576 = sand.u32 %s185, 1
        %s5577 = scalar_lea.sflag [#allocation5], %s5576
        %s5578 = sand.u32 %s185, 1
        %s5579 = smul.addr %s5578, 256
        %s5580 = scalar_lea.vmem [#allocation9], %s5579
        // Predicated region
        $region61: #{tpu_custom_call.1} parent=47 // pred_check
          %p5581 = pneg %p195
        $region62: #{tpu_custom_call.1} parent=47 // pred_check_branch
          %5583 = sbr.rel (%p5581) target = $region64
        $region63: #{tpu_custom_call.1} parent=47 // pred_region
          %s5585 = ssub.s32 4096, 4096
          %5586 = vsyncadd %s5577, %s5585
          %s5587 = smul.addr %s25, 32
          %s5588 = smul.addr %s5587, 128
          %s5589 = scalar_lea.hbm %s7, %s5588
          %s5590 = sshll.u32 %s5580, 4
          %s5591 = int_to_ptr.vmem [resolvable:$true] %s5590
          %5596 = dma.vmem_to_hbm [thread:$0]  %s5591, 4096, %s5589, %s5577, 128, 128, 8
        $region64: #{tpu_custom_call.1} parent=47 // pred_fallthru
          _
      $region48: #{tpu_custom_call.1} parent=5 // pred_fallthru
        _
      %p5597 = scmp.le.s32.totalorder 2, %s20
      // Predicated region
      $region65: #{tpu_custom_call.1} parent=5 // pred_check
        %p5598 = pneg %p5597
      $region66: #{tpu_custom_call.1} parent=5 // pred_check_branch
        %5600 = sbr.rel (%p5598) target = $region68
      $region67: #{tpu_custom_call.1} parent=5 // pred_region
        %s5601 = ssub.s32 %s20, 2
        // Predicated region
        $region69: #{tpu_custom_call.1} parent=67 // pred_check
          %p5602 = pneg %p201
        $region70: #{tpu_custom_call.1} parent=67 // pred_check_branch
          %5604 = sbr.rel (%p5602) target = $region72
        $region71: #{tpu_custom_call.1} parent=67 // pred_region
          %s5605 = sand.u32 %s186, 1
          %s5606 = scalar_lea.sflag [#allocation5], %s5605
          %s5607 = sand.u32 %s186, 1
          %s5608 = smul.addr %s5607, 256
          %s5609 = scalar_lea.vmem [#allocation9], %s5608
          %5610 = dma.done %s5606, 4096
        $region72: #{tpu_custom_call.1} parent=67 // pred_fallthru
          _
      $region68: #{tpu_custom_call.1} parent=5 // pred_fallthru
        _
    $region6: #{tpu_custom_call.1} parent=1 // loop_footer
      %s24 = sadd.s32 1, %s20
    $region7: #{tpu_custom_call.1} parent=1 // loop_footer_branch
      %19 = sbr.rel target = $region3
    $region8: #{tpu_custom_call.1} parent=1 // loop_exit
      _
    %5611 = vsyncpa [#allocation4], 1
    %s5612 = scalar_lea.sflag [#allocation4], 1
    %5613 = vsyncpa %s5612, 1
    %5614 = vsyncpa [#allocation7], 1
    %5615 = vsyncpa [#allocation5], 1
    %s5616 = scalar_lea.sflag [#allocation5], 1
    %5617 = vsyncpa %s5616, 1

</llo_original>
